<compile_context>
chip_gen: v7x
topology: tpu7x:2x2x1
jax: 0.10.0
libtpu: 0.0.40
codegen_flags: <defaults>
</compile_context>

<pallas_src>
import jax
import jax.numpy as jnp
from jax.experimental import pallas as pl
from jax.experimental.pallas import tpu as pltpu

DIMS = [900, 700, 500, 300, 100, 6]            # PyTorch Linear sizes
PAD = [1024, 768, 512, 384, 128, 128]          # lane-aligned (multiples of 128)
BIAS_OFF = [0, 768, 1280, 1664, 1792]          # offsets of each layer's bias in the pack
BIAS_TOTAL = 1920                              # 768+512+384+128+128


def _round_up(n, m):
    return ((n + m - 1) // m) * m


def _mlp_kernel(x_ref,
                w1_ref, w2_ref, w3_ref, w4_ref, w5_ref,
                b_ref,
                o_ref):
    """x_ref: (TB, 1024) bf16; w*_ref: padded bf16 (in_pad, out_pad);
    b_ref: (1, 1920) f32 packed biases; o_ref: (TB, 128) f32."""

    def layer(h_bf16, w_ref, layer_idx, relu):
        out_w = PAD[layer_idx + 1]
        off = BIAS_OFF[layer_idx]
        acc = jnp.dot(h_bf16, w_ref[...], preferred_element_type=jnp.float32)
        acc = acc + b_ref[:, off:off + out_w]          # f32 bias add, broadcasts over rows
        if relu:
            return jnp.maximum(acc, 0.0).astype(jnp.bfloat16)
        return acc                                      # keep f32 for the final sigmoid

    h = x_ref[...]                                      # bf16 activations
    h = layer(h, w1_ref, 0, relu=True)
    h = layer(h, w2_ref, 1, relu=True)
    h = layer(h, w3_ref, 2, relu=True)
    h = layer(h, w4_ref, 3, relu=True)
    logits = layer(h, w5_ref, 4, relu=False)            # (TB, 128) f32
    o_ref[...] = jax.nn.sigmoid(logits)


def prepare_params(params):
    """params: list of (w_t, b) with w_t f32 (in, out), b f32 (out,).
    Returns (padded bf16 weights list, packed f32 bias buffer)."""
    ws = []
    b_pack = jnp.zeros((1, BIAS_TOTAL), jnp.float32)
    for i, (w_t, b) in enumerate(params):
        in_p, out_p = PAD[i], PAD[i + 1]
        w_pad = jnp.zeros((in_p, out_p), jnp.float32)
        w_pad = w_pad.at[:DIMS[i], :DIMS[i + 1]].set(w_t)
        ws.append(w_pad.astype(jnp.bfloat16))
        b_pack = b_pack.at[0, BIAS_OFF[i]:BIAS_OFF[i] + DIMS[i + 1]].set(b)
    return ws, b_pack


def net_forward(x, prepared):
    """x: (B, 900) f32. prepared: output of prepare_params. Returns (B, 6) f32."""
    ws, b_pack = prepared
    B = x.shape[0]

    # Batch tile: big enough to amortize per-step overhead, small enough for
    # v7x's 64 MiB VMEM (bf16 x-tile @ TB=512 is 1 MiB).
    TB = min(512, _round_up(max(B, 1), 8))
    B_pad = _round_up(B, TB)

    # Pad batch and feature dim, cast activations to bf16.
    x_p = jnp.zeros((B_pad, PAD[0]), jnp.bfloat16)
    x_p = x_p.at[:B, :DIMS[0]].set(x.astype(jnp.bfloat16))

    grid = (B_pad // TB,)

    x_spec = pl.BlockSpec((TB, PAD[0]), lambda i: (i, 0))
    w_specs = [
        pl.BlockSpec((PAD[j], PAD[j + 1]), lambda i: (0, 0)) for j in range(5)
    ]
    b_spec = pl.BlockSpec((1, BIAS_TOTAL), lambda i: (0, 0))
    o_spec = pl.BlockSpec((TB, PAD[-1]), lambda i: (i, 0))

    out_p = pl.pallas_call(
        _mlp_kernel,
        out_shape=jax.ShapeDtypeStruct((B_pad, PAD[-1]), jnp.float32),
        grid=grid,
        in_specs=[x_spec] + w_specs + [b_spec],
        out_specs=o_spec,
        compiler_params=pltpu.CompilerParams(
            dimension_semantics=("parallel",),
            vmem_limit_bytes=24 << 20,
        ),
    )(x_p, *ws, b_pack)

    return out_p[:B, :DIMS[-1]]


def init_params(key):
    """Mimics PyTorch nn.Linear default init (uniform +/- 1/sqrt(fan_in)).
    Weights stored pre-transposed as (in, out), biases as (out,), both f32."""
    params = []
    for i in range(len(DIMS) - 1):
        fan_in, fan_out = DIMS[i], DIMS[i + 1]
        key, kw, kb = jax.random.split(key, 3)
        bound = 1.0 / (fan_in ** 0.5)
        w_t = jax.random.uniform(kw, (fan_in, fan_out), jnp.float32, -bound, bound)
        b = jax.random.uniform(kb, (fan_out,), jnp.float32, -bound, bound)
        params.append((w_t, b))
    return params


if __name__ == "__main__":
    key = jax.random.PRNGKey(0)
    key, kx = jax.random.split(key)
    batch = 2
    x = jax.random.normal(kx, (batch, DIMS[0]), jnp.float32)
    params = init_params(key)
    prepared = prepare_params(params)

    out = net_forward(x, prepared)
    out = jax.block_until_ready(out)
    assert out.shape == (batch, DIMS[-1])

    # Reference in plain JAX mirroring the kernel's bf16-input / f32-accum math.
    ref = x.astype(jnp.bfloat16)
    for i, (w_t, b) in enumerate(params):
        acc = jnp.dot(ref, w_t.astype(jnp.bfloat16),
                      preferred_element_type=jnp.float32) + b
        if i == len(params) - 1:
            ref = jax.nn.sigmoid(acc)
        else:
            ref = jnp.maximum(acc, 0.0).astype(jnp.bfloat16)
    assert jnp.allclose(out, ref, atol=2e-3, rtol=2e-3), (
        float(jnp.max(jnp.abs(out - ref))))

    print("KERNEL_OK")
</pallas_src>

<mosaic_0001>
module attributes {stable_mosaic.version = 11 : i64} {
  func.func @_mlp_kernel(%arg0: i32, %arg1: memref<8x1024xbf16, #tpu.memory_space<vmem>>, %arg2: memref<1024x768xbf16, #tpu.memory_space<vmem>>, %arg3: memref<768x512xbf16, #tpu.memory_space<vmem>>, %arg4: memref<512x384xbf16, #tpu.memory_space<vmem>>, %arg5: memref<384x128xbf16, #tpu.memory_space<vmem>>, %arg6: memref<128x128xbf16, #tpu.memory_space<vmem>>, %arg7: memref<1x1920xf32, #tpu.memory_space<vmem>>, %arg8: memref<8x128xf32, #tpu.memory_space<vmem>>) attributes {dimension_semantics = [#tpu.dimension_semantics<parallel>], iteration_bounds = array<i64: 1>, scalar_prefetch = 0 : i64, scratch_operands = 0 : i64, tpu.core_type = #tpu.core_type<tc>, window_params = [{transform_indices = @transform_0, window_bounds = array<i64: 8, 1024>}, {pipeline_mode = #tpu.pipeline_mode<synchronous>, transform_indices = @transform_1, window_bounds = array<i64: 1024, 768>}, {pipeline_mode = #tpu.pipeline_mode<synchronous>, transform_indices = @transform_2, window_bounds = array<i64: 768, 512>}, {pipeline_mode = #tpu.pipeline_mode<synchronous>, transform_indices = @transform_3, window_bounds = array<i64: 512, 384>}, {pipeline_mode = #tpu.pipeline_mode<synchronous>, transform_indices = @transform_4, window_bounds = array<i64: 384, 128>}, {pipeline_mode = #tpu.pipeline_mode<synchronous>, transform_indices = @transform_5, window_bounds = array<i64: 128, 128>}, {pipeline_mode = #tpu.pipeline_mode<synchronous>, transform_indices = @transform_6, window_bounds = array<i64: 1, 1920>}, {transform_indices = @transform_7, window_bounds = array<i64: 8, 128>}]} {
    %c0 = arith.constant 0 : index
    %c0_0 = arith.constant 0 : index
    %0 = vector.load %arg1[%c0, %c0_0] : memref<8x1024xbf16, #tpu.memory_space<vmem>>, vector<8x1024xbf16>
    %c0_1 = arith.constant 0 : index
    %c0_2 = arith.constant 0 : index
    %1 = vector.load %arg2[%c0_1, %c0_2] : memref<1024x768xbf16, #tpu.memory_space<vmem>>, vector<1024x768xbf16>
    %cst = arith.constant dense<0.000000e+00> : vector<8x768xf32>
    %2 = tpu.matmul %0, %1, %cst {dimension_numbers = #tpu.dot_dimension_numbers<[1], [0], [0], [1], [0, 0, 1, 1], [], []>} : vector<8x1024xbf16>, vector<1024x768xbf16>, vector<8x768xf32> -> vector<8x768xf32>
    %c0_3 = arith.constant 0 : index
    %c0_4 = arith.constant 0 : index
    %3 = vector.load %arg7[%c0_3, %c0_4] : memref<1x1920xf32, #tpu.memory_space<vmem>>, vector<1x768xf32>
    %4 = vector.broadcast %3 : vector<1x768xf32> to vector<8x768xf32>
    %5 = arith.addf %2, %4 : vector<8x768xf32>
    %cst_5 = arith.constant 0.000000e+00 : f32
    %6 = vector.broadcast %cst_5 : f32 to vector<8x768xf32>
    %7 = arith.maximumf %5, %6 : vector<8x768xf32>
    %8 = arith.truncf %7 : vector<8x768xf32> to vector<8x768xbf16>
    %c0_6 = arith.constant 0 : index
    %c0_7 = arith.constant 0 : index
    %9 = vector.load %arg3[%c0_6, %c0_7] : memref<768x512xbf16, #tpu.memory_space<vmem>>, vector<768x512xbf16>
    %cst_8 = arith.constant dense<0.000000e+00> : vector<8x512xf32>
    %10 = tpu.matmul %8, %9, %cst_8 {dimension_numbers = #tpu.dot_dimension_numbers<[1], [0], [0], [1], [0, 0, 1, 1], [], []>} : vector<8x768xbf16>, vector<768x512xbf16>, vector<8x512xf32> -> vector<8x512xf32>
    %c0_9 = arith.constant 0 : index
    %c768 = arith.constant 768 : index
    %11 = vector.load %arg7[%c0_9, %c768] : memref<1x1920xf32, #tpu.memory_space<vmem>>, vector<1x512xf32>
    %12 = vector.broadcast %11 : vector<1x512xf32> to vector<8x512xf32>
    %13 = arith.addf %10, %12 : vector<8x512xf32>
    %cst_10 = arith.constant 0.000000e+00 : f32
    %14 = vector.broadcast %cst_10 : f32 to vector<8x512xf32>
    %15 = arith.maximumf %13, %14 : vector<8x512xf32>
    %16 = arith.truncf %15 : vector<8x512xf32> to vector<8x512xbf16>
    %c0_11 = arith.constant 0 : index
    %c0_12 = arith.constant 0 : index
    %17 = vector.load %arg4[%c0_11, %c0_12] : memref<512x384xbf16, #tpu.memory_space<vmem>>, vector<512x384xbf16>
    %cst_13 = arith.constant dense<0.000000e+00> : vector<8x384xf32>
    %18 = tpu.matmul %16, %17, %cst_13 {dimension_numbers = #tpu.dot_dimension_numbers<[1], [0], [0], [1], [0, 0, 1, 1], [], []>} : vector<8x512xbf16>, vector<512x384xbf16>, vector<8x384xf32> -> vector<8x384xf32>
    %c0_14 = arith.constant 0 : index
    %c1280 = arith.constant 1280 : index
    %19 = vector.load %arg7[%c0_14, %c1280] : memref<1x1920xf32, #tpu.memory_space<vmem>>, vector<1x384xf32>
    %20 = vector.broadcast %19 : vector<1x384xf32> to vector<8x384xf32>
    %21 = arith.addf %18, %20 : vector<8x384xf32>
    %cst_15 = arith.constant 0.000000e+00 : f32
    %22 = vector.broadcast %cst_15 : f32 to vector<8x384xf32>
    %23 = arith.maximumf %21, %22 : vector<8x384xf32>
    %24 = arith.truncf %23 : vector<8x384xf32> to vector<8x384xbf16>
    %c0_16 = arith.constant 0 : index
    %c0_17 = arith.constant 0 : index
    %25 = vector.load %arg5[%c0_16, %c0_17] : memref<384x128xbf16, #tpu.memory_space<vmem>>, vector<384x128xbf16>
    %cst_18 = arith.constant dense<0.000000e+00> : vector<8x128xf32>
    %26 = tpu.matmul %24, %25, %cst_18 {dimension_numbers = #tpu.dot_dimension_numbers<[1], [0], [0], [1], [0, 0, 1, 1], [], []>} : vector<8x384xbf16>, vector<384x128xbf16>, vector<8x128xf32> -> vector<8x128xf32>
    %c0_19 = arith.constant 0 : index
    %c1664 = arith.constant 1664 : index
    %27 = vector.load %arg7[%c0_19, %c1664] : memref<1x1920xf32, #tpu.memory_space<vmem>>, vector<1x128xf32>
    %28 = vector.broadcast %27 : vector<1x128xf32> to vector<8x128xf32>
    %29 = arith.addf %26, %28 : vector<8x128xf32>
    %cst_20 = arith.constant 0.000000e+00 : f32
    %30 = vector.broadcast %cst_20 : f32 to vector<8x128xf32>
    %31 = arith.maximumf %29, %30 : vector<8x128xf32>
    %32 = arith.truncf %31 : vector<8x128xf32> to vector<8x128xbf16>
    %c0_21 = arith.constant 0 : index
    %c0_22 = arith.constant 0 : index
    %33 = vector.load %arg6[%c0_21, %c0_22] : memref<128x128xbf16, #tpu.memory_space<vmem>>, vector<128x128xbf16>
    %cst_23 = arith.constant dense<0.000000e+00> : vector<8x128xf32>
    %34 = tpu.matmul %32, %33, %cst_23 {dimension_numbers = #tpu.dot_dimension_numbers<[1], [0], [0], [1], [0, 0, 1, 1], [], []>} : vector<8x128xbf16>, vector<128x128xbf16>, vector<8x128xf32> -> vector<8x128xf32>
    %c0_24 = arith.constant 0 : index
    %c1792 = arith.constant 1792 : index
    %35 = vector.load %arg7[%c0_24, %c1792] : memref<1x1920xf32, #tpu.memory_space<vmem>>, vector<1x128xf32>
    %36 = vector.broadcast %35 : vector<1x128xf32> to vector<8x128xf32>
    %37 = arith.addf %34, %36 : vector<8x128xf32>
    %38 = arith.negf %37 : vector<8x128xf32>
    %39 = math.exp %38 : vector<8x128xf32>
    %cst_25 = arith.constant 1.000000e+00 : f32
    %40 = vector.broadcast %cst_25 : f32 to vector<8x128xf32>
    %41 = arith.addf %40, %39 : vector<8x128xf32>
    %42 = arith.divf %40, %41 : vector<8x128xf32>
    %c0_26 = arith.constant 0 : index
    %c0_27 = arith.constant 0 : index
    %43 = vector.load %arg8[%c0_26, %c0_27] : memref<8x128xf32, #tpu.memory_space<vmem>>, vector<8x128xf32>
    tpu.vector_store %arg8[%c0_26, %c0_27], %42 {strides = array<i32>} : memref<8x128xf32, #tpu.memory_space<vmem>>, vector<8x128xf32>,
    return
  }
  func.func @transform_0(%arg0: i32) -> (i32, i32) {
    %c0_i32 = arith.constant 0 : i32
    %c0_i32_0 = arith.constant 0 : i32
    return %arg0, %c0_i32 : i32, i32
  }
  func.func @transform_1(%arg0: i32) -> (i32, i32) {
    %c0_i32 = arith.constant 0 : i32
    %c0_i32_0 = arith.constant 0 : i32
    %c0_i32_1 = arith.constant 0 : i32
    return %c0_i32, %c0_i32_0 : i32, i32
  }
  func.func @transform_2(%arg0: i32) -> (i32, i32) {
    %c0_i32 = arith.constant 0 : i32
    %c0_i32_0 = arith.constant 0 : i32
    %c0_i32_1 = arith.constant 0 : i32
    return %c0_i32, %c0_i32_0 : i32, i32
  }
  func.func @transform_3(%arg0: i32) -> (i32, i32) {
    %c0_i32 = arith.constant 0 : i32
    %c0_i32_0 = arith.constant 0 : i32
    %c0_i32_1 = arith.constant 0 : i32
    return %c0_i32, %c0_i32_0 : i32, i32
  }
  func.func @transform_4(%arg0: i32) -> (i32, i32) {
    %c0_i32 = arith.constant 0 : i32
    %c0_i32_0 = arith.constant 0 : i32
    %c0_i32_1 = arith.constant 0 : i32
    return %c0_i32, %c0_i32_0 : i32, i32
  }
  func.func @transform_5(%arg0: i32) -> (i32, i32) {
    %c0_i32 = arith.constant 0 : i32
    %c0_i32_0 = arith.constant 0 : i32
    %c0_i32_1 = arith.constant 0 : i32
    return %c0_i32, %c0_i32_0 : i32, i32
  }
  func.func @transform_6(%arg0: i32) -> (i32, i32) {
    %c0_i32 = arith.constant 0 : i32
    %c0_i32_0 = arith.constant 0 : i32
    %c0_i32_1 = arith.constant 0 : i32
    return %c0_i32, %c0_i32_0 : i32, i32
  }
  func.func @transform_7(%arg0: i32) -> (i32, i32) {
    %c0_i32 = arith.constant 0 : i32
    %c0_i32_0 = arith.constant 0 : i32
    return %arg0, %c0_i32 : i32, i32
  }
}

</mosaic_0001>

<llo_original>
// kernel: tpu_custom_call.1
$region0: #{tpu_custom_call.1}
  #allocation0 [shape = 'u32[]', space=smem, size = 0x4, offset = 0x4, fixed_abs, tag = 'smem constant byte address 0x4 - core index']
  #allocation1 [shape = 'u32[144,128]{1,0:T(1,128)}', space=vmem, size = 0x12000, scoped, tag = 'internal scratch']
  %s0 = inlined_call_operand.hbm [shape: bf16[8,1024], index: 0, kind: input, shape index: {}]
  %s1 = inlined_call_operand.hbm [shape: bf16[1024,768], index: 1, kind: input, shape index: {}]
  %s2 = inlined_call_operand.hbm [shape: bf16[768,512], index: 2, kind: input, shape index: {}]
  %s3 = inlined_call_operand.hbm [shape: bf16[512,384], index: 3, kind: input, shape index: {}]
  %s4 = inlined_call_operand.hbm [shape: bf16[384,128], index: 4, kind: input, shape index: {}]
  %s5 = inlined_call_operand.hbm [shape: bf16[128,128], index: 5, kind: input, shape index: {}]
  %s6 = inlined_call_operand.hbm [shape: f32[1,1920], index: 6, kind: input, shape index: {}]
  %s7 = inlined_call_operand.hbm [shape: f32[8,128], index: 7, kind: output, shape index: {}]
  %s8 = sld [smem:[#allocation0]]
  $region66: #{tpu_custom_call.1} parent=0
    _
  %s10 = ssub.s32 1, %s8
  %s11 = scalar_select 0, %s10, %s8
  $region1: #{tpu_custom_call.1} parent=0
    #allocation2 [shape = 'u8[16384]{0}', space=vmem, size = 0x4000, scoped, tag = 'input window, operand 0, single buffered']
    #allocation3 [shape = 's32[1]{0}', space=sflag, size = 0x4, scoped, tag = 'scoped memory for tpu_custom_call.1']
    #allocation4 [shape = 's32[1]{0}', space=sflag, size = 0x4, scoped, tag = 'scoped memory for tpu_custom_call.1']
    #allocation5 [shape = 'u8[1572864]{0}', space=vmem, size = 0x180000, scoped, tag = 'input window, operand 1, single buffered']
    #allocation6 [shape = 's32[1]{0}', space=sflag, size = 0x4, scoped, tag = 'scoped memory for tpu_custom_call.1']
    #allocation7 [shape = 'u8[786432]{0}', space=vmem, size = 0xc0000, scoped, tag = 'input window, operand 2, single buffered']
    #allocation8 [shape = 'u8[393216]{0}', space=vmem, size = 0x60000, scoped, tag = 'input window, operand 3, single buffered']
    #allocation9 [shape = 's32[1]{0}', space=sflag, size = 0x4, scoped, tag = 'scoped memory for tpu_custom_call.1']
    #allocation10 [shape = 'u8[98304]{0}', space=vmem, size = 0x18000, scoped, tag = 'input window, operand 4, single buffered']
    #allocation11 [shape = 'u8[32768]{0}', space=vmem, size = 0x8000, scoped, tag = 'input window, operand 5, single buffered']
    #allocation12 [shape = 's32[1]{0}', space=sflag, size = 0x4, scoped, tag = 'scoped memory for tpu_custom_call.1']
    #allocation13 [shape = 'u8[7680]{0}', space=vmem, size = 0x2000, scoped, tag = 'input window, operand 6, single buffered']
    #allocation14 [shape = 'u8[4096]{0}', space=vmem, size = 0x1000, scoped, tag = 'output window, operand 0, single buffered']
    %12 = vsyncpa [#allocation3], 0
    %13 = vsyncpa [#allocation6], 0
    %14 = vsyncpa [#allocation9], 0
    %15 = vsyncpa [#allocation12], 0
    %16 = vsyncpa [#allocation4], 0
    // Predicated region
    $region2: #{tpu_custom_call.1} parent=1 // pred_check
      _
    $region3: #{tpu_custom_call.1} parent=1 // pred_check_branch
      %18 = sbr.rel (0) target = $region5
    $region4: #{tpu_custom_call.1} parent=1 // pred_region
      %s20 = ssub.s32 512, 512
      %21 = vsyncadd [#allocation3], %s20
      %s23 = sshll.u32 [#allocation2], 4
      %s24 = int_to_ptr.vmem [resolvable:$true] %s23
      %26 = dma.hbm_to_vmem [thread:$0]  %s0, 512, %s24, [#allocation3]
    $region5: #{tpu_custom_call.1} parent=1 // pred_fallthru
      _
    // Predicated region
    $region6: #{tpu_custom_call.1} parent=1 // pred_check
      _
    $region7: #{tpu_custom_call.1} parent=1 // pred_check_branch
      %28 = sbr.rel (0) target = $region9
    $region8: #{tpu_custom_call.1} parent=1 // pred_region
      %s30 = ssub.s32 49152, 49152
      %31 = vsyncadd [#allocation6], %s30
      %s32 = sshll.u32 [#allocation5], 4
      %s33 = int_to_ptr.vmem [resolvable:$true] %s32
      %38 = dma.hbm_to_vmem [thread:$0]  %s1, 49152, %s33, [#allocation6], 384, 384, 24
    $region9: #{tpu_custom_call.1} parent=1 // pred_fallthru
      _
    // Predicated region
    $region10: #{tpu_custom_call.1} parent=1 // pred_check
      _
    $region11: #{tpu_custom_call.1} parent=1 // pred_check_branch
      %40 = sbr.rel (0) target = $region13
    $region12: #{tpu_custom_call.1} parent=1 // pred_region
      %s42 = ssub.s32 24576, 24576
      %43 = vsyncadd [#allocation6], %s42
      %s44 = sshll.u32 [#allocation7], 4
      %s45 = int_to_ptr.vmem [resolvable:$true] %s44
      %50 = dma.hbm_to_vmem [thread:$0]  %s2, 24576, %s45, [#allocation6], 256, 256, 16
    $region13: #{tpu_custom_call.1} parent=1 // pred_fallthru
      _
    // Predicated region
    $region14: #{tpu_custom_call.1} parent=1 // pred_check
      _
    $region15: #{tpu_custom_call.1} parent=1 // pred_check_branch
      %52 = sbr.rel (0) target = $region17
    $region16: #{tpu_custom_call.1} parent=1 // pred_region
      %s54 = ssub.s32 12288, 12288
      %55 = vsyncadd [#allocation9], %s54
      %s56 = sshll.u32 [#allocation8], 4
      %s57 = int_to_ptr.vmem [resolvable:$true] %s56
      %62 = dma.hbm_to_vmem [thread:$0]  %s3, 12288, %s57, [#allocation9], 192, 192, 12
    $region17: #{tpu_custom_call.1} parent=1 // pred_fallthru
      _
    // Predicated region
    $region18: #{tpu_custom_call.1} parent=1 // pred_check
      _
    $region19: #{tpu_custom_call.1} parent=1 // pred_check_branch
      %64 = sbr.rel (0) target = $region21
    $region20: #{tpu_custom_call.1} parent=1 // pred_region
      %s66 = ssub.s32 3072, 3072
      %67 = vsyncadd [#allocation9], %s66
      %s68 = sshll.u32 [#allocation10], 4
      %s69 = int_to_ptr.vmem [resolvable:$true] %s68
      %74 = dma.hbm_to_vmem [thread:$0]  %s4, 3072, %s69, [#allocation9], 64, 64, 4
    $region21: #{tpu_custom_call.1} parent=1 // pred_fallthru
      _
    // Predicated region
    $region22: #{tpu_custom_call.1} parent=1 // pred_check
      _
    $region23: #{tpu_custom_call.1} parent=1 // pred_check_branch
      %76 = sbr.rel (0) target = $region25
    $region24: #{tpu_custom_call.1} parent=1 // pred_region
      %s78 = ssub.s32 1024, 1024
      %79 = vsyncadd [#allocation12], %s78
      %s80 = sshll.u32 [#allocation11], 4
      %s81 = int_to_ptr.vmem [resolvable:$true] %s80
      %86 = dma.hbm_to_vmem [thread:$0]  %s5, 1024, %s81, [#allocation12], 64, 64, 4
    $region25: #{tpu_custom_call.1} parent=1 // pred_fallthru
      _
    // Predicated region
    $region26: #{tpu_custom_call.1} parent=1 // pred_check
      _
    $region27: #{tpu_custom_call.1} parent=1 // pred_check_branch
      %88 = sbr.rel (0) target = $region29
    $region28: #{tpu_custom_call.1} parent=1 // pred_region
      %s90 = ssub.s32 240, 240
      %91 = vsyncadd [#allocation12], %s90
      %s93 = sshll.u32 [#allocation13], 4
      %s94 = int_to_ptr.vmem [resolvable:$true] %s93
      %96 = dma.hbm_to_vmem [thread:$0]  %s6, 240, %s94, [#allocation12]
    $region29: #{tpu_custom_call.1} parent=1 // pred_fallthru
      _
    // Predicated region
    $region30: #{tpu_custom_call.1} parent=1 // pred_check
      _
    $region31: #{tpu_custom_call.1} parent=1 // pred_check_branch
      %98 = sbr.rel (0) target = $region33
    $region32: #{tpu_custom_call.1} parent=1 // pred_region
      %99 = dma.done [#allocation3], 512
    $region33: #{tpu_custom_call.1} parent=1 // pred_fallthru
      _
    // Predicated region
    $region34: #{tpu_custom_call.1} parent=1 // pred_check
      _
    $region35: #{tpu_custom_call.1} parent=1 // pred_check_branch
      %101 = sbr.rel (0) target = $region37
    $region36: #{tpu_custom_call.1} parent=1 // pred_region
      %102 = dma.done [#allocation6], 49152
    $region37: #{tpu_custom_call.1} parent=1 // pred_fallthru
      _
    // Predicated region
    $region38: #{tpu_custom_call.1} parent=1 // pred_check
      _
    $region39: #{tpu_custom_call.1} parent=1 // pred_check_branch
      %104 = sbr.rel (0) target = $region41
    $region40: #{tpu_custom_call.1} parent=1 // pred_region
      %105 = dma.done [#allocation6], 24576
    $region41: #{tpu_custom_call.1} parent=1 // pred_fallthru
      _
    // Predicated region
    $region42: #{tpu_custom_call.1} parent=1 // pred_check
      _
    $region43: #{tpu_custom_call.1} parent=1 // pred_check_branch
      %107 = sbr.rel (0) target = $region45
    $region44: #{tpu_custom_call.1} parent=1 // pred_region
      %108 = dma.done [#allocation9], 12288
    $region45: #{tpu_custom_call.1} parent=1 // pred_fallthru
      _
    // Predicated region
    $region46: #{tpu_custom_call.1} parent=1 // pred_check
      _
    $region47: #{tpu_custom_call.1} parent=1 // pred_check_branch
      %110 = sbr.rel (0) target = $region49
    $region48: #{tpu_custom_call.1} parent=1 // pred_region
      %111 = dma.done [#allocation9], 3072
    $region49: #{tpu_custom_call.1} parent=1 // pred_fallthru
      _
    // Predicated region
    $region50: #{tpu_custom_call.1} parent=1 // pred_check
      _
    $region51: #{tpu_custom_call.1} parent=1 // pred_check_branch
      %113 = sbr.rel (0) target = $region53
    $region52: #{tpu_custom_call.1} parent=1 // pred_region
      %114 = dma.done [#allocation12], 1024
    $region53: #{tpu_custom_call.1} parent=1 // pred_fallthru
      _
    // Predicated region
    $region54: #{tpu_custom_call.1} parent=1 // pred_check
      _
    $region55: #{tpu_custom_call.1} parent=1 // pred_check_branch
      %116 = sbr.rel (0) target = $region57
    $region56: #{tpu_custom_call.1} parent=1 // pred_region
      %117 = dma.done [#allocation12], 240
    $region57: #{tpu_custom_call.1} parent=1 // pred_fallthru
      _
    %v119 = vld [vmem:[#allocation2] sm:$0xff]
    %v120 = vld [vmem:[#allocation2 + $0x8] sm:$0xff]
    %v121 = vld [vmem:[#allocation2 + $0x10] sm:$0xff]
    %v122 = vld [vmem:[#allocation2 + $0x18] sm:$0xff]
    %v123 = vld [vmem:[#allocation5] sm:$0xff]
    %v124 = vld [vmem:[#allocation5 + $0x8] sm:$0xff]
    %v125 = vld [vmem:[#allocation5 + $0x10] sm:$0xff]
    %v126 = vld [vmem:[#allocation5 + $0x18] sm:$0xff]
    %v127 = vld [vmem:[#allocation5 + $0x20] sm:$0xff]
    %v128 = vld [vmem:[#allocation5 + $0x28] sm:$0xff]
    %v129 = vld [vmem:[#allocation5 + $0x30] sm:$0xff]
    %v130 = vld [vmem:[#allocation5 + $0x38] sm:$0xff]
    %v131 = vld [vmem:[#allocation5 + $0x40] sm:$0xff]
    %v132 = vld [vmem:[#allocation5 + $0x48] sm:$0xff]
    %v133 = vld [vmem:[#allocation5 + $0x50] sm:$0xff]
    %v134 = vld [vmem:[#allocation5 + $0x58] sm:$0xff]
    %v135 = vld [vmem:[#allocation5 + $0x60] sm:$0xff]
    %v136 = vld [vmem:[#allocation5 + $0x68] sm:$0xff]
    %v137 = vld [vmem:[#allocation5 + $0x70] sm:$0xff]
    %v138 = vld [vmem:[#allocation5 + $0x78] sm:$0xff]
    %v139 = vld [vmem:[#allocation5 + $0x80] sm:$0xff]
    %v140 = vld [vmem:[#allocation5 + $0x88] sm:$0xff]
    %v141 = vld [vmem:[#allocation5 + $0x90] sm:$0xff]
    %v142 = vld [vmem:[#allocation5 + $0x98] sm:$0xff]
    %v143 = vld [vmem:[#allocation5 + $0xa0] sm:$0xff]
    %v144 = vld [vmem:[#allocation5 + $0xa8] sm:$0xff]
    %v145 = vld [vmem:[#allocation5 + $0xb0] sm:$0xff]
    %v146 = vld [vmem:[#allocation5 + $0xb8] sm:$0xff]
    %v147 = vld [vmem:[#allocation5 + $0xc0] sm:$0xff]
    %v148 = vld [vmem:[#allocation5 + $0xc8] sm:$0xff]
    %v149 = vld [vmem:[#allocation5 + $0xd0] sm:$0xff]
    %v150 = vld [vmem:[#allocation5 + $0xd8] sm:$0xff]
    %v151 = vld [vmem:[#allocation5 + $0xe0] sm:$0xff]
    %v152 = vld [vmem:[#allocation5 + $0xe8] sm:$0xff]
    %v153 = vld [vmem:[#allocation5 + $0xf0] sm:$0xff]
    %v154 = vld [vmem:[#allocation5 + $0xf8] sm:$0xff]
    %v155 = vld [vmem:[#allocation5 + $0x100] sm:$0xff]
    %v156 = vld [vmem:[#allocation5 + $0x108] sm:$0xff]
    %v157 = vld [vmem:[#allocation5 + $0x110] sm:$0xff]
    %v158 = vld [vmem:[#allocation5 + $0x118] sm:$0xff]
    %v159 = vld [vmem:[#allocation5 + $0x120] sm:$0xff]
    %v160 = vld [vmem:[#allocation5 + $0x128] sm:$0xff]
    %v161 = vld [vmem:[#allocation5 + $0x130] sm:$0xff]
    %v162 = vld [vmem:[#allocation5 + $0x138] sm:$0xff]
    %v163 = vld [vmem:[#allocation5 + $0x140] sm:$0xff]
    %v164 = vld [vmem:[#allocation5 + $0x148] sm:$0xff]
    %v165 = vld [vmem:[#allocation5 + $0x150] sm:$0xff]
    %v166 = vld [vmem:[#allocation5 + $0x158] sm:$0xff]
    %v167 = vld [vmem:[#allocation5 + $0x160] sm:$0xff]
    %v168 = vld [vmem:[#allocation5 + $0x168] sm:$0xff]
    %v169 = vld [vmem:[#allocation5 + $0x170] sm:$0xff]
    %v170 = vld [vmem:[#allocation5 + $0x178] sm:$0xff]
    %v171 = vld [vmem:[#allocation5 + $0x180] sm:$0xff]
    %v172 = vld [vmem:[#allocation5 + $0x188] sm:$0xff]
    %v173 = vld [vmem:[#allocation5 + $0x190] sm:$0xff]
    %v174 = vld [vmem:[#allocation5 + $0x198] sm:$0xff]
    %v175 = vld [vmem:[#allocation5 + $0x1a0] sm:$0xff]
    %v176 = vld [vmem:[#allocation5 + $0x1a8] sm:$0xff]
    %v177 = vld [vmem:[#allocation5 + $0x1b0] sm:$0xff]
    %v178 = vld [vmem:[#allocation5 + $0x1b8] sm:$0xff]
    %v179 = vld [vmem:[#allocation5 + $0x1c0] sm:$0xff]
    %v180 = vld [vmem:[#allocation5 + $0x1c8] sm:$0xff]
    %v181 = vld [vmem:[#allocation5 + $0x1d0] sm:$0xff]
    %v182 = vld [vmem:[#allocation5 + $0x1d8] sm:$0xff]
    %v183 = vld [vmem:[#allocation5 + $0x1e0] sm:$0xff]
    %v184 = vld [vmem:[#allocation5 + $0x1e8] sm:$0xff]
    %v185 = vld [vmem:[#allocation5 + $0x1f0] sm:$0xff]
    %v186 = vld [vmem:[#allocation5 + $0x1f8] sm:$0xff]
    %v187 = vld [vmem:[#allocation5 + $0x200] sm:$0xff]
    %v188 = vld [vmem:[#allocation5 + $0x208] sm:$0xff]
    %v189 = vld [vmem:[#allocation5 + $0x210] sm:$0xff]
    %v190 = vld [vmem:[#allocation5 + $0x218] sm:$0xff]
    %v191 = vld [vmem:[#allocation5 + $0x220] sm:$0xff]
    %v192 = vld [vmem:[#allocation5 + $0x228] sm:$0xff]
    %v193 = vld [vmem:[#allocation5 + $0x230] sm:$0xff]
    %v194 = vld [vmem:[#allocation5 + $0x238] sm:$0xff]
    %v195 = vld [vmem:[#allocation5 + $0x240] sm:$0xff]
    %v196 = vld [vmem:[#allocation5 + $0x248] sm:$0xff]
    %v197 = vld [vmem:[#allocation5 + $0x250] sm:$0xff]
    %v198 = vld [vmem:[#allocation5 + $0x258] sm:$0xff]
    %v199 = vld [vmem:[#allocation5 + $0x260] sm:$0xff]
    %v200 = vld [vmem:[#allocation5 + $0x268] sm:$0xff]
    %v201 = vld [vmem:[#allocation5 + $0x270] sm:$0xff]
    %v202 = vld [vmem:[#allocation5 + $0x278] sm:$0xff]
    %v203 = vld [vmem:[#allocation5 + $0x280] sm:$0xff]
    %v204 = vld [vmem:[#allocation5 + $0x288] sm:$0xff]
    %v205 = vld [vmem:[#allocation5 + $0x290] sm:$0xff]
    %v206 = vld [vmem:[#allocation5 + $0x298] sm:$0xff]
    %v207 = vld [vmem:[#allocation5 + $0x2a0] sm:$0xff]
    %v208 = vld [vmem:[#allocation5 + $0x2a8] sm:$0xff]
    %v209 = vld [vmem:[#allocation5 + $0x2b0] sm:$0xff]
    %v210 = vld [vmem:[#allocation5 + $0x2b8] sm:$0xff]
    %v211 = vld [vmem:[#allocation5 + $0x2c0] sm:$0xff]
    %v212 = vld [vmem:[#allocation5 + $0x2c8] sm:$0xff]
    %v213 = vld [vmem:[#allocation5 + $0x2d0] sm:$0xff]
    %v214 = vld [vmem:[#allocation5 + $0x2d8] sm:$0xff]
    %v215 = vld [vmem:[#allocation5 + $0x2e0] sm:$0xff]
    %v216 = vld [vmem:[#allocation5 + $0x2e8] sm:$0xff]
    %v217 = vld [vmem:[#allocation5 + $0x2f0] sm:$0xff]
    %v218 = vld [vmem:[#allocation5 + $0x2f8] sm:$0xff]
    %v219 = vld [vmem:[#allocation5 + $0x300] sm:$0xff]
    %v220 = vld [vmem:[#allocation5 + $0x308] sm:$0xff]
    %v221 = vld [vmem:[#allocation5 + $0x310] sm:$0xff]
    %v222 = vld [vmem:[#allocation5 + $0x318] sm:$0xff]
    %v223 = vld [vmem:[#allocation5 + $0x320] sm:$0xff]
    %v224 = vld [vmem:[#allocation5 + $0x328] sm:$0xff]
    %v225 = vld [vmem:[#allocation5 + $0x330] sm:$0xff]
    %v226 = vld [vmem:[#allocation5 + $0x338] sm:$0xff]
    %v227 = vld [vmem:[#allocation5 + $0x340] sm:$0xff]
    %v228 = vld [vmem:[#allocation5 + $0x348] sm:$0xff]
    %v229 = vld [vmem:[#allocation5 + $0x350] sm:$0xff]
    %v230 = vld [vmem:[#allocation5 + $0x358] sm:$0xff]
    %v231 = vld [vmem:[#allocation5 + $0x360] sm:$0xff]
    %v232 = vld [vmem:[#allocation5 + $0x368] sm:$0xff]
    %v233 = vld [vmem:[#allocation5 + $0x370] sm:$0xff]
    %v234 = vld [vmem:[#allocation5 + $0x378] sm:$0xff]
    %v235 = vld [vmem:[#allocation5 + $0x380] sm:$0xff]
    %v236 = vld [vmem:[#allocation5 + $0x388] sm:$0xff]
    %v237 = vld [vmem:[#allocation5 + $0x390] sm:$0xff]
    %v238 = vld [vmem:[#allocation5 + $0x398] sm:$0xff]
    %v239 = vld [vmem:[#allocation5 + $0x3a0] sm:$0xff]
    %v240 = vld [vmem:[#allocation5 + $0x3a8] sm:$0xff]
    %v241 = vld [vmem:[#allocation5 + $0x3b0] sm:$0xff]
    %v242 = vld [vmem:[#allocation5 + $0x3b8] sm:$0xff]
    %v243 = vld [vmem:[#allocation5 + $0x3c0] sm:$0xff]
    %v244 = vld [vmem:[#allocation5 + $0x3c8] sm:$0xff]
    %v245 = vld [vmem:[#allocation5 + $0x3d0] sm:$0xff]
    %v246 = vld [vmem:[#allocation5 + $0x3d8] sm:$0xff]
    %v247 = vld [vmem:[#allocation5 + $0x3e0] sm:$0xff]
    %v248 = vld [vmem:[#allocation5 + $0x3e8] sm:$0xff]
    %v249 = vld [vmem:[#allocation5 + $0x3f0] sm:$0xff]
    %v250 = vld [vmem:[#allocation5 + $0x3f8] sm:$0xff]
    %v251 = vld [vmem:[#allocation5 + $0x400] sm:$0xff]
    %v252 = vld [vmem:[#allocation5 + $0x408] sm:$0xff]
    %v253 = vld [vmem:[#allocation5 + $0x410] sm:$0xff]
    %v254 = vld [vmem:[#allocation5 + $0x418] sm:$0xff]
    %v255 = vld [vmem:[#allocation5 + $0x420] sm:$0xff]
    %v256 = vld [vmem:[#allocation5 + $0x428] sm:$0xff]
    %v257 = vld [vmem:[#allocation5 + $0x430] sm:$0xff]
    %v258 = vld [vmem:[#allocation5 + $0x438] sm:$0xff]
    %v259 = vld [vmem:[#allocation5 + $0x440] sm:$0xff]
    %v260 = vld [vmem:[#allocation5 + $0x448] sm:$0xff]
    %v261 = vld [vmem:[#allocation5 + $0x450] sm:$0xff]
    %v262 = vld [vmem:[#allocation5 + $0x458] sm:$0xff]
    %v263 = vld [vmem:[#allocation5 + $0x460] sm:$0xff]
    %v264 = vld [vmem:[#allocation5 + $0x468] sm:$0xff]
    %v265 = vld [vmem:[#allocation5 + $0x470] sm:$0xff]
    %v266 = vld [vmem:[#allocation5 + $0x478] sm:$0xff]
    %v267 = vld [vmem:[#allocation5 + $0x480] sm:$0xff]
    %v268 = vld [vmem:[#allocation5 + $0x488] sm:$0xff]
    %v269 = vld [vmem:[#allocation5 + $0x490] sm:$0xff]
    %v270 = vld [vmem:[#allocation5 + $0x498] sm:$0xff]
    %v271 = vld [vmem:[#allocation5 + $0x4a0] sm:$0xff]
    %v272 = vld [vmem:[#allocation5 + $0x4a8] sm:$0xff]
    %v273 = vld [vmem:[#allocation5 + $0x4b0] sm:$0xff]
    %v274 = vld [vmem:[#allocation5 + $0x4b8] sm:$0xff]
    %v275 = vld [vmem:[#allocation5 + $0x4c0] sm:$0xff]
    %v276 = vld [vmem:[#allocation5 + $0x4c8] sm:$0xff]
    %v277 = vld [vmem:[#allocation5 + $0x4d0] sm:$0xff]
    %v278 = vld [vmem:[#allocation5 + $0x4d8] sm:$0xff]
    %v279 = vld [vmem:[#allocation5 + $0x4e0] sm:$0xff]
    %v280 = vld [vmem:[#allocation5 + $0x4e8] sm:$0xff]
    %v281 = vld [vmem:[#allocation5 + $0x4f0] sm:$0xff]
    %v282 = vld [vmem:[#allocation5 + $0x4f8] sm:$0xff]
    %v283 = vld [vmem:[#allocation5 + $0x500] sm:$0xff]
    %v284 = vld [vmem:[#allocation5 + $0x508] sm:$0xff]
    %v285 = vld [vmem:[#allocation5 + $0x510] sm:$0xff]
    %v286 = vld [vmem:[#allocation5 + $0x518] sm:$0xff]
    %v287 = vld [vmem:[#allocation5 + $0x520] sm:$0xff]
    %v288 = vld [vmem:[#allocation5 + $0x528] sm:$0xff]
    %v289 = vld [vmem:[#allocation5 + $0x530] sm:$0xff]
    %v290 = vld [vmem:[#allocation5 + $0x538] sm:$0xff]
    %v291 = vld [vmem:[#allocation5 + $0x540] sm:$0xff]
    %v292 = vld [vmem:[#allocation5 + $0x548] sm:$0xff]
    %v293 = vld [vmem:[#allocation5 + $0x550] sm:$0xff]
    %v294 = vld [vmem:[#allocation5 + $0x558] sm:$0xff]
    %v295 = vld [vmem:[#allocation5 + $0x560] sm:$0xff]
    %v296 = vld [vmem:[#allocation5 + $0x568] sm:$0xff]
    %v297 = vld [vmem:[#allocation5 + $0x570] sm:$0xff]
    %v298 = vld [vmem:[#allocation5 + $0x578] sm:$0xff]
    %v299 = vld [vmem:[#allocation5 + $0x580] sm:$0xff]
    %v300 = vld [vmem:[#allocation5 + $0x588] sm:$0xff]
    %v301 = vld [vmem:[#allocation5 + $0x590] sm:$0xff]
    %v302 = vld [vmem:[#allocation5 + $0x598] sm:$0xff]
    %v303 = vld [vmem:[#allocation5 + $0x5a0] sm:$0xff]
    %v304 = vld [vmem:[#allocation5 + $0x5a8] sm:$0xff]
    %v305 = vld [vmem:[#allocation5 + $0x5b0] sm:$0xff]
    %v306 = vld [vmem:[#allocation5 + $0x5b8] sm:$0xff]
    %v307 = vld [vmem:[#allocation5 + $0x5c0] sm:$0xff]
    %v308 = vld [vmem:[#allocation5 + $0x5c8] sm:$0xff]
    %v309 = vld [vmem:[#allocation5 + $0x5d0] sm:$0xff]
    %v310 = vld [vmem:[#allocation5 + $0x5d8] sm:$0xff]
    %v311 = vld [vmem:[#allocation5 + $0x5e0] sm:$0xff]
    %v312 = vld [vmem:[#allocation5 + $0x5e8] sm:$0xff]
    %v313 = vld [vmem:[#allocation5 + $0x5f0] sm:$0xff]
    %v314 = vld [vmem:[#allocation5 + $0x5f8] sm:$0xff]
    %v315 = vld [vmem:[#allocation5 + $0x600] sm:$0xff]
    %v316 = vld [vmem:[#allocation5 + $0x608] sm:$0xff]
    %v317 = vld [vmem:[#allocation5 + $0x610] sm:$0xff]
    %v318 = vld [vmem:[#allocation5 + $0x618] sm:$0xff]
    %v319 = vld [vmem:[#allocation5 + $0x620] sm:$0xff]
    %v320 = vld [vmem:[#allocation5 + $0x628] sm:$0xff]
    %v321 = vld [vmem:[#allocation5 + $0x630] sm:$0xff]
    %v322 = vld [vmem:[#allocation5 + $0x638] sm:$0xff]
    %v323 = vld [vmem:[#allocation5 + $0x640] sm:$0xff]
    %v324 = vld [vmem:[#allocation5 + $0x648] sm:$0xff]
    %v325 = vld [vmem:[#allocation5 + $0x650] sm:$0xff]
    %v326 = vld [vmem:[#allocation5 + $0x658] sm:$0xff]
    %v327 = vld [vmem:[#allocation5 + $0x660] sm:$0xff]
    %v328 = vld [vmem:[#allocation5 + $0x668] sm:$0xff]
    %v329 = vld [vmem:[#allocation5 + $0x670] sm:$0xff]
    %v330 = vld [vmem:[#allocation5 + $0x678] sm:$0xff]
    %v331 = vld [vmem:[#allocation5 + $0x680] sm:$0xff]
    %v332 = vld [vmem:[#allocation5 + $0x688] sm:$0xff]
    %v333 = vld [vmem:[#allocation5 + $0x690] sm:$0xff]
    %v334 = vld [vmem:[#allocation5 + $0x698] sm:$0xff]
    %v335 = vld [vmem:[#allocation5 + $0x6a0] sm:$0xff]
    %v336 = vld [vmem:[#allocation5 + $0x6a8] sm:$0xff]
    %v337 = vld [vmem:[#allocation5 + $0x6b0] sm:$0xff]
    %v338 = vld [vmem:[#allocation5 + $0x6b8] sm:$0xff]
    %v339 = vld [vmem:[#allocation5 + $0x6c0] sm:$0xff]
    %v340 = vld [vmem:[#allocation5 + $0x6c8] sm:$0xff]
    %v341 = vld [vmem:[#allocation5 + $0x6d0] sm:$0xff]
    %v342 = vld [vmem:[#allocation5 + $0x6d8] sm:$0xff]
    %v343 = vld [vmem:[#allocation5 + $0x6e0] sm:$0xff]
    %v344 = vld [vmem:[#allocation5 + $0x6e8] sm:$0xff]
    %v345 = vld [vmem:[#allocation5 + $0x6f0] sm:$0xff]
    %v346 = vld [vmem:[#allocation5 + $0x6f8] sm:$0xff]
    %v347 = vld [vmem:[#allocation5 + $0x700] sm:$0xff]
    %v348 = vld [vmem:[#allocation5 + $0x708] sm:$0xff]
    %v349 = vld [vmem:[#allocation5 + $0x710] sm:$0xff]
    %v350 = vld [vmem:[#allocation5 + $0x718] sm:$0xff]
    %v351 = vld [vmem:[#allocation5 + $0x720] sm:$0xff]
    %v352 = vld [vmem:[#allocation5 + $0x728] sm:$0xff]
    %v353 = vld [vmem:[#allocation5 + $0x730] sm:$0xff]
    %v354 = vld [vmem:[#allocation5 + $0x738] sm:$0xff]
    %v355 = vld [vmem:[#allocation5 + $0x740] sm:$0xff]
    %v356 = vld [vmem:[#allocation5 + $0x748] sm:$0xff]
    %v357 = vld [vmem:[#allocation5 + $0x750] sm:$0xff]
    %v358 = vld [vmem:[#allocation5 + $0x758] sm:$0xff]
    %v359 = vld [vmem:[#allocation5 + $0x760] sm:$0xff]
    %v360 = vld [vmem:[#allocation5 + $0x768] sm:$0xff]
    %v361 = vld [vmem:[#allocation5 + $0x770] sm:$0xff]
    %v362 = vld [vmem:[#allocation5 + $0x778] sm:$0xff]
    %v363 = vld [vmem:[#allocation5 + $0x780] sm:$0xff]
    %v364 = vld [vmem:[#allocation5 + $0x788] sm:$0xff]
    %v365 = vld [vmem:[#allocation5 + $0x790] sm:$0xff]
    %v366 = vld [vmem:[#allocation5 + $0x798] sm:$0xff]
    %v367 = vld [vmem:[#allocation5 + $0x7a0] sm:$0xff]
    %v368 = vld [vmem:[#allocation5 + $0x7a8] sm:$0xff]
    %v369 = vld [vmem:[#allocation5 + $0x7b0] sm:$0xff]
    %v370 = vld [vmem:[#allocation5 + $0x7b8] sm:$0xff]
    %v371 = vld [vmem:[#allocation5 + $0x7c0] sm:$0xff]
    %v372 = vld [vmem:[#allocation5 + $0x7c8] sm:$0xff]
    %v373 = vld [vmem:[#allocation5 + $0x7d0] sm:$0xff]
    %v374 = vld [vmem:[#allocation5 + $0x7d8] sm:$0xff]
    %v375 = vld [vmem:[#allocation5 + $0x7e0] sm:$0xff]
    %v376 = vld [vmem:[#allocation5 + $0x7e8] sm:$0xff]
    %v377 = vld [vmem:[#allocation5 + $0x7f0] sm:$0xff]
    %v378 = vld [vmem:[#allocation5 + $0x7f8] sm:$0xff]
    %v379 = vld [vmem:[#allocation5 + $0x800] sm:$0xff]
    %v380 = vld [vmem:[#allocation5 + $0x808] sm:$0xff]
    %v381 = vld [vmem:[#allocation5 + $0x810] sm:$0xff]
    %v382 = vld [vmem:[#allocation5 + $0x818] sm:$0xff]
    %v383 = vld [vmem:[#allocation5 + $0x820] sm:$0xff]
    %v384 = vld [vmem:[#allocation5 + $0x828] sm:$0xff]
    %v385 = vld [vmem:[#allocation5 + $0x830] sm:$0xff]
    %v386 = vld [vmem:[#allocation5 + $0x838] sm:$0xff]
    %v387 = vld [vmem:[#allocation5 + $0x840] sm:$0xff]
    %v388 = vld [vmem:[#allocation5 + $0x848] sm:$0xff]
    %v389 = vld [vmem:[#allocation5 + $0x850] sm:$0xff]
    %v390 = vld [vmem:[#allocation5 + $0x858] sm:$0xff]
    %v391 = vld [vmem:[#allocation5 + $0x860] sm:$0xff]
    %v392 = vld [vmem:[#allocation5 + $0x868] sm:$0xff]
    %v393 = vld [vmem:[#allocation5 + $0x870] sm:$0xff]
    %v394 = vld [vmem:[#allocation5 + $0x878] sm:$0xff]
    %v395 = vld [vmem:[#allocation5 + $0x880] sm:$0xff]
    %v396 = vld [vmem:[#allocation5 + $0x888] sm:$0xff]
    %v397 = vld [vmem:[#allocation5 + $0x890] sm:$0xff]
    %v398 = vld [vmem:[#allocation5 + $0x898] sm:$0xff]
    %v399 = vld [vmem:[#allocation5 + $0x8a0] sm:$0xff]
    %v400 = vld [vmem:[#allocation5 + $0x8a8] sm:$0xff]
    %v401 = vld [vmem:[#allocation5 + $0x8b0] sm:$0xff]
    %v402 = vld [vmem:[#allocation5 + $0x8b8] sm:$0xff]
    %v403 = vld [vmem:[#allocation5 + $0x8c0] sm:$0xff]
    %v404 = vld [vmem:[#allocation5 + $0x8c8] sm:$0xff]
    %v405 = vld [vmem:[#allocation5 + $0x8d0] sm:$0xff]
    %v406 = vld [vmem:[#allocation5 + $0x8d8] sm:$0xff]
    %v407 = vld [vmem:[#allocation5 + $0x8e0] sm:$0xff]
    %v408 = vld [vmem:[#allocation5 + $0x8e8] sm:$0xff]
    %v409 = vld [vmem:[#allocation5 + $0x8f0] sm:$0xff]
    %v410 = vld [vmem:[#allocation5 + $0x8f8] sm:$0xff]
    %v411 = vld [vmem:[#allocation5 + $0x900] sm:$0xff]
    %v412 = vld [vmem:[#allocation5 + $0x908] sm:$0xff]
    %v413 = vld [vmem:[#allocation5 + $0x910] sm:$0xff]
    %v414 = vld [vmem:[#allocation5 + $0x918] sm:$0xff]
    %v415 = vld [vmem:[#allocation5 + $0x920] sm:$0xff]
    %v416 = vld [vmem:[#allocation5 + $0x928] sm:$0xff]
    %v417 = vld [vmem:[#allocation5 + $0x930] sm:$0xff]
    %v418 = vld [vmem:[#allocation5 + $0x938] sm:$0xff]
    %v419 = vld [vmem:[#allocation5 + $0x940] sm:$0xff]
    %v420 = vld [vmem:[#allocation5 + $0x948] sm:$0xff]
    %v421 = vld [vmem:[#allocation5 + $0x950] sm:$0xff]
    %v422 = vld [vmem:[#allocation5 + $0x958] sm:$0xff]
    %v423 = vld [vmem:[#allocation5 + $0x960] sm:$0xff]
    %v424 = vld [vmem:[#allocation5 + $0x968] sm:$0xff]
    %v425 = vld [vmem:[#allocation5 + $0x970] sm:$0xff]
    %v426 = vld [vmem:[#allocation5 + $0x978] sm:$0xff]
    %v427 = vld [vmem:[#allocation5 + $0x980] sm:$0xff]
    %v428 = vld [vmem:[#allocation5 + $0x988] sm:$0xff]
    %v429 = vld [vmem:[#allocation5 + $0x990] sm:$0xff]
    %v430 = vld [vmem:[#allocation5 + $0x998] sm:$0xff]
    %v431 = vld [vmem:[#allocation5 + $0x9a0] sm:$0xff]
    %v432 = vld [vmem:[#allocation5 + $0x9a8] sm:$0xff]
    %v433 = vld [vmem:[#allocation5 + $0x9b0] sm:$0xff]
    %v434 = vld [vmem:[#allocation5 + $0x9b8] sm:$0xff]
    %v435 = vld [vmem:[#allocation5 + $0x9c0] sm:$0xff]
    %v436 = vld [vmem:[#allocation5 + $0x9c8] sm:$0xff]
    %v437 = vld [vmem:[#allocation5 + $0x9d0] sm:$0xff]
    %v438 = vld [vmem:[#allocation5 + $0x9d8] sm:$0xff]
    %v439 = vld [vmem:[#allocation5 + $0x9e0] sm:$0xff]
    %v440 = vld [vmem:[#allocation5 + $0x9e8] sm:$0xff]
    %v441 = vld [vmem:[#allocation5 + $0x9f0] sm:$0xff]
    %v442 = vld [vmem:[#allocation5 + $0x9f8] sm:$0xff]
    %v443 = vld [vmem:[#allocation5 + $0xa00] sm:$0xff]
    %v444 = vld [vmem:[#allocation5 + $0xa08] sm:$0xff]
    %v445 = vld [vmem:[#allocation5 + $0xa10] sm:$0xff]
    %v446 = vld [vmem:[#allocation5 + $0xa18] sm:$0xff]
    %v447 = vld [vmem:[#allocation5 + $0xa20] sm:$0xff]
    %v448 = vld [vmem:[#allocation5 + $0xa28] sm:$0xff]
    %v449 = vld [vmem:[#allocation5 + $0xa30] sm:$0xff]
    %v450 = vld [vmem:[#allocation5 + $0xa38] sm:$0xff]
    %v451 = vld [vmem:[#allocation5 + $0xa40] sm:$0xff]
    %v452 = vld [vmem:[#allocation5 + $0xa48] sm:$0xff]
    %v453 = vld [vmem:[#allocation5 + $0xa50] sm:$0xff]
    %v454 = vld [vmem:[#allocation5 + $0xa58] sm:$0xff]
    %v455 = vld [vmem:[#allocation5 + $0xa60] sm:$0xff]
    %v456 = vld [vmem:[#allocation5 + $0xa68] sm:$0xff]
    %v457 = vld [vmem:[#allocation5 + $0xa70] sm:$0xff]
    %v458 = vld [vmem:[#allocation5 + $0xa78] sm:$0xff]
    %v459 = vld [vmem:[#allocation5 + $0xa80] sm:$0xff]
    %v460 = vld [vmem:[#allocation5 + $0xa88] sm:$0xff]
    %v461 = vld [vmem:[#allocation5 + $0xa90] sm:$0xff]
    %v462 = vld [vmem:[#allocation5 + $0xa98] sm:$0xff]
    %v463 = vld [vmem:[#allocation5 + $0xaa0] sm:$0xff]
    %v464 = vld [vmem:[#allocation5 + $0xaa8] sm:$0xff]
    %v465 = vld [vmem:[#allocation5 + $0xab0] sm:$0xff]
    %v466 = vld [vmem:[#allocation5 + $0xab8] sm:$0xff]
    %v467 = vld [vmem:[#allocation5 + $0xac0] sm:$0xff]
    %v468 = vld [vmem:[#allocation5 + $0xac8] sm:$0xff]
    %v469 = vld [vmem:[#allocation5 + $0xad0] sm:$0xff]
    %v470 = vld [vmem:[#allocation5 + $0xad8] sm:$0xff]
    %v471 = vld [vmem:[#allocation5 + $0xae0] sm:$0xff]
    %v472 = vld [vmem:[#allocation5 + $0xae8] sm:$0xff]
    %v473 = vld [vmem:[#allocation5 + $0xaf0] sm:$0xff]
    %v474 = vld [vmem:[#allocation5 + $0xaf8] sm:$0xff]
    %v475 = vld [vmem:[#allocation5 + $0xb00] sm:$0xff]
    %v476 = vld [vmem:[#allocation5 + $0xb08] sm:$0xff]
    %v477 = vld [vmem:[#allocation5 + $0xb10] sm:$0xff]
    %v478 = vld [vmem:[#allocation5 + $0xb18] sm:$0xff]
    %v479 = vld [vmem:[#allocation5 + $0xb20] sm:$0xff]
    %v480 = vld [vmem:[#allocation5 + $0xb28] sm:$0xff]
    %v481 = vld [vmem:[#allocation5 + $0xb30] sm:$0xff]
    %v482 = vld [vmem:[#allocation5 + $0xb38] sm:$0xff]
    %v483 = vld [vmem:[#allocation5 + $0xb40] sm:$0xff]
    %v484 = vld [vmem:[#allocation5 + $0xb48] sm:$0xff]
    %v485 = vld [vmem:[#allocation5 + $0xb50] sm:$0xff]
    %v486 = vld [vmem:[#allocation5 + $0xb58] sm:$0xff]
    %v487 = vld [vmem:[#allocation5 + $0xb60] sm:$0xff]
    %v488 = vld [vmem:[#allocation5 + $0xb68] sm:$0xff]
    %v489 = vld [vmem:[#allocation5 + $0xb70] sm:$0xff]
    %v490 = vld [vmem:[#allocation5 + $0xb78] sm:$0xff]
    %v491 = vld [vmem:[#allocation5 + $0xb80] sm:$0xff]
    %v492 = vld [vmem:[#allocation5 + $0xb88] sm:$0xff]
    %v493 = vld [vmem:[#allocation5 + $0xb90] sm:$0xff]
    %v494 = vld [vmem:[#allocation5 + $0xb98] sm:$0xff]
    %v495 = vld [vmem:[#allocation5 + $0xba0] sm:$0xff]
    %v496 = vld [vmem:[#allocation5 + $0xba8] sm:$0xff]
    %v497 = vld [vmem:[#allocation5 + $0xbb0] sm:$0xff]
    %v498 = vld [vmem:[#allocation5 + $0xbb8] sm:$0xff]
    %v499 = vld [vmem:[#allocation5 + $0xbc0] sm:$0xff]
    %v500 = vld [vmem:[#allocation5 + $0xbc8] sm:$0xff]
    %v501 = vld [vmem:[#allocation5 + $0xbd0] sm:$0xff]
    %v502 = vld [vmem:[#allocation5 + $0xbd8] sm:$0xff]
    %v503 = vld [vmem:[#allocation5 + $0xbe0] sm:$0xff]
    %v504 = vld [vmem:[#allocation5 + $0xbe8] sm:$0xff]
    %v505 = vld [vmem:[#allocation5 + $0xbf0] sm:$0xff]
    %v506 = vld [vmem:[#allocation5 + $0xbf8] sm:$0xff]
    %v507 = vld [vmem:[#allocation13] sm:$0x3f]
    %v509 = vlaneseq
    %v510 = vshrl.u32 %v509, 7
    %v511 = vsub.s32 0, %v510
    %v512 = vrot.slane %v507, %v511
    %v513 = vlaneseq
    %v514 = vshrl.u32 %v513, 7
    %v515 = vsub.s32 1, %v514
    %v516 = vrot.slane %v507, %v515
    %v517 = vlaneseq
    %v518 = vshrl.u32 %v517, 7
    %v519 = vsub.s32 2, %v518
    %v520 = vrot.slane %v507, %v519
    %v521 = vlaneseq
    %v522 = vshrl.u32 %v521, 7
    %v523 = vsub.s32 3, %v522
    %v524 = vrot.slane %v507, %v523
    %v525 = vlaneseq
    %v526 = vshrl.u32 %v525, 7
    %v527 = vsub.s32 4, %v526
    %v528 = vrot.slane %v507, %v527
    %v529 = vlaneseq
    %v530 = vshrl.u32 %v529, 7
    %v531 = vsub.s32 5, %v530
    %v532 = vrot.slane %v507, %v531
    %v543 = vunpack.c.l.b16 %v119
    %v544 = vunpack.c.h.b16 %v119
    %v545 = vunpack.c.l.b16 %v120
    %v546 = vunpack.c.h.b16 %v120
    %v547 = vunpack.c.l.b16 %v121
    %v548 = vunpack.c.h.b16 %v121
    %v549 = vunpack.c.l.b16 %v122
    %v550 = vunpack.c.h.b16 %v122
    %v551 = vpack.c.b16 %v543, %v543
    %v552 = vpack.c.b16 %v544, %v544
    %v553 = vpack.c.b16 %v545, %v545
    %v554 = vpack.c.b16 %v546, %v546
    %v555 = vpack.c.b16 %v547, %v547
    %v556 = vpack.c.b16 %v548, %v548
    %v557 = vpack.c.b16 %v549, %v549
    %v558 = vpack.c.b16 %v550, %v550
    %v951 = vunpack.c.l.b16 %v123
    %v952 = vunpack.c.h.b16 %v123
    %v953 = vunpack.c.l.b16 %v124
    %v954 = vunpack.c.h.b16 %v124
    %v955 = vunpack.c.l.b16 %v125
    %v956 = vunpack.c.h.b16 %v125
    %v957 = vunpack.c.l.b16 %v126
    %v958 = vunpack.c.h.b16 %v126
    %v959 = vunpack.c.l.b16 %v127
    %v960 = vunpack.c.h.b16 %v127
    %v961 = vunpack.c.l.b16 %v128
    %v962 = vunpack.c.h.b16 %v128
    %v963 = vunpack.c.l.b16 %v129
    %v964 = vunpack.c.h.b16 %v129
    %v965 = vunpack.c.l.b16 %v130
    %v966 = vunpack.c.h.b16 %v130
    %v967 = vunpack.c.l.b16 %v131
    %v968 = vunpack.c.h.b16 %v131
    %v969 = vunpack.c.l.b16 %v132
    %v970 = vunpack.c.h.b16 %v132
    %v971 = vunpack.c.l.b16 %v133
    %v972 = vunpack.c.h.b16 %v133
    %v973 = vunpack.c.l.b16 %v134
    %v974 = vunpack.c.h.b16 %v134
    %v975 = vunpack.c.l.b16 %v135
    %v976 = vunpack.c.h.b16 %v135
    %v977 = vunpack.c.l.b16 %v136
    %v978 = vunpack.c.h.b16 %v136
    %v979 = vunpack.c.l.b16 %v137
    %v980 = vunpack.c.h.b16 %v137
    %v981 = vunpack.c.l.b16 %v138
    %v982 = vunpack.c.h.b16 %v138
    %v983 = vunpack.c.l.b16 %v139
    %v984 = vunpack.c.h.b16 %v139
    %v985 = vunpack.c.l.b16 %v140
    %v986 = vunpack.c.h.b16 %v140
    %v987 = vunpack.c.l.b16 %v141
    %v988 = vunpack.c.h.b16 %v141
    %v989 = vunpack.c.l.b16 %v142
    %v990 = vunpack.c.h.b16 %v142
    %v991 = vunpack.c.l.b16 %v143
    %v992 = vunpack.c.h.b16 %v143
    %v993 = vunpack.c.l.b16 %v144
    %v994 = vunpack.c.h.b16 %v144
    %v995 = vunpack.c.l.b16 %v145
    %v996 = vunpack.c.h.b16 %v145
    %v997 = vunpack.c.l.b16 %v146
    %v998 = vunpack.c.h.b16 %v146
    %v999 = vunpack.c.l.b16 %v147
    %v1000 = vunpack.c.h.b16 %v147
    %v1001 = vunpack.c.l.b16 %v148
    %v1002 = vunpack.c.h.b16 %v148
    %v1003 = vunpack.c.l.b16 %v149
    %v1004 = vunpack.c.h.b16 %v149
    %v1005 = vunpack.c.l.b16 %v150
    %v1006 = vunpack.c.h.b16 %v150
    %v1007 = vunpack.c.l.b16 %v151
    %v1008 = vunpack.c.h.b16 %v151
    %v1009 = vunpack.c.l.b16 %v152
    %v1010 = vunpack.c.h.b16 %v152
    %v1011 = vunpack.c.l.b16 %v153
    %v1012 = vunpack.c.h.b16 %v153
    %v1013 = vunpack.c.l.b16 %v154
    %v1014 = vunpack.c.h.b16 %v154
    %v1015 = vunpack.c.l.b16 %v155
    %v1016 = vunpack.c.h.b16 %v155
    %v1017 = vunpack.c.l.b16 %v156
    %v1018 = vunpack.c.h.b16 %v156
    %v1019 = vunpack.c.l.b16 %v157
    %v1020 = vunpack.c.h.b16 %v157
    %v1021 = vunpack.c.l.b16 %v158
    %v1022 = vunpack.c.h.b16 %v158
    %v1023 = vunpack.c.l.b16 %v159
    %v1024 = vunpack.c.h.b16 %v159
    %v1025 = vunpack.c.l.b16 %v160
    %v1026 = vunpack.c.h.b16 %v160
    %v1027 = vunpack.c.l.b16 %v161
    %v1028 = vunpack.c.h.b16 %v161
    %v1029 = vunpack.c.l.b16 %v162
    %v1030 = vunpack.c.h.b16 %v162
    %v1031 = vunpack.c.l.b16 %v163
    %v1032 = vunpack.c.h.b16 %v163
    %v1033 = vunpack.c.l.b16 %v164
    %v1034 = vunpack.c.h.b16 %v164
    %v1035 = vunpack.c.l.b16 %v165
    %v1036 = vunpack.c.h.b16 %v165
    %v1037 = vunpack.c.l.b16 %v166
    %v1038 = vunpack.c.h.b16 %v166
    %v1039 = vunpack.c.l.b16 %v167
    %v1040 = vunpack.c.h.b16 %v167
    %v1041 = vunpack.c.l.b16 %v168
    %v1042 = vunpack.c.h.b16 %v168
    %v1043 = vunpack.c.l.b16 %v169
    %v1044 = vunpack.c.h.b16 %v169
    %v1045 = vunpack.c.l.b16 %v170
    %v1046 = vunpack.c.h.b16 %v170
    %v1047 = vunpack.c.l.b16 %v171
    %v1048 = vunpack.c.h.b16 %v171
    %v1049 = vunpack.c.l.b16 %v172
    %v1050 = vunpack.c.h.b16 %v172
    %v1051 = vunpack.c.l.b16 %v173
    %v1052 = vunpack.c.h.b16 %v173
    %v1053 = vunpack.c.l.b16 %v174
    %v1054 = vunpack.c.h.b16 %v174
    %v1055 = vunpack.c.l.b16 %v175
    %v1056 = vunpack.c.h.b16 %v175
    %v1057 = vunpack.c.l.b16 %v176
    %v1058 = vunpack.c.h.b16 %v176
    %v1059 = vunpack.c.l.b16 %v177
    %v1060 = vunpack.c.h.b16 %v177
    %v1061 = vunpack.c.l.b16 %v178
    %v1062 = vunpack.c.h.b16 %v178
    %v1063 = vunpack.c.l.b16 %v179
    %v1064 = vunpack.c.h.b16 %v179
    %v1065 = vunpack.c.l.b16 %v180
    %v1066 = vunpack.c.h.b16 %v180
    %v1067 = vunpack.c.l.b16 %v181
    %v1068 = vunpack.c.h.b16 %v181
    %v1069 = vunpack.c.l.b16 %v182
    %v1070 = vunpack.c.h.b16 %v182
    %v1071 = vunpack.c.l.b16 %v183
    %v1072 = vunpack.c.h.b16 %v183
    %v1073 = vunpack.c.l.b16 %v184
    %v1074 = vunpack.c.h.b16 %v184
    %v1075 = vunpack.c.l.b16 %v185
    %v1076 = vunpack.c.h.b16 %v185
    %v1077 = vunpack.c.l.b16 %v186
    %v1078 = vunpack.c.h.b16 %v186
    %v1079 = vunpack.c.l.b16 %v187
    %v1080 = vunpack.c.h.b16 %v187
    %v1081 = vunpack.c.l.b16 %v188
    %v1082 = vunpack.c.h.b16 %v188
    %v1083 = vunpack.c.l.b16 %v189
    %v1084 = vunpack.c.h.b16 %v189
    %v1085 = vunpack.c.l.b16 %v190
    %v1086 = vunpack.c.h.b16 %v190
    %v1087 = vunpack.c.l.b16 %v191
    %v1088 = vunpack.c.h.b16 %v191
    %v1089 = vunpack.c.l.b16 %v192
    %v1090 = vunpack.c.h.b16 %v192
    %v1091 = vunpack.c.l.b16 %v193
    %v1092 = vunpack.c.h.b16 %v193
    %v1093 = vunpack.c.l.b16 %v194
    %v1094 = vunpack.c.h.b16 %v194
    %v1095 = vunpack.c.l.b16 %v195
    %v1096 = vunpack.c.h.b16 %v195
    %v1097 = vunpack.c.l.b16 %v196
    %v1098 = vunpack.c.h.b16 %v196
    %v1099 = vunpack.c.l.b16 %v197
    %v1100 = vunpack.c.h.b16 %v197
    %v1101 = vunpack.c.l.b16 %v198
    %v1102 = vunpack.c.h.b16 %v198
    %v1103 = vunpack.c.l.b16 %v199
    %v1104 = vunpack.c.h.b16 %v199
    %v1105 = vunpack.c.l.b16 %v200
    %v1106 = vunpack.c.h.b16 %v200
    %v1107 = vunpack.c.l.b16 %v201
    %v1108 = vunpack.c.h.b16 %v201
    %v1109 = vunpack.c.l.b16 %v202
    %v1110 = vunpack.c.h.b16 %v202
    %v1111 = vunpack.c.l.b16 %v203
    %v1112 = vunpack.c.h.b16 %v203
    %v1113 = vunpack.c.l.b16 %v204
    %v1114 = vunpack.c.h.b16 %v204
    %v1115 = vunpack.c.l.b16 %v205
    %v1116 = vunpack.c.h.b16 %v205
    %v1117 = vunpack.c.l.b16 %v206
    %v1118 = vunpack.c.h.b16 %v206
    %v1119 = vunpack.c.l.b16 %v207
    %v1120 = vunpack.c.h.b16 %v207
    %v1121 = vunpack.c.l.b16 %v208
    %v1122 = vunpack.c.h.b16 %v208
    %v1123 = vunpack.c.l.b16 %v209
    %v1124 = vunpack.c.h.b16 %v209
    %v1125 = vunpack.c.l.b16 %v210
    %v1126 = vunpack.c.h.b16 %v210
    %v1127 = vunpack.c.l.b16 %v211
    %v1128 = vunpack.c.h.b16 %v211
    %v1129 = vunpack.c.l.b16 %v212
    %v1130 = vunpack.c.h.b16 %v212
    %v1131 = vunpack.c.l.b16 %v213
    %v1132 = vunpack.c.h.b16 %v213
    %v1133 = vunpack.c.l.b16 %v214
    %v1134 = vunpack.c.h.b16 %v214
    %v1135 = vunpack.c.l.b16 %v215
    %v1136 = vunpack.c.h.b16 %v215
    %v1137 = vunpack.c.l.b16 %v216
    %v1138 = vunpack.c.h.b16 %v216
    %v1139 = vunpack.c.l.b16 %v217
    %v1140 = vunpack.c.h.b16 %v217
    %v1141 = vunpack.c.l.b16 %v218
    %v1142 = vunpack.c.h.b16 %v218
    %v1143 = vunpack.c.l.b16 %v219
    %v1144 = vunpack.c.h.b16 %v219
    %v1145 = vunpack.c.l.b16 %v220
    %v1146 = vunpack.c.h.b16 %v220
    %v1147 = vunpack.c.l.b16 %v221
    %v1148 = vunpack.c.h.b16 %v221
    %v1149 = vunpack.c.l.b16 %v222
    %v1150 = vunpack.c.h.b16 %v222
    %v1151 = vunpack.c.l.b16 %v223
    %v1152 = vunpack.c.h.b16 %v223
    %v1153 = vunpack.c.l.b16 %v224
    %v1154 = vunpack.c.h.b16 %v224
    %v1155 = vunpack.c.l.b16 %v225
    %v1156 = vunpack.c.h.b16 %v225
    %v1157 = vunpack.c.l.b16 %v226
    %v1158 = vunpack.c.h.b16 %v226
    %v1159 = vunpack.c.l.b16 %v227
    %v1160 = vunpack.c.h.b16 %v227
    %v1161 = vunpack.c.l.b16 %v228
    %v1162 = vunpack.c.h.b16 %v228
    %v1163 = vunpack.c.l.b16 %v229
    %v1164 = vunpack.c.h.b16 %v229
    %v1165 = vunpack.c.l.b16 %v230
    %v1166 = vunpack.c.h.b16 %v230
    %v1167 = vunpack.c.l.b16 %v231
    %v1168 = vunpack.c.h.b16 %v231
    %v1169 = vunpack.c.l.b16 %v232
    %v1170 = vunpack.c.h.b16 %v232
    %v1171 = vunpack.c.l.b16 %v233
    %v1172 = vunpack.c.h.b16 %v233
    %v1173 = vunpack.c.l.b16 %v234
    %v1174 = vunpack.c.h.b16 %v234
    %v1175 = vunpack.c.l.b16 %v235
    %v1176 = vunpack.c.h.b16 %v235
    %v1177 = vunpack.c.l.b16 %v236
    %v1178 = vunpack.c.h.b16 %v236
    %v1179 = vunpack.c.l.b16 %v237
    %v1180 = vunpack.c.h.b16 %v237
    %v1181 = vunpack.c.l.b16 %v238
    %v1182 = vunpack.c.h.b16 %v238
    %v1183 = vunpack.c.l.b16 %v239
    %v1184 = vunpack.c.h.b16 %v239
    %v1185 = vunpack.c.l.b16 %v240
    %v1186 = vunpack.c.h.b16 %v240
    %v1187 = vunpack.c.l.b16 %v241
    %v1188 = vunpack.c.h.b16 %v241
    %v1189 = vunpack.c.l.b16 %v242
    %v1190 = vunpack.c.h.b16 %v242
    %v1191 = vunpack.c.l.b16 %v243
    %v1192 = vunpack.c.h.b16 %v243
    %v1193 = vunpack.c.l.b16 %v244
    %v1194 = vunpack.c.h.b16 %v244
    %v1195 = vunpack.c.l.b16 %v245
    %v1196 = vunpack.c.h.b16 %v245
    %v1197 = vunpack.c.l.b16 %v246
    %v1198 = vunpack.c.h.b16 %v246
    %v1199 = vunpack.c.l.b16 %v247
    %v1200 = vunpack.c.h.b16 %v247
    %v1201 = vunpack.c.l.b16 %v248
    %v1202 = vunpack.c.h.b16 %v248
    %v1203 = vunpack.c.l.b16 %v249
    %v1204 = vunpack.c.h.b16 %v249
    %v1205 = vunpack.c.l.b16 %v250
    %v1206 = vunpack.c.h.b16 %v250
    %v1207 = vunpack.c.l.b16 %v251
    %v1208 = vunpack.c.h.b16 %v251
    %v1209 = vunpack.c.l.b16 %v252
    %v1210 = vunpack.c.h.b16 %v252
    %v1211 = vunpack.c.l.b16 %v253
    %v1212 = vunpack.c.h.b16 %v253
    %v1213 = vunpack.c.l.b16 %v254
    %v1214 = vunpack.c.h.b16 %v254
    %v1215 = vunpack.c.l.b16 %v255
    %v1216 = vunpack.c.h.b16 %v255
    %v1217 = vunpack.c.l.b16 %v256
    %v1218 = vunpack.c.h.b16 %v256
    %v1219 = vunpack.c.l.b16 %v257
    %v1220 = vunpack.c.h.b16 %v257
    %v1221 = vunpack.c.l.b16 %v258
    %v1222 = vunpack.c.h.b16 %v258
    %v1223 = vunpack.c.l.b16 %v259
    %v1224 = vunpack.c.h.b16 %v259
    %v1225 = vunpack.c.l.b16 %v260
    %v1226 = vunpack.c.h.b16 %v260
    %v1227 = vunpack.c.l.b16 %v261
    %v1228 = vunpack.c.h.b16 %v261
    %v1229 = vunpack.c.l.b16 %v262
    %v1230 = vunpack.c.h.b16 %v262
    %v1231 = vunpack.c.l.b16 %v263
    %v1232 = vunpack.c.h.b16 %v263
    %v1233 = vunpack.c.l.b16 %v264
    %v1234 = vunpack.c.h.b16 %v264
    %v1235 = vunpack.c.l.b16 %v265
    %v1236 = vunpack.c.h.b16 %v265
    %v1237 = vunpack.c.l.b16 %v266
    %v1238 = vunpack.c.h.b16 %v266
    %v1239 = vunpack.c.l.b16 %v267
    %v1240 = vunpack.c.h.b16 %v267
    %v1241 = vunpack.c.l.b16 %v268
    %v1242 = vunpack.c.h.b16 %v268
    %v1243 = vunpack.c.l.b16 %v269
    %v1244 = vunpack.c.h.b16 %v269
    %v1245 = vunpack.c.l.b16 %v270
    %v1246 = vunpack.c.h.b16 %v270
    %v1247 = vunpack.c.l.b16 %v271
    %v1248 = vunpack.c.h.b16 %v271
    %v1249 = vunpack.c.l.b16 %v272
    %v1250 = vunpack.c.h.b16 %v272
    %v1251 = vunpack.c.l.b16 %v273
    %v1252 = vunpack.c.h.b16 %v273
    %v1253 = vunpack.c.l.b16 %v274
    %v1254 = vunpack.c.h.b16 %v274
    %v1255 = vunpack.c.l.b16 %v275
    %v1256 = vunpack.c.h.b16 %v275
    %v1257 = vunpack.c.l.b16 %v276
    %v1258 = vunpack.c.h.b16 %v276
    %v1259 = vunpack.c.l.b16 %v277
    %v1260 = vunpack.c.h.b16 %v277
    %v1261 = vunpack.c.l.b16 %v278
    %v1262 = vunpack.c.h.b16 %v278
    %v1263 = vunpack.c.l.b16 %v279
    %v1264 = vunpack.c.h.b16 %v279
    %v1265 = vunpack.c.l.b16 %v280
    %v1266 = vunpack.c.h.b16 %v280
    %v1267 = vunpack.c.l.b16 %v281
    %v1268 = vunpack.c.h.b16 %v281
    %v1269 = vunpack.c.l.b16 %v282
    %v1270 = vunpack.c.h.b16 %v282
    %v1271 = vunpack.c.l.b16 %v283
    %v1272 = vunpack.c.h.b16 %v283
    %v1273 = vunpack.c.l.b16 %v284
    %v1274 = vunpack.c.h.b16 %v284
    %v1275 = vunpack.c.l.b16 %v285
    %v1276 = vunpack.c.h.b16 %v285
    %v1277 = vunpack.c.l.b16 %v286
    %v1278 = vunpack.c.h.b16 %v286
    %v1279 = vunpack.c.l.b16 %v287
    %v1280 = vunpack.c.h.b16 %v287
    %v1281 = vunpack.c.l.b16 %v288
    %v1282 = vunpack.c.h.b16 %v288
    %v1283 = vunpack.c.l.b16 %v289
    %v1284 = vunpack.c.h.b16 %v289
    %v1285 = vunpack.c.l.b16 %v290
    %v1286 = vunpack.c.h.b16 %v290
    %v1287 = vunpack.c.l.b16 %v291
    %v1288 = vunpack.c.h.b16 %v291
    %v1289 = vunpack.c.l.b16 %v292
    %v1290 = vunpack.c.h.b16 %v292
    %v1291 = vunpack.c.l.b16 %v293
    %v1292 = vunpack.c.h.b16 %v293
    %v1293 = vunpack.c.l.b16 %v294
    %v1294 = vunpack.c.h.b16 %v294
    %v1295 = vunpack.c.l.b16 %v295
    %v1296 = vunpack.c.h.b16 %v295
    %v1297 = vunpack.c.l.b16 %v296
    %v1298 = vunpack.c.h.b16 %v296
    %v1299 = vunpack.c.l.b16 %v297
    %v1300 = vunpack.c.h.b16 %v297
    %v1301 = vunpack.c.l.b16 %v298
    %v1302 = vunpack.c.h.b16 %v298
    %v1303 = vunpack.c.l.b16 %v299
    %v1304 = vunpack.c.h.b16 %v299
    %v1305 = vunpack.c.l.b16 %v300
    %v1306 = vunpack.c.h.b16 %v300
    %v1307 = vunpack.c.l.b16 %v301
    %v1308 = vunpack.c.h.b16 %v301
    %v1309 = vunpack.c.l.b16 %v302
    %v1310 = vunpack.c.h.b16 %v302
    %v1311 = vunpack.c.l.b16 %v303
    %v1312 = vunpack.c.h.b16 %v303
    %v1313 = vunpack.c.l.b16 %v304
    %v1314 = vunpack.c.h.b16 %v304
    %v1315 = vunpack.c.l.b16 %v305
    %v1316 = vunpack.c.h.b16 %v305
    %v1317 = vunpack.c.l.b16 %v306
    %v1318 = vunpack.c.h.b16 %v306
    %v1319 = vunpack.c.l.b16 %v307
    %v1320 = vunpack.c.h.b16 %v307
    %v1321 = vunpack.c.l.b16 %v308
    %v1322 = vunpack.c.h.b16 %v308
    %v1323 = vunpack.c.l.b16 %v309
    %v1324 = vunpack.c.h.b16 %v309
    %v1325 = vunpack.c.l.b16 %v310
    %v1326 = vunpack.c.h.b16 %v310
    %v1327 = vunpack.c.l.b16 %v311
    %v1328 = vunpack.c.h.b16 %v311
    %v1329 = vunpack.c.l.b16 %v312
    %v1330 = vunpack.c.h.b16 %v312
    %v1331 = vunpack.c.l.b16 %v313
    %v1332 = vunpack.c.h.b16 %v313
    %v1333 = vunpack.c.l.b16 %v314
    %v1334 = vunpack.c.h.b16 %v314
    %v1335 = vunpack.c.l.b16 %v315
    %v1336 = vunpack.c.h.b16 %v315
    %v1337 = vunpack.c.l.b16 %v316
    %v1338 = vunpack.c.h.b16 %v316
    %v1339 = vunpack.c.l.b16 %v317
    %v1340 = vunpack.c.h.b16 %v317
    %v1341 = vunpack.c.l.b16 %v318
    %v1342 = vunpack.c.h.b16 %v318
    %v1343 = vunpack.c.l.b16 %v319
    %v1344 = vunpack.c.h.b16 %v319
    %v1345 = vunpack.c.l.b16 %v320
    %v1346 = vunpack.c.h.b16 %v320
    %v1347 = vunpack.c.l.b16 %v321
    %v1348 = vunpack.c.h.b16 %v321
    %v1349 = vunpack.c.l.b16 %v322
    %v1350 = vunpack.c.h.b16 %v322
    %v1351 = vunpack.c.l.b16 %v323
    %v1352 = vunpack.c.h.b16 %v323
    %v1353 = vunpack.c.l.b16 %v324
    %v1354 = vunpack.c.h.b16 %v324
    %v1355 = vunpack.c.l.b16 %v325
    %v1356 = vunpack.c.h.b16 %v325
    %v1357 = vunpack.c.l.b16 %v326
    %v1358 = vunpack.c.h.b16 %v326
    %v1359 = vunpack.c.l.b16 %v327
    %v1360 = vunpack.c.h.b16 %v327
    %v1361 = vunpack.c.l.b16 %v328
    %v1362 = vunpack.c.h.b16 %v328
    %v1363 = vunpack.c.l.b16 %v329
    %v1364 = vunpack.c.h.b16 %v329
    %v1365 = vunpack.c.l.b16 %v330
    %v1366 = vunpack.c.h.b16 %v330
    %v1367 = vunpack.c.l.b16 %v331
    %v1368 = vunpack.c.h.b16 %v331
    %v1369 = vunpack.c.l.b16 %v332
    %v1370 = vunpack.c.h.b16 %v332
    %v1371 = vunpack.c.l.b16 %v333
    %v1372 = vunpack.c.h.b16 %v333
    %v1373 = vunpack.c.l.b16 %v334
    %v1374 = vunpack.c.h.b16 %v334
    %v1375 = vunpack.c.l.b16 %v335
    %v1376 = vunpack.c.h.b16 %v335
    %v1377 = vunpack.c.l.b16 %v336
    %v1378 = vunpack.c.h.b16 %v336
    %v1379 = vunpack.c.l.b16 %v337
    %v1380 = vunpack.c.h.b16 %v337
    %v1381 = vunpack.c.l.b16 %v338
    %v1382 = vunpack.c.h.b16 %v338
    %v1383 = vunpack.c.l.b16 %v339
    %v1384 = vunpack.c.h.b16 %v339
    %v1385 = vunpack.c.l.b16 %v340
    %v1386 = vunpack.c.h.b16 %v340
    %v1387 = vunpack.c.l.b16 %v341
    %v1388 = vunpack.c.h.b16 %v341
    %v1389 = vunpack.c.l.b16 %v342
    %v1390 = vunpack.c.h.b16 %v342
    %v1391 = vunpack.c.l.b16 %v343
    %v1392 = vunpack.c.h.b16 %v343
    %v1393 = vunpack.c.l.b16 %v344
    %v1394 = vunpack.c.h.b16 %v344
    %v1395 = vunpack.c.l.b16 %v345
    %v1396 = vunpack.c.h.b16 %v345
    %v1397 = vunpack.c.l.b16 %v346
    %v1398 = vunpack.c.h.b16 %v346
    %v1399 = vunpack.c.l.b16 %v347
    %v1400 = vunpack.c.h.b16 %v347
    %v1401 = vunpack.c.l.b16 %v348
    %v1402 = vunpack.c.h.b16 %v348
    %v1403 = vunpack.c.l.b16 %v349
    %v1404 = vunpack.c.h.b16 %v349
    %v1405 = vunpack.c.l.b16 %v350
    %v1406 = vunpack.c.h.b16 %v350
    %v1407 = vunpack.c.l.b16 %v351
    %v1408 = vunpack.c.h.b16 %v351
    %v1409 = vunpack.c.l.b16 %v352
    %v1410 = vunpack.c.h.b16 %v352
    %v1411 = vunpack.c.l.b16 %v353
    %v1412 = vunpack.c.h.b16 %v353
    %v1413 = vunpack.c.l.b16 %v354
    %v1414 = vunpack.c.h.b16 %v354
    %v1415 = vunpack.c.l.b16 %v355
    %v1416 = vunpack.c.h.b16 %v355
    %v1417 = vunpack.c.l.b16 %v356
    %v1418 = vunpack.c.h.b16 %v356
    %v1419 = vunpack.c.l.b16 %v357
    %v1420 = vunpack.c.h.b16 %v357
    %v1421 = vunpack.c.l.b16 %v358
    %v1422 = vunpack.c.h.b16 %v358
    %v1423 = vunpack.c.l.b16 %v359
    %v1424 = vunpack.c.h.b16 %v359
    %v1425 = vunpack.c.l.b16 %v360
    %v1426 = vunpack.c.h.b16 %v360
    %v1427 = vunpack.c.l.b16 %v361
    %v1428 = vunpack.c.h.b16 %v361
    %v1429 = vunpack.c.l.b16 %v362
    %v1430 = vunpack.c.h.b16 %v362
    %v1431 = vunpack.c.l.b16 %v363
    %v1432 = vunpack.c.h.b16 %v363
    %v1433 = vunpack.c.l.b16 %v364
    %v1434 = vunpack.c.h.b16 %v364
    %v1435 = vunpack.c.l.b16 %v365
    %v1436 = vunpack.c.h.b16 %v365
    %v1437 = vunpack.c.l.b16 %v366
    %v1438 = vunpack.c.h.b16 %v366
    %v1439 = vunpack.c.l.b16 %v367
    %v1440 = vunpack.c.h.b16 %v367
    %v1441 = vunpack.c.l.b16 %v368
    %v1442 = vunpack.c.h.b16 %v368
    %v1443 = vunpack.c.l.b16 %v369
    %v1444 = vunpack.c.h.b16 %v369
    %v1445 = vunpack.c.l.b16 %v370
    %v1446 = vunpack.c.h.b16 %v370
    %v1447 = vunpack.c.l.b16 %v371
    %v1448 = vunpack.c.h.b16 %v371
    %v1449 = vunpack.c.l.b16 %v372
    %v1450 = vunpack.c.h.b16 %v372
    %v1451 = vunpack.c.l.b16 %v373
    %v1452 = vunpack.c.h.b16 %v373
    %v1453 = vunpack.c.l.b16 %v374
    %v1454 = vunpack.c.h.b16 %v374
    %v1455 = vunpack.c.l.b16 %v375
    %v1456 = vunpack.c.h.b16 %v375
    %v1457 = vunpack.c.l.b16 %v376
    %v1458 = vunpack.c.h.b16 %v376
    %v1459 = vunpack.c.l.b16 %v377
    %v1460 = vunpack.c.h.b16 %v377
    %v1461 = vunpack.c.l.b16 %v378
    %v1462 = vunpack.c.h.b16 %v378
    %v1463 = vunpack.c.l.b16 %v379
    %v1464 = vunpack.c.h.b16 %v379
    %v1465 = vunpack.c.l.b16 %v380
    %v1466 = vunpack.c.h.b16 %v380
    %v1467 = vunpack.c.l.b16 %v381
    %v1468 = vunpack.c.h.b16 %v381
    %v1469 = vunpack.c.l.b16 %v382
    %v1470 = vunpack.c.h.b16 %v382
    %v1471 = vunpack.c.l.b16 %v383
    %v1472 = vunpack.c.h.b16 %v383
    %v1473 = vunpack.c.l.b16 %v384
    %v1474 = vunpack.c.h.b16 %v384
    %v1475 = vunpack.c.l.b16 %v385
    %v1476 = vunpack.c.h.b16 %v385
    %v1477 = vunpack.c.l.b16 %v386
    %v1478 = vunpack.c.h.b16 %v386
    %v1479 = vunpack.c.l.b16 %v387
    %v1480 = vunpack.c.h.b16 %v387
    %v1481 = vunpack.c.l.b16 %v388
    %v1482 = vunpack.c.h.b16 %v388
    %v1483 = vunpack.c.l.b16 %v389
    %v1484 = vunpack.c.h.b16 %v389
    %v1485 = vunpack.c.l.b16 %v390
    %v1486 = vunpack.c.h.b16 %v390
    %v1487 = vunpack.c.l.b16 %v391
    %v1488 = vunpack.c.h.b16 %v391
    %v1489 = vunpack.c.l.b16 %v392
    %v1490 = vunpack.c.h.b16 %v392
    %v1491 = vunpack.c.l.b16 %v393
    %v1492 = vunpack.c.h.b16 %v393
    %v1493 = vunpack.c.l.b16 %v394
    %v1494 = vunpack.c.h.b16 %v394
    %v1495 = vunpack.c.l.b16 %v395
    %v1496 = vunpack.c.h.b16 %v395
    %v1497 = vunpack.c.l.b16 %v396
    %v1498 = vunpack.c.h.b16 %v396
    %v1499 = vunpack.c.l.b16 %v397
    %v1500 = vunpack.c.h.b16 %v397
    %v1501 = vunpack.c.l.b16 %v398
    %v1502 = vunpack.c.h.b16 %v398
    %v1503 = vunpack.c.l.b16 %v399
    %v1504 = vunpack.c.h.b16 %v399
    %v1505 = vunpack.c.l.b16 %v400
    %v1506 = vunpack.c.h.b16 %v400
    %v1507 = vunpack.c.l.b16 %v401
    %v1508 = vunpack.c.h.b16 %v401
    %v1509 = vunpack.c.l.b16 %v402
    %v1510 = vunpack.c.h.b16 %v402
    %v1511 = vunpack.c.l.b16 %v403
    %v1512 = vunpack.c.h.b16 %v403
    %v1513 = vunpack.c.l.b16 %v404
    %v1514 = vunpack.c.h.b16 %v404
    %v1515 = vunpack.c.l.b16 %v405
    %v1516 = vunpack.c.h.b16 %v405
    %v1517 = vunpack.c.l.b16 %v406
    %v1518 = vunpack.c.h.b16 %v406
    %v1519 = vunpack.c.l.b16 %v407
    %v1520 = vunpack.c.h.b16 %v407
    %v1521 = vunpack.c.l.b16 %v408
    %v1522 = vunpack.c.h.b16 %v408
    %v1523 = vunpack.c.l.b16 %v409
    %v1524 = vunpack.c.h.b16 %v409
    %v1525 = vunpack.c.l.b16 %v410
    %v1526 = vunpack.c.h.b16 %v410
    %v1527 = vunpack.c.l.b16 %v411
    %v1528 = vunpack.c.h.b16 %v411
    %v1529 = vunpack.c.l.b16 %v412
    %v1530 = vunpack.c.h.b16 %v412
    %v1531 = vunpack.c.l.b16 %v413
    %v1532 = vunpack.c.h.b16 %v413
    %v1533 = vunpack.c.l.b16 %v414
    %v1534 = vunpack.c.h.b16 %v414
    %v1535 = vunpack.c.l.b16 %v415
    %v1536 = vunpack.c.h.b16 %v415
    %v1537 = vunpack.c.l.b16 %v416
    %v1538 = vunpack.c.h.b16 %v416
    %v1539 = vunpack.c.l.b16 %v417
    %v1540 = vunpack.c.h.b16 %v417
    %v1541 = vunpack.c.l.b16 %v418
    %v1542 = vunpack.c.h.b16 %v418
    %v1543 = vunpack.c.l.b16 %v419
    %v1544 = vunpack.c.h.b16 %v419
    %v1545 = vunpack.c.l.b16 %v420
    %v1546 = vunpack.c.h.b16 %v420
    %v1547 = vunpack.c.l.b16 %v421
    %v1548 = vunpack.c.h.b16 %v421
    %v1549 = vunpack.c.l.b16 %v422
    %v1550 = vunpack.c.h.b16 %v422
    %v1551 = vunpack.c.l.b16 %v423
    %v1552 = vunpack.c.h.b16 %v423
    %v1553 = vunpack.c.l.b16 %v424
    %v1554 = vunpack.c.h.b16 %v424
    %v1555 = vunpack.c.l.b16 %v425
    %v1556 = vunpack.c.h.b16 %v425
    %v1557 = vunpack.c.l.b16 %v426
    %v1558 = vunpack.c.h.b16 %v426
    %v1559 = vunpack.c.l.b16 %v427
    %v1560 = vunpack.c.h.b16 %v427
    %v1561 = vunpack.c.l.b16 %v428
    %v1562 = vunpack.c.h.b16 %v428
    %v1563 = vunpack.c.l.b16 %v429
    %v1564 = vunpack.c.h.b16 %v429
    %v1565 = vunpack.c.l.b16 %v430
    %v1566 = vunpack.c.h.b16 %v430
    %v1567 = vunpack.c.l.b16 %v431
    %v1568 = vunpack.c.h.b16 %v431
    %v1569 = vunpack.c.l.b16 %v432
    %v1570 = vunpack.c.h.b16 %v432
    %v1571 = vunpack.c.l.b16 %v433
    %v1572 = vunpack.c.h.b16 %v433
    %v1573 = vunpack.c.l.b16 %v434
    %v1574 = vunpack.c.h.b16 %v434
    %v1575 = vunpack.c.l.b16 %v435
    %v1576 = vunpack.c.h.b16 %v435
    %v1577 = vunpack.c.l.b16 %v436
    %v1578 = vunpack.c.h.b16 %v436
    %v1579 = vunpack.c.l.b16 %v437
    %v1580 = vunpack.c.h.b16 %v437
    %v1581 = vunpack.c.l.b16 %v438
    %v1582 = vunpack.c.h.b16 %v438
    %v1583 = vunpack.c.l.b16 %v439
    %v1584 = vunpack.c.h.b16 %v439
    %v1585 = vunpack.c.l.b16 %v440
    %v1586 = vunpack.c.h.b16 %v440
    %v1587 = vunpack.c.l.b16 %v441
    %v1588 = vunpack.c.h.b16 %v441
    %v1589 = vunpack.c.l.b16 %v442
    %v1590 = vunpack.c.h.b16 %v442
    %v1591 = vunpack.c.l.b16 %v443
    %v1592 = vunpack.c.h.b16 %v443
    %v1593 = vunpack.c.l.b16 %v444
    %v1594 = vunpack.c.h.b16 %v444
    %v1595 = vunpack.c.l.b16 %v445
    %v1596 = vunpack.c.h.b16 %v445
    %v1597 = vunpack.c.l.b16 %v446
    %v1598 = vunpack.c.h.b16 %v446
    %v1599 = vunpack.c.l.b16 %v447
    %v1600 = vunpack.c.h.b16 %v447
    %v1601 = vunpack.c.l.b16 %v448
    %v1602 = vunpack.c.h.b16 %v448
    %v1603 = vunpack.c.l.b16 %v449
    %v1604 = vunpack.c.h.b16 %v449
    %v1605 = vunpack.c.l.b16 %v450
    %v1606 = vunpack.c.h.b16 %v450
    %v1607 = vunpack.c.l.b16 %v451
    %v1608 = vunpack.c.h.b16 %v451
    %v1609 = vunpack.c.l.b16 %v452
    %v1610 = vunpack.c.h.b16 %v452
    %v1611 = vunpack.c.l.b16 %v453
    %v1612 = vunpack.c.h.b16 %v453
    %v1613 = vunpack.c.l.b16 %v454
    %v1614 = vunpack.c.h.b16 %v454
    %v1615 = vunpack.c.l.b16 %v455
    %v1616 = vunpack.c.h.b16 %v455
    %v1617 = vunpack.c.l.b16 %v456
    %v1618 = vunpack.c.h.b16 %v456
    %v1619 = vunpack.c.l.b16 %v457
    %v1620 = vunpack.c.h.b16 %v457
    %v1621 = vunpack.c.l.b16 %v458
    %v1622 = vunpack.c.h.b16 %v458
    %v1623 = vunpack.c.l.b16 %v459
    %v1624 = vunpack.c.h.b16 %v459
    %v1625 = vunpack.c.l.b16 %v460
    %v1626 = vunpack.c.h.b16 %v460
    %v1627 = vunpack.c.l.b16 %v461
    %v1628 = vunpack.c.h.b16 %v461
    %v1629 = vunpack.c.l.b16 %v462
    %v1630 = vunpack.c.h.b16 %v462
    %v1631 = vunpack.c.l.b16 %v463
    %v1632 = vunpack.c.h.b16 %v463
    %v1633 = vunpack.c.l.b16 %v464
    %v1634 = vunpack.c.h.b16 %v464
    %v1635 = vunpack.c.l.b16 %v465
    %v1636 = vunpack.c.h.b16 %v465
    %v1637 = vunpack.c.l.b16 %v466
    %v1638 = vunpack.c.h.b16 %v466
    %v1639 = vunpack.c.l.b16 %v467
    %v1640 = vunpack.c.h.b16 %v467
    %v1641 = vunpack.c.l.b16 %v468
    %v1642 = vunpack.c.h.b16 %v468
    %v1643 = vunpack.c.l.b16 %v469
    %v1644 = vunpack.c.h.b16 %v469
    %v1645 = vunpack.c.l.b16 %v470
    %v1646 = vunpack.c.h.b16 %v470
    %v1647 = vunpack.c.l.b16 %v471
    %v1648 = vunpack.c.h.b16 %v471
    %v1649 = vunpack.c.l.b16 %v472
    %v1650 = vunpack.c.h.b16 %v472
    %v1651 = vunpack.c.l.b16 %v473
    %v1652 = vunpack.c.h.b16 %v473
    %v1653 = vunpack.c.l.b16 %v474
    %v1654 = vunpack.c.h.b16 %v474
    %v1655 = vunpack.c.l.b16 %v475
    %v1656 = vunpack.c.h.b16 %v475
    %v1657 = vunpack.c.l.b16 %v476
    %v1658 = vunpack.c.h.b16 %v476
    %v1659 = vunpack.c.l.b16 %v477
    %v1660 = vunpack.c.h.b16 %v477
    %v1661 = vunpack.c.l.b16 %v478
    %v1662 = vunpack.c.h.b16 %v478
    %v1663 = vunpack.c.l.b16 %v479
    %v1664 = vunpack.c.h.b16 %v479
    %v1665 = vunpack.c.l.b16 %v480
    %v1666 = vunpack.c.h.b16 %v480
    %v1667 = vunpack.c.l.b16 %v481
    %v1668 = vunpack.c.h.b16 %v481
    %v1669 = vunpack.c.l.b16 %v482
    %v1670 = vunpack.c.h.b16 %v482
    %v1671 = vunpack.c.l.b16 %v483
    %v1672 = vunpack.c.h.b16 %v483
    %v1673 = vunpack.c.l.b16 %v484
    %v1674 = vunpack.c.h.b16 %v484
    %v1675 = vunpack.c.l.b16 %v485
    %v1676 = vunpack.c.h.b16 %v485
    %v1677 = vunpack.c.l.b16 %v486
    %v1678 = vunpack.c.h.b16 %v486
    %v1679 = vunpack.c.l.b16 %v487
    %v1680 = vunpack.c.h.b16 %v487
    %v1681 = vunpack.c.l.b16 %v488
    %v1682 = vunpack.c.h.b16 %v488
    %v1683 = vunpack.c.l.b16 %v489
    %v1684 = vunpack.c.h.b16 %v489
    %v1685 = vunpack.c.l.b16 %v490
    %v1686 = vunpack.c.h.b16 %v490
    %v1687 = vunpack.c.l.b16 %v491
    %v1688 = vunpack.c.h.b16 %v491
    %v1689 = vunpack.c.l.b16 %v492
    %v1690 = vunpack.c.h.b16 %v492
    %v1691 = vunpack.c.l.b16 %v493
    %v1692 = vunpack.c.h.b16 %v493
    %v1693 = vunpack.c.l.b16 %v494
    %v1694 = vunpack.c.h.b16 %v494
    %v1695 = vunpack.c.l.b16 %v495
    %v1696 = vunpack.c.h.b16 %v495
    %v1697 = vunpack.c.l.b16 %v496
    %v1698 = vunpack.c.h.b16 %v496
    %v1699 = vunpack.c.l.b16 %v497
    %v1700 = vunpack.c.h.b16 %v497
    %v1701 = vunpack.c.l.b16 %v498
    %v1702 = vunpack.c.h.b16 %v498
    %v1703 = vunpack.c.l.b16 %v499
    %v1704 = vunpack.c.h.b16 %v499
    %v1705 = vunpack.c.l.b16 %v500
    %v1706 = vunpack.c.h.b16 %v500
    %v1707 = vunpack.c.l.b16 %v501
    %v1708 = vunpack.c.h.b16 %v501
    %v1709 = vunpack.c.l.b16 %v502
    %v1710 = vunpack.c.h.b16 %v502
    %v1711 = vunpack.c.l.b16 %v503
    %v1712 = vunpack.c.h.b16 %v503
    %v1713 = vunpack.c.l.b16 %v504
    %v1714 = vunpack.c.h.b16 %v504
    %v1715 = vunpack.c.l.b16 %v505
    %v1716 = vunpack.c.h.b16 %v505
    %v1717 = vunpack.c.l.b16 %v506
    %v1718 = vunpack.c.h.b16 %v506
    %v1719 = vpack.c.b16 %v957, %v951
    %v1720 = vpack.c.b16 %v958, %v952
    %v1721 = vpack.c.b16 %v959, %v953
    %v1722 = vpack.c.b16 %v960, %v954
    %v1723 = vpack.c.b16 %v961, %v955
    %v1724 = vpack.c.b16 %v962, %v956
    %v1725 = vpack.c.b16 %v969, %v963
    %v1726 = vpack.c.b16 %v970, %v964
    %v1727 = vpack.c.b16 %v971, %v965
    %v1728 = vpack.c.b16 %v972, %v966
    %v1729 = vpack.c.b16 %v973, %v967
    %v1730 = vpack.c.b16 %v974, %v968
    %v1731 = vpack.c.b16 %v981, %v975
    %v1732 = vpack.c.b16 %v982, %v976
    %v1733 = vpack.c.b16 %v983, %v977
    %v1734 = vpack.c.b16 %v984, %v978
    %v1735 = vpack.c.b16 %v985, %v979
    %v1736 = vpack.c.b16 %v986, %v980
    %v1737 = vpack.c.b16 %v993, %v987
    %v1738 = vpack.c.b16 %v994, %v988
    %v1739 = vpack.c.b16 %v995, %v989
    %v1740 = vpack.c.b16 %v996, %v990
    %v1741 = vpack.c.b16 %v997, %v991
    %v1742 = vpack.c.b16 %v998, %v992
    %v1743 = vpack.c.b16 %v1005, %v999
    %v1744 = vpack.c.b16 %v1006, %v1000
    %v1745 = vpack.c.b16 %v1007, %v1001
    %v1746 = vpack.c.b16 %v1008, %v1002
    %v1747 = vpack.c.b16 %v1009, %v1003
    %v1748 = vpack.c.b16 %v1010, %v1004
    %v1749 = vpack.c.b16 %v1017, %v1011
    %v1750 = vpack.c.b16 %v1018, %v1012
    %v1751 = vpack.c.b16 %v1019, %v1013
    %v1752 = vpack.c.b16 %v1020, %v1014
    %v1753 = vpack.c.b16 %v1021, %v1015
    %v1754 = vpack.c.b16 %v1022, %v1016
    %v1755 = vpack.c.b16 %v1029, %v1023
    %v1756 = vpack.c.b16 %v1030, %v1024
    %v1757 = vpack.c.b16 %v1031, %v1025
    %v1758 = vpack.c.b16 %v1032, %v1026
    %v1759 = vpack.c.b16 %v1033, %v1027
    %v1760 = vpack.c.b16 %v1034, %v1028
    %v1761 = vpack.c.b16 %v1041, %v1035
    %v1762 = vpack.c.b16 %v1042, %v1036
    %v1763 = vpack.c.b16 %v1043, %v1037
    %v1764 = vpack.c.b16 %v1044, %v1038
    %v1765 = vpack.c.b16 %v1045, %v1039
    %v1766 = vpack.c.b16 %v1046, %v1040
    %v1767 = vpack.c.b16 %v1053, %v1047
    %v1768 = vpack.c.b16 %v1054, %v1048
    %v1769 = vpack.c.b16 %v1055, %v1049
    %v1770 = vpack.c.b16 %v1056, %v1050
    %v1771 = vpack.c.b16 %v1057, %v1051
    %v1772 = vpack.c.b16 %v1058, %v1052
    %v1773 = vpack.c.b16 %v1065, %v1059
    %v1774 = vpack.c.b16 %v1066, %v1060
    %v1775 = vpack.c.b16 %v1067, %v1061
    %v1776 = vpack.c.b16 %v1068, %v1062
    %v1777 = vpack.c.b16 %v1069, %v1063
    %v1778 = vpack.c.b16 %v1070, %v1064
    %v1779 = vpack.c.b16 %v1077, %v1071
    %v1780 = vpack.c.b16 %v1078, %v1072
    %v1781 = vpack.c.b16 %v1079, %v1073
    %v1782 = vpack.c.b16 %v1080, %v1074
    %v1783 = vpack.c.b16 %v1081, %v1075
    %v1784 = vpack.c.b16 %v1082, %v1076
    %v1785 = vpack.c.b16 %v1089, %v1083
    %v1786 = vpack.c.b16 %v1090, %v1084
    %v1787 = vpack.c.b16 %v1091, %v1085
    %v1788 = vpack.c.b16 %v1092, %v1086
    %v1789 = vpack.c.b16 %v1093, %v1087
    %v1790 = vpack.c.b16 %v1094, %v1088
    %v1791 = vpack.c.b16 %v1101, %v1095
    %v1792 = vpack.c.b16 %v1102, %v1096
    %v1793 = vpack.c.b16 %v1103, %v1097
    %v1794 = vpack.c.b16 %v1104, %v1098
    %v1795 = vpack.c.b16 %v1105, %v1099
    %v1796 = vpack.c.b16 %v1106, %v1100
    %v1797 = vpack.c.b16 %v1113, %v1107
    %v1798 = vpack.c.b16 %v1114, %v1108
    %v1799 = vpack.c.b16 %v1115, %v1109
    %v1800 = vpack.c.b16 %v1116, %v1110
    %v1801 = vpack.c.b16 %v1117, %v1111
    %v1802 = vpack.c.b16 %v1118, %v1112
    %v1803 = vpack.c.b16 %v1125, %v1119
    %v1804 = vpack.c.b16 %v1126, %v1120
    %v1805 = vpack.c.b16 %v1127, %v1121
    %v1806 = vpack.c.b16 %v1128, %v1122
    %v1807 = vpack.c.b16 %v1129, %v1123
    %v1808 = vpack.c.b16 %v1130, %v1124
    %v1809 = vpack.c.b16 %v1137, %v1131
    %v1810 = vpack.c.b16 %v1138, %v1132
    %v1811 = vpack.c.b16 %v1139, %v1133
    %v1812 = vpack.c.b16 %v1140, %v1134
    %v1813 = vpack.c.b16 %v1141, %v1135
    %v1814 = vpack.c.b16 %v1142, %v1136
    %v1815 = vpack.c.b16 %v1149, %v1143
    %v1816 = vpack.c.b16 %v1150, %v1144
    %v1817 = vpack.c.b16 %v1151, %v1145
    %v1818 = vpack.c.b16 %v1152, %v1146
    %v1819 = vpack.c.b16 %v1153, %v1147
    %v1820 = vpack.c.b16 %v1154, %v1148
    %v1821 = vpack.c.b16 %v1161, %v1155
    %v1822 = vpack.c.b16 %v1162, %v1156
    %v1823 = vpack.c.b16 %v1163, %v1157
    %v1824 = vpack.c.b16 %v1164, %v1158
    %v1825 = vpack.c.b16 %v1165, %v1159
    %v1826 = vpack.c.b16 %v1166, %v1160
    %v1827 = vpack.c.b16 %v1173, %v1167
    %v1828 = vpack.c.b16 %v1174, %v1168
    %v1829 = vpack.c.b16 %v1175, %v1169
    %v1830 = vpack.c.b16 %v1176, %v1170
    %v1831 = vpack.c.b16 %v1177, %v1171
    %v1832 = vpack.c.b16 %v1178, %v1172
    %v1833 = vpack.c.b16 %v1185, %v1179
    %v1834 = vpack.c.b16 %v1186, %v1180
    %v1835 = vpack.c.b16 %v1187, %v1181
    %v1836 = vpack.c.b16 %v1188, %v1182
    %v1837 = vpack.c.b16 %v1189, %v1183
    %v1838 = vpack.c.b16 %v1190, %v1184
    %v1839 = vpack.c.b16 %v1197, %v1191
    %v1840 = vpack.c.b16 %v1198, %v1192
    %v1841 = vpack.c.b16 %v1199, %v1193
    %v1842 = vpack.c.b16 %v1200, %v1194
    %v1843 = vpack.c.b16 %v1201, %v1195
    %v1844 = vpack.c.b16 %v1202, %v1196
    %v1845 = vpack.c.b16 %v1209, %v1203
    %v1846 = vpack.c.b16 %v1210, %v1204
    %v1847 = vpack.c.b16 %v1211, %v1205
    %v1848 = vpack.c.b16 %v1212, %v1206
    %v1849 = vpack.c.b16 %v1213, %v1207
    %v1850 = vpack.c.b16 %v1214, %v1208
    %v1851 = vpack.c.b16 %v1221, %v1215
    %v1852 = vpack.c.b16 %v1222, %v1216
    %v1853 = vpack.c.b16 %v1223, %v1217
    %v1854 = vpack.c.b16 %v1224, %v1218
    %v1855 = vpack.c.b16 %v1225, %v1219
    %v1856 = vpack.c.b16 %v1226, %v1220
    %v1857 = vpack.c.b16 %v1233, %v1227
    %v1858 = vpack.c.b16 %v1234, %v1228
    %v1859 = vpack.c.b16 %v1235, %v1229
    %v1860 = vpack.c.b16 %v1236, %v1230
    %v1861 = vpack.c.b16 %v1237, %v1231
    %v1862 = vpack.c.b16 %v1238, %v1232
    %v1863 = vpack.c.b16 %v1245, %v1239
    %v1864 = vpack.c.b16 %v1246, %v1240
    %v1865 = vpack.c.b16 %v1247, %v1241
    %v1866 = vpack.c.b16 %v1248, %v1242
    %v1867 = vpack.c.b16 %v1249, %v1243
    %v1868 = vpack.c.b16 %v1250, %v1244
    %v1869 = vpack.c.b16 %v1257, %v1251
    %v1870 = vpack.c.b16 %v1258, %v1252
    %v1871 = vpack.c.b16 %v1259, %v1253
    %v1872 = vpack.c.b16 %v1260, %v1254
    %v1873 = vpack.c.b16 %v1261, %v1255
    %v1874 = vpack.c.b16 %v1262, %v1256
    %v1875 = vpack.c.b16 %v1269, %v1263
    %v1876 = vpack.c.b16 %v1270, %v1264
    %v1877 = vpack.c.b16 %v1271, %v1265
    %v1878 = vpack.c.b16 %v1272, %v1266
    %v1879 = vpack.c.b16 %v1273, %v1267
    %v1880 = vpack.c.b16 %v1274, %v1268
    %v1881 = vpack.c.b16 %v1281, %v1275
    %v1882 = vpack.c.b16 %v1282, %v1276
    %v1883 = vpack.c.b16 %v1283, %v1277
    %v1884 = vpack.c.b16 %v1284, %v1278
    %v1885 = vpack.c.b16 %v1285, %v1279
    %v1886 = vpack.c.b16 %v1286, %v1280
    %v1887 = vpack.c.b16 %v1293, %v1287
    %v1888 = vpack.c.b16 %v1294, %v1288
    %v1889 = vpack.c.b16 %v1295, %v1289
    %v1890 = vpack.c.b16 %v1296, %v1290
    %v1891 = vpack.c.b16 %v1297, %v1291
    %v1892 = vpack.c.b16 %v1298, %v1292
    %v1893 = vpack.c.b16 %v1305, %v1299
    %v1894 = vpack.c.b16 %v1306, %v1300
    %v1895 = vpack.c.b16 %v1307, %v1301
    %v1896 = vpack.c.b16 %v1308, %v1302
    %v1897 = vpack.c.b16 %v1309, %v1303
    %v1898 = vpack.c.b16 %v1310, %v1304
    %v1899 = vpack.c.b16 %v1317, %v1311
    %v1900 = vpack.c.b16 %v1318, %v1312
    %v1901 = vpack.c.b16 %v1319, %v1313
    %v1902 = vpack.c.b16 %v1320, %v1314
    %v1903 = vpack.c.b16 %v1321, %v1315
    %v1904 = vpack.c.b16 %v1322, %v1316
    %v1905 = vpack.c.b16 %v1329, %v1323
    %v1906 = vpack.c.b16 %v1330, %v1324
    %v1907 = vpack.c.b16 %v1331, %v1325
    %v1908 = vpack.c.b16 %v1332, %v1326
    %v1909 = vpack.c.b16 %v1333, %v1327
    %v1910 = vpack.c.b16 %v1334, %v1328
    %v1911 = vpack.c.b16 %v1341, %v1335
    %v1912 = vpack.c.b16 %v1342, %v1336
    %v1913 = vpack.c.b16 %v1343, %v1337
    %v1914 = vpack.c.b16 %v1344, %v1338
    %v1915 = vpack.c.b16 %v1345, %v1339
    %v1916 = vpack.c.b16 %v1346, %v1340
    %v1917 = vpack.c.b16 %v1353, %v1347
    %v1918 = vpack.c.b16 %v1354, %v1348
    %v1919 = vpack.c.b16 %v1355, %v1349
    %v1920 = vpack.c.b16 %v1356, %v1350
    %v1921 = vpack.c.b16 %v1357, %v1351
    %v1922 = vpack.c.b16 %v1358, %v1352
    %v1923 = vpack.c.b16 %v1365, %v1359
    %v1924 = vpack.c.b16 %v1366, %v1360
    %v1925 = vpack.c.b16 %v1367, %v1361
    %v1926 = vpack.c.b16 %v1368, %v1362
    %v1927 = vpack.c.b16 %v1369, %v1363
    %v1928 = vpack.c.b16 %v1370, %v1364
    %v1929 = vpack.c.b16 %v1377, %v1371
    %v1930 = vpack.c.b16 %v1378, %v1372
    %v1931 = vpack.c.b16 %v1379, %v1373
    %v1932 = vpack.c.b16 %v1380, %v1374
    %v1933 = vpack.c.b16 %v1381, %v1375
    %v1934 = vpack.c.b16 %v1382, %v1376
    %v1935 = vpack.c.b16 %v1389, %v1383
    %v1936 = vpack.c.b16 %v1390, %v1384
    %v1937 = vpack.c.b16 %v1391, %v1385
    %v1938 = vpack.c.b16 %v1392, %v1386
    %v1939 = vpack.c.b16 %v1393, %v1387
    %v1940 = vpack.c.b16 %v1394, %v1388
    %v1941 = vpack.c.b16 %v1401, %v1395
    %v1942 = vpack.c.b16 %v1402, %v1396
    %v1943 = vpack.c.b16 %v1403, %v1397
    %v1944 = vpack.c.b16 %v1404, %v1398
    %v1945 = vpack.c.b16 %v1405, %v1399
    %v1946 = vpack.c.b16 %v1406, %v1400
    %v1947 = vpack.c.b16 %v1413, %v1407
    %v1948 = vpack.c.b16 %v1414, %v1408
    %v1949 = vpack.c.b16 %v1415, %v1409
    %v1950 = vpack.c.b16 %v1416, %v1410
    %v1951 = vpack.c.b16 %v1417, %v1411
    %v1952 = vpack.c.b16 %v1418, %v1412
    %v1953 = vpack.c.b16 %v1425, %v1419
    %v1954 = vpack.c.b16 %v1426, %v1420
    %v1955 = vpack.c.b16 %v1427, %v1421
    %v1956 = vpack.c.b16 %v1428, %v1422
    %v1957 = vpack.c.b16 %v1429, %v1423
    %v1958 = vpack.c.b16 %v1430, %v1424
    %v1959 = vpack.c.b16 %v1437, %v1431
    %v1960 = vpack.c.b16 %v1438, %v1432
    %v1961 = vpack.c.b16 %v1439, %v1433
    %v1962 = vpack.c.b16 %v1440, %v1434
    %v1963 = vpack.c.b16 %v1441, %v1435
    %v1964 = vpack.c.b16 %v1442, %v1436
    %v1965 = vpack.c.b16 %v1449, %v1443
    %v1966 = vpack.c.b16 %v1450, %v1444
    %v1967 = vpack.c.b16 %v1451, %v1445
    %v1968 = vpack.c.b16 %v1452, %v1446
    %v1969 = vpack.c.b16 %v1453, %v1447
    %v1970 = vpack.c.b16 %v1454, %v1448
    %v1971 = vpack.c.b16 %v1461, %v1455
    %v1972 = vpack.c.b16 %v1462, %v1456
    %v1973 = vpack.c.b16 %v1463, %v1457
    %v1974 = vpack.c.b16 %v1464, %v1458
    %v1975 = vpack.c.b16 %v1465, %v1459
    %v1976 = vpack.c.b16 %v1466, %v1460
    %v1977 = vpack.c.b16 %v1473, %v1467
    %v1978 = vpack.c.b16 %v1474, %v1468
    %v1979 = vpack.c.b16 %v1475, %v1469
    %v1980 = vpack.c.b16 %v1476, %v1470
    %v1981 = vpack.c.b16 %v1477, %v1471
    %v1982 = vpack.c.b16 %v1478, %v1472
    %v1983 = vpack.c.b16 %v1485, %v1479
    %v1984 = vpack.c.b16 %v1486, %v1480
    %v1985 = vpack.c.b16 %v1487, %v1481
    %v1986 = vpack.c.b16 %v1488, %v1482
    %v1987 = vpack.c.b16 %v1489, %v1483
    %v1988 = vpack.c.b16 %v1490, %v1484
    %v1989 = vpack.c.b16 %v1497, %v1491
    %v1990 = vpack.c.b16 %v1498, %v1492
    %v1991 = vpack.c.b16 %v1499, %v1493
    %v1992 = vpack.c.b16 %v1500, %v1494
    %v1993 = vpack.c.b16 %v1501, %v1495
    %v1994 = vpack.c.b16 %v1502, %v1496
    %v1995 = vpack.c.b16 %v1509, %v1503
    %v1996 = vpack.c.b16 %v1510, %v1504
    %v1997 = vpack.c.b16 %v1511, %v1505
    %v1998 = vpack.c.b16 %v1512, %v1506
    %v1999 = vpack.c.b16 %v1513, %v1507
    %v2000 = vpack.c.b16 %v1514, %v1508
    %v2001 = vpack.c.b16 %v1521, %v1515
    %v2002 = vpack.c.b16 %v1522, %v1516
    %v2003 = vpack.c.b16 %v1523, %v1517
    %v2004 = vpack.c.b16 %v1524, %v1518
    %v2005 = vpack.c.b16 %v1525, %v1519
    %v2006 = vpack.c.b16 %v1526, %v1520
    %v2007 = vpack.c.b16 %v1533, %v1527
    %v2008 = vpack.c.b16 %v1534, %v1528
    %v2009 = vpack.c.b16 %v1535, %v1529
    %v2010 = vpack.c.b16 %v1536, %v1530
    %v2011 = vpack.c.b16 %v1537, %v1531
    %v2012 = vpack.c.b16 %v1538, %v1532
    %v2013 = vpack.c.b16 %v1545, %v1539
    %v2014 = vpack.c.b16 %v1546, %v1540
    %v2015 = vpack.c.b16 %v1547, %v1541
    %v2016 = vpack.c.b16 %v1548, %v1542
    %v2017 = vpack.c.b16 %v1549, %v1543
    %v2018 = vpack.c.b16 %v1550, %v1544
    %v2019 = vpack.c.b16 %v1557, %v1551
    %v2020 = vpack.c.b16 %v1558, %v1552
    %v2021 = vpack.c.b16 %v1559, %v1553
    %v2022 = vpack.c.b16 %v1560, %v1554
    %v2023 = vpack.c.b16 %v1561, %v1555
    %v2024 = vpack.c.b16 %v1562, %v1556
    %v2025 = vpack.c.b16 %v1569, %v1563
    %v2026 = vpack.c.b16 %v1570, %v1564
    %v2027 = vpack.c.b16 %v1571, %v1565
    %v2028 = vpack.c.b16 %v1572, %v1566
    %v2029 = vpack.c.b16 %v1573, %v1567
    %v2030 = vpack.c.b16 %v1574, %v1568
    %v2031 = vpack.c.b16 %v1581, %v1575
    %v2032 = vpack.c.b16 %v1582, %v1576
    %v2033 = vpack.c.b16 %v1583, %v1577
    %v2034 = vpack.c.b16 %v1584, %v1578
    %v2035 = vpack.c.b16 %v1585, %v1579
    %v2036 = vpack.c.b16 %v1586, %v1580
    %v2037 = vpack.c.b16 %v1593, %v1587
    %v2038 = vpack.c.b16 %v1594, %v1588
    %v2039 = vpack.c.b16 %v1595, %v1589
    %v2040 = vpack.c.b16 %v1596, %v1590
    %v2041 = vpack.c.b16 %v1597, %v1591
    %v2042 = vpack.c.b16 %v1598, %v1592
    %v2043 = vpack.c.b16 %v1605, %v1599
    %v2044 = vpack.c.b16 %v1606, %v1600
    %v2045 = vpack.c.b16 %v1607, %v1601
    %v2046 = vpack.c.b16 %v1608, %v1602
    %v2047 = vpack.c.b16 %v1609, %v1603
    %v2048 = vpack.c.b16 %v1610, %v1604
    %v2049 = vpack.c.b16 %v1617, %v1611
    %v2050 = vpack.c.b16 %v1618, %v1612
    %v2051 = vpack.c.b16 %v1619, %v1613
    %v2052 = vpack.c.b16 %v1620, %v1614
    %v2053 = vpack.c.b16 %v1621, %v1615
    %v2054 = vpack.c.b16 %v1622, %v1616
    %v2055 = vpack.c.b16 %v1629, %v1623
    %v2056 = vpack.c.b16 %v1630, %v1624
    %v2057 = vpack.c.b16 %v1631, %v1625
    %v2058 = vpack.c.b16 %v1632, %v1626
    %v2059 = vpack.c.b16 %v1633, %v1627
    %v2060 = vpack.c.b16 %v1634, %v1628
    %v2061 = vpack.c.b16 %v1641, %v1635
    %v2062 = vpack.c.b16 %v1642, %v1636
    %v2063 = vpack.c.b16 %v1643, %v1637
    %v2064 = vpack.c.b16 %v1644, %v1638
    %v2065 = vpack.c.b16 %v1645, %v1639
    %v2066 = vpack.c.b16 %v1646, %v1640
    %v2067 = vpack.c.b16 %v1653, %v1647
    %v2068 = vpack.c.b16 %v1654, %v1648
    %v2069 = vpack.c.b16 %v1655, %v1649
    %v2070 = vpack.c.b16 %v1656, %v1650
    %v2071 = vpack.c.b16 %v1657, %v1651
    %v2072 = vpack.c.b16 %v1658, %v1652
    %v2073 = vpack.c.b16 %v1665, %v1659
    %v2074 = vpack.c.b16 %v1666, %v1660
    %v2075 = vpack.c.b16 %v1667, %v1661
    %v2076 = vpack.c.b16 %v1668, %v1662
    %v2077 = vpack.c.b16 %v1669, %v1663
    %v2078 = vpack.c.b16 %v1670, %v1664
    %v2079 = vpack.c.b16 %v1677, %v1671
    %v2080 = vpack.c.b16 %v1678, %v1672
    %v2081 = vpack.c.b16 %v1679, %v1673
    %v2082 = vpack.c.b16 %v1680, %v1674
    %v2083 = vpack.c.b16 %v1681, %v1675
    %v2084 = vpack.c.b16 %v1682, %v1676
    %v2085 = vpack.c.b16 %v1689, %v1683
    %v2086 = vpack.c.b16 %v1690, %v1684
    %v2087 = vpack.c.b16 %v1691, %v1685
    %v2088 = vpack.c.b16 %v1692, %v1686
    %v2089 = vpack.c.b16 %v1693, %v1687
    %v2090 = vpack.c.b16 %v1694, %v1688
    %v2091 = vpack.c.b16 %v1701, %v1695
    %v2092 = vpack.c.b16 %v1702, %v1696
    %v2093 = vpack.c.b16 %v1703, %v1697
    %v2094 = vpack.c.b16 %v1704, %v1698
    %v2095 = vpack.c.b16 %v1705, %v1699
    %v2096 = vpack.c.b16 %v1706, %v1700
    %v2097 = vpack.c.b16 %v1713, %v1707
    %v2098 = vpack.c.b16 %v1714, %v1708
    %v2099 = vpack.c.b16 %v1715, %v1709
    %v2100 = vpack.c.b16 %v1716, %v1710
    %v2101 = vpack.c.b16 %v1717, %v1711
    %v2102 = vpack.c.b16 %v1718, %v1712
    %2487 = vmatprep.subr.bf16.mxu0 %v1720
    %2488 = vmatpush1.bf16.msra.mxu0 %v1719
    %2489 = vmatprep.subr.bf16.mxu0 %v1726
    %2490 = vmatpush1.bf16.msra.mxu0 %v1725
    %2491 = vmatprep.subr.bf16.mxu0 %v1732
    %2492 = vmatpush1.bf16.msra.mxu0 %v1731
    %2493 = vmatprep.subr.bf16.mxu0 %v1738
    %2494 = vmatpush1.bf16.msra.mxu0 %v1737
    %2495 = vmatprep.subr.bf16.mxu0 %v1744
    %2496 = vmatpush1.bf16.msra.mxu0 %v1743
    %2497 = vmatprep.subr.bf16.mxu0 %v1750
    %2498 = vmatpush1.bf16.msra.mxu0 %v1749
    %2499 = vmatprep.subr.bf16.mxu0 %v1756
    %2500 = vmatpush1.bf16.msra.mxu0 %v1755
    %2501 = vmatprep.subr.bf16.mxu0 %v1762
    %2502 = vmatpush1.bf16.msra.mxu0 %v1761
    %2503 = vmatprep.subr.bf16.mxu0 %v1768
    %2504 = vmatpush1.bf16.msra.mxu0 %v1767
    %2505 = vmatprep.subr.bf16.mxu0 %v1774
    %2506 = vmatpush1.bf16.msra.mxu0 %v1773
    %2507 = vmatprep.subr.bf16.mxu0 %v1780
    %2508 = vmatpush1.bf16.msra.mxu0 %v1779
    %2509 = vmatprep.subr.bf16.mxu0 %v1786
    %2510 = vmatpush1.bf16.msra.mxu0 %v1785
    %2511 = vmatprep.subr.bf16.mxu0 %v1792
    %2512 = vmatpush1.bf16.msra.mxu0 %v1791
    %2513 = vmatprep.subr.bf16.mxu0 %v1798
    %2514 = vmatpush1.bf16.msra.mxu0 %v1797
    %2515 = vmatprep.subr.bf16.mxu0 %v1804
    %2516 = vmatpush1.bf16.msra.mxu0 %v1803
    %2517 = vmatprep.subr.bf16.mxu0 %v1810
    %2518 = vmatpush1.bf16.msra.mxu0 %v1809
    %2519 = vmatprep.mubr.bf16.mxu0 %v552
    %2520 = vmatmul.mubr.bf16.gmra.mrb[0].mxu0 %v551
    %v2521 = vpop.f32.mrb[0].mxu0
    %v2522 = vadd.f32 %v512, %v2521
    %v2523 = vpop.f32.mrb[0].mxu0
    %v2524 = vadd.f32 %v516, %v2523
    %v2525 = vpop.f32.mrb[0].mxu0
    %v2526 = vpop.f32.mrb[0].mxu0
    %2527 = vdwg.mxu0
    %2528 = vmatprep.subr.bf16.mxu0 %v1816
    %2529 = vmatpush1.bf16.msra.mxu0 %v1815
    %2530 = vmatprep.subr.bf16.mxu0 %v1822
    %2531 = vmatpush1.bf16.msra.mxu0 %v1821
    %2532 = vmatprep.subr.bf16.mxu0 %v1828
    %2533 = vmatpush1.bf16.msra.mxu0 %v1827
    %2534 = vmatprep.subr.bf16.mxu0 %v1834
    %2535 = vmatpush1.bf16.msra.mxu0 %v1833
    %2536 = vmatprep.subr.bf16.mxu0 %v1840
    %2537 = vmatpush1.bf16.msra.mxu0 %v1839
    %2538 = vmatprep.subr.bf16.mxu0 %v1846
    %2539 = vmatpush1.bf16.msra.mxu0 %v1845
    %2540 = vmatprep.subr.bf16.mxu0 %v1852
    %2541 = vmatpush1.bf16.msra.mxu0 %v1851
    %2542 = vmatprep.subr.bf16.mxu0 %v1858
    %2543 = vmatpush1.bf16.msra.mxu0 %v1857
    %2544 = vmatprep.subr.bf16.mxu0 %v1864
    %2545 = vmatpush1.bf16.msra.mxu0 %v1863
    %2546 = vmatprep.subr.bf16.mxu0 %v1870
    %2547 = vmatpush1.bf16.msra.mxu0 %v1869
    %2548 = vmatprep.subr.bf16.mxu0 %v1876
    %2549 = vmatpush1.bf16.msra.mxu0 %v1875
    %2550 = vmatprep.subr.bf16.mxu0 %v1882
    %2551 = vmatpush1.bf16.msra.mxu0 %v1881
    %2552 = vmatprep.subr.bf16.mxu0 %v1888
    %2553 = vmatpush1.bf16.msra.mxu0 %v1887
    %2554 = vmatprep.subr.bf16.mxu0 %v1894
    %2555 = vmatpush1.bf16.msra.mxu0 %v1893
    %2556 = vmatprep.subr.bf16.mxu0 %v1900
    %2557 = vmatpush1.bf16.msra.mxu0 %v1899
    %2558 = vmatprep.subr.bf16.mxu0 %v1906
    %2559 = vmatpush1.bf16.msra.mxu0 %v1905
    %2560 = vmatprep.mubr.bf16.mxu0 %v554
    %2561 = vmatmul.mubr.bf16.gmra.mrb[0].mxu0 %v553
    %v2562 = vpop.f32.mrb[0].mxu0
    %v2563 = vadd.f32 %v2522, %v2562
    %v2564 = vpop.f32.mrb[0].mxu0
    %v2565 = vadd.f32 %v2524, %v2564
    %v2566 = vpop.f32.mrb[0].mxu0
    %v2567 = vpop.f32.mrb[0].mxu0
    %2568 = vdwg.mxu0
    %2569 = vmatprep.subr.bf16.mxu0 %v1912
    %2570 = vmatpush1.bf16.msra.mxu0 %v1911
    %2571 = vmatprep.subr.bf16.mxu0 %v1918
    %2572 = vmatpush1.bf16.msra.mxu0 %v1917
    %2573 = vmatprep.subr.bf16.mxu0 %v1924
    %2574 = vmatpush1.bf16.msra.mxu0 %v1923
    %2575 = vmatprep.subr.bf16.mxu0 %v1930
    %2576 = vmatpush1.bf16.msra.mxu0 %v1929
    %2577 = vmatprep.subr.bf16.mxu0 %v1936
    %2578 = vmatpush1.bf16.msra.mxu0 %v1935
    %2579 = vmatprep.subr.bf16.mxu0 %v1942
    %2580 = vmatpush1.bf16.msra.mxu0 %v1941
    %2581 = vmatprep.subr.bf16.mxu0 %v1948
    %2582 = vmatpush1.bf16.msra.mxu0 %v1947
    %2583 = vmatprep.subr.bf16.mxu0 %v1954
    %2584 = vmatpush1.bf16.msra.mxu0 %v1953
    %2585 = vmatprep.subr.bf16.mxu0 %v1960
    %2586 = vmatpush1.bf16.msra.mxu0 %v1959
    %2587 = vmatprep.subr.bf16.mxu0 %v1966
    %2588 = vmatpush1.bf16.msra.mxu0 %v1965
    %2589 = vmatprep.subr.bf16.mxu0 %v1972
    %2590 = vmatpush1.bf16.msra.mxu0 %v1971
    %2591 = vmatprep.subr.bf16.mxu0 %v1978
    %2592 = vmatpush1.bf16.msra.mxu0 %v1977
    %2593 = vmatprep.subr.bf16.mxu0 %v1984
    %2594 = vmatpush1.bf16.msra.mxu0 %v1983
    %2595 = vmatprep.subr.bf16.mxu0 %v1990
    %2596 = vmatpush1.bf16.msra.mxu0 %v1989
    %2597 = vmatprep.subr.bf16.mxu0 %v1996
    %2598 = vmatpush1.bf16.msra.mxu0 %v1995
    %2599 = vmatprep.subr.bf16.mxu0 %v2002
    %2600 = vmatpush1.bf16.msra.mxu0 %v2001
    %2601 = vmatprep.mubr.bf16.mxu0 %v556
    %2602 = vmatmul.mubr.bf16.gmra.mrb[0].mxu0 %v555
    %v2603 = vpop.f32.mrb[0].mxu0
    %v2604 = vadd.f32 %v2563, %v2603
    %v2605 = vpop.f32.mrb[0].mxu0
    %v2606 = vadd.f32 %v2565, %v2605
    %v2607 = vpop.f32.mrb[0].mxu0
    %v2608 = vpop.f32.mrb[0].mxu0
    %2609 = vdwg.mxu0
    %2610 = vmatprep.subr.bf16.mxu0 %v2008
    %2611 = vmatpush1.bf16.msra.mxu0 %v2007
    %2612 = vmatprep.subr.bf16.mxu0 %v2014
    %2613 = vmatpush1.bf16.msra.mxu0 %v2013
    %2614 = vmatprep.subr.bf16.mxu0 %v2020
    %2615 = vmatpush1.bf16.msra.mxu0 %v2019
    %2616 = vmatprep.subr.bf16.mxu0 %v2026
    %2617 = vmatpush1.bf16.msra.mxu0 %v2025
    %2618 = vmatprep.subr.bf16.mxu0 %v2032
    %2619 = vmatpush1.bf16.msra.mxu0 %v2031
    %2620 = vmatprep.subr.bf16.mxu0 %v2038
    %2621 = vmatpush1.bf16.msra.mxu0 %v2037
    %2622 = vmatprep.subr.bf16.mxu0 %v2044
    %2623 = vmatpush1.bf16.msra.mxu0 %v2043
    %2624 = vmatprep.subr.bf16.mxu0 %v2050
    %2625 = vmatpush1.bf16.msra.mxu0 %v2049
    %2626 = vmatprep.subr.bf16.mxu0 %v2056
    %2627 = vmatpush1.bf16.msra.mxu0 %v2055
    %2628 = vmatprep.subr.bf16.mxu0 %v2062
    %2629 = vmatpush1.bf16.msra.mxu0 %v2061
    %2630 = vmatprep.subr.bf16.mxu0 %v2068
    %2631 = vmatpush1.bf16.msra.mxu0 %v2067
    %2632 = vmatprep.subr.bf16.mxu0 %v2074
    %2633 = vmatpush1.bf16.msra.mxu0 %v2073
    %2634 = vmatprep.subr.bf16.mxu0 %v2080
    %2635 = vmatpush1.bf16.msra.mxu0 %v2079
    %2636 = vmatprep.subr.bf16.mxu0 %v2086
    %2637 = vmatpush1.bf16.msra.mxu0 %v2085
    %2638 = vmatprep.subr.bf16.mxu0 %v2092
    %2639 = vmatpush1.bf16.msra.mxu0 %v2091
    %2640 = vmatprep.subr.bf16.mxu0 %v2098
    %2641 = vmatpush1.bf16.msra.mxu0 %v2097
    %2642 = vmatprep.mubr.bf16.mxu0 %v558
    %2643 = vmatmul.mubr.bf16.gmra.mrb[0].mxu0 %v557
    %v2644 = vpop.f32.mrb[0].mxu0
    %v2645 = vadd.f32 %v2604, %v2644
    %v2646 = vpop.f32.mrb[0].mxu0
    %v2647 = vadd.f32 %v2606, %v2646
    %v2648 = vpop.f32.mrb[0].mxu0
    %v2649 = vpop.f32.mrb[0].mxu0
    %2650 = vdwg.mxu0
    %2651 = vmatprep.subr.bf16.mxu0 %v1722
    %2652 = vmatpush1.bf16.msra.mxu0 %v1721
    %2653 = vmatprep.subr.bf16.mxu0 %v1728
    %2654 = vmatpush1.bf16.msra.mxu0 %v1727
    %2655 = vmatprep.subr.bf16.mxu0 %v1734
    %2656 = vmatpush1.bf16.msra.mxu0 %v1733
    %2657 = vmatprep.subr.bf16.mxu0 %v1740
    %2658 = vmatpush1.bf16.msra.mxu0 %v1739
    %2659 = vmatprep.subr.bf16.mxu0 %v1746
    %2660 = vmatpush1.bf16.msra.mxu0 %v1745
    %2661 = vmatprep.subr.bf16.mxu0 %v1752
    %2662 = vmatpush1.bf16.msra.mxu0 %v1751
    %2663 = vmatprep.subr.bf16.mxu0 %v1758
    %2664 = vmatpush1.bf16.msra.mxu0 %v1757
    %2665 = vmatprep.subr.bf16.mxu0 %v1764
    %2666 = vmatpush1.bf16.msra.mxu0 %v1763
    %2667 = vmatprep.subr.bf16.mxu0 %v1770
    %2668 = vmatpush1.bf16.msra.mxu0 %v1769
    %2669 = vmatprep.subr.bf16.mxu0 %v1776
    %2670 = vmatpush1.bf16.msra.mxu0 %v1775
    %2671 = vmatprep.subr.bf16.mxu0 %v1782
    %2672 = vmatpush1.bf16.msra.mxu0 %v1781
    %2673 = vmatprep.subr.bf16.mxu0 %v1788
    %2674 = vmatpush1.bf16.msra.mxu0 %v1787
    %2675 = vmatprep.subr.bf16.mxu0 %v1794
    %2676 = vmatpush1.bf16.msra.mxu0 %v1793
    %2677 = vmatprep.subr.bf16.mxu0 %v1800
    %2678 = vmatpush1.bf16.msra.mxu0 %v1799
    %2679 = vmatprep.subr.bf16.mxu0 %v1806
    %2680 = vmatpush1.bf16.msra.mxu0 %v1805
    %2681 = vmatprep.subr.bf16.mxu0 %v1812
    %2682 = vmatpush1.bf16.msra.mxu0 %v1811
    %2683 = vmatprep.mubr.bf16.mxu0 %v552
    %2684 = vmatmul.mubr.bf16.gmra.mrb[0].mxu0 %v551
    %v2685 = vpop.f32.mrb[0].mxu0
    %v2686 = vadd.f32 %v520, %v2685
    %v2687 = vpop.f32.mrb[0].mxu0
    %v2688 = vadd.f32 %v524, %v2687
    %v2689 = vpop.f32.mrb[0].mxu0
    %v2690 = vpop.f32.mrb[0].mxu0
    %2691 = vdwg.mxu0
    %2692 = vmatprep.subr.bf16.mxu0 %v1818
    %2693 = vmatpush1.bf16.msra.mxu0 %v1817
    %2694 = vmatprep.subr.bf16.mxu0 %v1824
    %2695 = vmatpush1.bf16.msra.mxu0 %v1823
    %2696 = vmatprep.subr.bf16.mxu0 %v1830
    %2697 = vmatpush1.bf16.msra.mxu0 %v1829
    %2698 = vmatprep.subr.bf16.mxu0 %v1836
    %2699 = vmatpush1.bf16.msra.mxu0 %v1835
    %2700 = vmatprep.subr.bf16.mxu0 %v1842
    %2701 = vmatpush1.bf16.msra.mxu0 %v1841
    %2702 = vmatprep.subr.bf16.mxu0 %v1848
    %2703 = vmatpush1.bf16.msra.mxu0 %v1847
    %2704 = vmatprep.subr.bf16.mxu0 %v1854
    %2705 = vmatpush1.bf16.msra.mxu0 %v1853
    %2706 = vmatprep.subr.bf16.mxu0 %v1860
    %2707 = vmatpush1.bf16.msra.mxu0 %v1859
    %2708 = vmatprep.subr.bf16.mxu0 %v1866
    %2709 = vmatpush1.bf16.msra.mxu0 %v1865
    %2710 = vmatprep.subr.bf16.mxu0 %v1872
    %2711 = vmatpush1.bf16.msra.mxu0 %v1871
    %2712 = vmatprep.subr.bf16.mxu0 %v1878
    %2713 = vmatpush1.bf16.msra.mxu0 %v1877
    %2714 = vmatprep.subr.bf16.mxu0 %v1884
    %2715 = vmatpush1.bf16.msra.mxu0 %v1883
    %2716 = vmatprep.subr.bf16.mxu0 %v1890
    %2717 = vmatpush1.bf16.msra.mxu0 %v1889
    %2718 = vmatprep.subr.bf16.mxu0 %v1896
    %2719 = vmatpush1.bf16.msra.mxu0 %v1895
    %2720 = vmatprep.subr.bf16.mxu0 %v1902
    %2721 = vmatpush1.bf16.msra.mxu0 %v1901
    %2722 = vmatprep.subr.bf16.mxu0 %v1908
    %2723 = vmatpush1.bf16.msra.mxu0 %v1907
    %2724 = vmatprep.mubr.bf16.mxu0 %v554
    %2725 = vmatmul.mubr.bf16.gmra.mrb[0].mxu0 %v553
    %v2726 = vpop.f32.mrb[0].mxu0
    %v2727 = vadd.f32 %v2686, %v2726
    %v2728 = vpop.f32.mrb[0].mxu0
    %v2729 = vadd.f32 %v2688, %v2728
    %v2730 = vpop.f32.mrb[0].mxu0
    %v2731 = vpop.f32.mrb[0].mxu0
    %2732 = vdwg.mxu0
    %2733 = vmatprep.subr.bf16.mxu0 %v1914
    %2734 = vmatpush1.bf16.msra.mxu0 %v1913
    %2735 = vmatprep.subr.bf16.mxu0 %v1920
    %2736 = vmatpush1.bf16.msra.mxu0 %v1919
    %2737 = vmatprep.subr.bf16.mxu0 %v1926
    %2738 = vmatpush1.bf16.msra.mxu0 %v1925
    %2739 = vmatprep.subr.bf16.mxu0 %v1932
    %2740 = vmatpush1.bf16.msra.mxu0 %v1931
    %2741 = vmatprep.subr.bf16.mxu0 %v1938
    %2742 = vmatpush1.bf16.msra.mxu0 %v1937
    %2743 = vmatprep.subr.bf16.mxu0 %v1944
    %2744 = vmatpush1.bf16.msra.mxu0 %v1943
    %2745 = vmatprep.subr.bf16.mxu0 %v1950
    %2746 = vmatpush1.bf16.msra.mxu0 %v1949
    %2747 = vmatprep.subr.bf16.mxu0 %v1956
    %2748 = vmatpush1.bf16.msra.mxu0 %v1955
    %2749 = vmatprep.subr.bf16.mxu0 %v1962
    %2750 = vmatpush1.bf16.msra.mxu0 %v1961
    %2751 = vmatprep.subr.bf16.mxu0 %v1968
    %2752 = vmatpush1.bf16.msra.mxu0 %v1967
    %2753 = vmatprep.subr.bf16.mxu0 %v1974
    %2754 = vmatpush1.bf16.msra.mxu0 %v1973
    %2755 = vmatprep.subr.bf16.mxu0 %v1980
    %2756 = vmatpush1.bf16.msra.mxu0 %v1979
    %2757 = vmatprep.subr.bf16.mxu0 %v1986
    %2758 = vmatpush1.bf16.msra.mxu0 %v1985
    %2759 = vmatprep.subr.bf16.mxu0 %v1992
    %2760 = vmatpush1.bf16.msra.mxu0 %v1991
    %2761 = vmatprep.subr.bf16.mxu0 %v1998
    %2762 = vmatpush1.bf16.msra.mxu0 %v1997
    %2763 = vmatprep.subr.bf16.mxu0 %v2004
    %2764 = vmatpush1.bf16.msra.mxu0 %v2003
    %2765 = vmatprep.mubr.bf16.mxu0 %v556
    %2766 = vmatmul.mubr.bf16.gmra.mrb[0].mxu0 %v555
    %v2767 = vpop.f32.mrb[0].mxu0
    %v2768 = vadd.f32 %v2727, %v2767
    %v2769 = vpop.f32.mrb[0].mxu0
    %v2770 = vadd.f32 %v2729, %v2769
    %v2771 = vpop.f32.mrb[0].mxu0
    %v2772 = vpop.f32.mrb[0].mxu0
    %2773 = vdwg.mxu0
    %2774 = vmatprep.subr.bf16.mxu0 %v2010
    %2775 = vmatpush1.bf16.msra.mxu0 %v2009
    %2776 = vmatprep.subr.bf16.mxu0 %v2016
    %2777 = vmatpush1.bf16.msra.mxu0 %v2015
    %2778 = vmatprep.subr.bf16.mxu0 %v2022
    %2779 = vmatpush1.bf16.msra.mxu0 %v2021
    %2780 = vmatprep.subr.bf16.mxu0 %v2028
    %2781 = vmatpush1.bf16.msra.mxu0 %v2027
    %2782 = vmatprep.subr.bf16.mxu0 %v2034
    %2783 = vmatpush1.bf16.msra.mxu0 %v2033
    %2784 = vmatprep.subr.bf16.mxu0 %v2040
    %2785 = vmatpush1.bf16.msra.mxu0 %v2039
    %2786 = vmatprep.subr.bf16.mxu0 %v2046
    %2787 = vmatpush1.bf16.msra.mxu0 %v2045
    %2788 = vmatprep.subr.bf16.mxu0 %v2052
    %2789 = vmatpush1.bf16.msra.mxu0 %v2051
    %2790 = vmatprep.subr.bf16.mxu0 %v2058
    %2791 = vmatpush1.bf16.msra.mxu0 %v2057
    %2792 = vmatprep.subr.bf16.mxu0 %v2064
    %2793 = vmatpush1.bf16.msra.mxu0 %v2063
    %2794 = vmatprep.subr.bf16.mxu0 %v2070
    %2795 = vmatpush1.bf16.msra.mxu0 %v2069
    %2796 = vmatprep.subr.bf16.mxu0 %v2076
    %2797 = vmatpush1.bf16.msra.mxu0 %v2075
    %2798 = vmatprep.subr.bf16.mxu0 %v2082
    %2799 = vmatpush1.bf16.msra.mxu0 %v2081
    %2800 = vmatprep.subr.bf16.mxu0 %v2088
    %2801 = vmatpush1.bf16.msra.mxu0 %v2087
    %2802 = vmatprep.subr.bf16.mxu0 %v2094
    %2803 = vmatpush1.bf16.msra.mxu0 %v2093
    %2804 = vmatprep.subr.bf16.mxu0 %v2100
    %2805 = vmatpush1.bf16.msra.mxu0 %v2099
    %2806 = vmatprep.mubr.bf16.mxu0 %v558
    %2807 = vmatmul.mubr.bf16.gmra.mrb[0].mxu0 %v557
    %v2808 = vpop.f32.mrb[0].mxu0
    %v2809 = vadd.f32 %v2768, %v2808
    %v2810 = vpop.f32.mrb[0].mxu0
    %v2811 = vadd.f32 %v2770, %v2810
    %v2812 = vpop.f32.mrb[0].mxu0
    %v2813 = vpop.f32.mrb[0].mxu0
    %2814 = vdwg.mxu0
    %2815 = vmatprep.subr.bf16.mxu0 %v1724
    %2816 = vmatpush1.bf16.msra.mxu0 %v1723
    %2817 = vmatprep.subr.bf16.mxu0 %v1730
    %2818 = vmatpush1.bf16.msra.mxu0 %v1729
    %2819 = vmatprep.subr.bf16.mxu0 %v1736
    %2820 = vmatpush1.bf16.msra.mxu0 %v1735
    %2821 = vmatprep.subr.bf16.mxu0 %v1742
    %2822 = vmatpush1.bf16.msra.mxu0 %v1741
    %2823 = vmatprep.subr.bf16.mxu0 %v1748
    %2824 = vmatpush1.bf16.msra.mxu0 %v1747
    %2825 = vmatprep.subr.bf16.mxu0 %v1754
    %2826 = vmatpush1.bf16.msra.mxu0 %v1753
    %2827 = vmatprep.subr.bf16.mxu0 %v1760
    %2828 = vmatpush1.bf16.msra.mxu0 %v1759
    %2829 = vmatprep.subr.bf16.mxu0 %v1766
    %2830 = vmatpush1.bf16.msra.mxu0 %v1765
    %2831 = vmatprep.subr.bf16.mxu0 %v1772
    %2832 = vmatpush1.bf16.msra.mxu0 %v1771
    %2833 = vmatprep.subr.bf16.mxu0 %v1778
    %2834 = vmatpush1.bf16.msra.mxu0 %v1777
    %2835 = vmatprep.subr.bf16.mxu0 %v1784
    %2836 = vmatpush1.bf16.msra.mxu0 %v1783
    %2837 = vmatprep.subr.bf16.mxu0 %v1790
    %2838 = vmatpush1.bf16.msra.mxu0 %v1789
    %2839 = vmatprep.subr.bf16.mxu0 %v1796
    %2840 = vmatpush1.bf16.msra.mxu0 %v1795
    %2841 = vmatprep.subr.bf16.mxu0 %v1802
    %2842 = vmatpush1.bf16.msra.mxu0 %v1801
    %2843 = vmatprep.subr.bf16.mxu0 %v1808
    %2844 = vmatpush1.bf16.msra.mxu0 %v1807
    %2845 = vmatprep.subr.bf16.mxu0 %v1814
    %2846 = vmatpush1.bf16.msra.mxu0 %v1813
    %2847 = vmatprep.mubr.bf16.mxu0 %v552
    %2848 = vmatmul.mubr.bf16.gmra.mrb[0].mxu0 %v551
    %v2849 = vpop.f32.mrb[0].mxu0
    %v2850 = vadd.f32 %v528, %v2849
    %v2851 = vpop.f32.mrb[0].mxu0
    %v2852 = vadd.f32 %v532, %v2851
    %v2853 = vpop.f32.mrb[0].mxu0
    %v2854 = vpop.f32.mrb[0].mxu0
    %2855 = vdwg.mxu0
    %2856 = vmatprep.subr.bf16.mxu0 %v1820
    %2857 = vmatpush1.bf16.msra.mxu0 %v1819
    %2858 = vmatprep.subr.bf16.mxu0 %v1826
    %2859 = vmatpush1.bf16.msra.mxu0 %v1825
    %2860 = vmatprep.subr.bf16.mxu0 %v1832
    %2861 = vmatpush1.bf16.msra.mxu0 %v1831
    %2862 = vmatprep.subr.bf16.mxu0 %v1838
    %2863 = vmatpush1.bf16.msra.mxu0 %v1837
    %2864 = vmatprep.subr.bf16.mxu0 %v1844
    %2865 = vmatpush1.bf16.msra.mxu0 %v1843
    %2866 = vmatprep.subr.bf16.mxu0 %v1850
    %2867 = vmatpush1.bf16.msra.mxu0 %v1849
    %2868 = vmatprep.subr.bf16.mxu0 %v1856
    %2869 = vmatpush1.bf16.msra.mxu0 %v1855
    %2870 = vmatprep.subr.bf16.mxu0 %v1862
    %2871 = vmatpush1.bf16.msra.mxu0 %v1861
    %2872 = vmatprep.subr.bf16.mxu0 %v1868
    %2873 = vmatpush1.bf16.msra.mxu0 %v1867
    %2874 = vmatprep.subr.bf16.mxu0 %v1874
    %2875 = vmatpush1.bf16.msra.mxu0 %v1873
    %2876 = vmatprep.subr.bf16.mxu0 %v1880
    %2877 = vmatpush1.bf16.msra.mxu0 %v1879
    %2878 = vmatprep.subr.bf16.mxu0 %v1886
    %2879 = vmatpush1.bf16.msra.mxu0 %v1885
    %2880 = vmatprep.subr.bf16.mxu0 %v1892
    %2881 = vmatpush1.bf16.msra.mxu0 %v1891
    %2882 = vmatprep.subr.bf16.mxu0 %v1898
    %2883 = vmatpush1.bf16.msra.mxu0 %v1897
    %2884 = vmatprep.subr.bf16.mxu0 %v1904
    %2885 = vmatpush1.bf16.msra.mxu0 %v1903
    %2886 = vmatprep.subr.bf16.mxu0 %v1910
    %2887 = vmatpush1.bf16.msra.mxu0 %v1909
    %2888 = vmatprep.mubr.bf16.mxu0 %v554
    %2889 = vmatmul.mubr.bf16.gmra.mrb[0].mxu0 %v553
    %v2890 = vpop.f32.mrb[0].mxu0
    %v2891 = vadd.f32 %v2850, %v2890
    %v2892 = vpop.f32.mrb[0].mxu0
    %v2893 = vadd.f32 %v2852, %v2892
    %v2894 = vpop.f32.mrb[0].mxu0
    %v2895 = vpop.f32.mrb[0].mxu0
    %2896 = vdwg.mxu0
    %2897 = vmatprep.subr.bf16.mxu0 %v1916
    %2898 = vmatpush1.bf16.msra.mxu0 %v1915
    %2899 = vmatprep.subr.bf16.mxu0 %v1922
    %2900 = vmatpush1.bf16.msra.mxu0 %v1921
    %2901 = vmatprep.subr.bf16.mxu0 %v1928
    %2902 = vmatpush1.bf16.msra.mxu0 %v1927
    %2903 = vmatprep.subr.bf16.mxu0 %v1934
    %2904 = vmatpush1.bf16.msra.mxu0 %v1933
    %2905 = vmatprep.subr.bf16.mxu0 %v1940
    %2906 = vmatpush1.bf16.msra.mxu0 %v1939
    %2907 = vmatprep.subr.bf16.mxu0 %v1946
    %2908 = vmatpush1.bf16.msra.mxu0 %v1945
    %2909 = vmatprep.subr.bf16.mxu0 %v1952
    %2910 = vmatpush1.bf16.msra.mxu0 %v1951
    %2911 = vmatprep.subr.bf16.mxu0 %v1958
    %2912 = vmatpush1.bf16.msra.mxu0 %v1957
    %2913 = vmatprep.subr.bf16.mxu0 %v1964
    %2914 = vmatpush1.bf16.msra.mxu0 %v1963
    %2915 = vmatprep.subr.bf16.mxu0 %v1970
    %2916 = vmatpush1.bf16.msra.mxu0 %v1969
    %2917 = vmatprep.subr.bf16.mxu0 %v1976
    %2918 = vmatpush1.bf16.msra.mxu0 %v1975
    %2919 = vmatprep.subr.bf16.mxu0 %v1982
    %2920 = vmatpush1.bf16.msra.mxu0 %v1981
    %2921 = vmatprep.subr.bf16.mxu0 %v1988
    %2922 = vmatpush1.bf16.msra.mxu0 %v1987
    %2923 = vmatprep.subr.bf16.mxu0 %v1994
    %2924 = vmatpush1.bf16.msra.mxu0 %v1993
    %2925 = vmatprep.subr.bf16.mxu0 %v2000
    %2926 = vmatpush1.bf16.msra.mxu0 %v1999
    %2927 = vmatprep.subr.bf16.mxu0 %v2006
    %2928 = vmatpush1.bf16.msra.mxu0 %v2005
    %2929 = vmatprep.mubr.bf16.mxu0 %v556
    %2930 = vmatmul.mubr.bf16.gmra.mrb[0].mxu0 %v555
    %v2931 = vpop.f32.mrb[0].mxu0
    %v2932 = vadd.f32 %v2891, %v2931
    %v2933 = vpop.f32.mrb[0].mxu0
    %v2934 = vadd.f32 %v2893, %v2933
    %v2935 = vpop.f32.mrb[0].mxu0
    %v2936 = vpop.f32.mrb[0].mxu0
    %2937 = vdwg.mxu0
    %2938 = vmatprep.subr.bf16.mxu0 %v2012
    %2939 = vmatpush1.bf16.msra.mxu0 %v2011
    %2940 = vmatprep.subr.bf16.mxu0 %v2018
    %2941 = vmatpush1.bf16.msra.mxu0 %v2017
    %2942 = vmatprep.subr.bf16.mxu0 %v2024
    %2943 = vmatpush1.bf16.msra.mxu0 %v2023
    %2944 = vmatprep.subr.bf16.mxu0 %v2030
    %2945 = vmatpush1.bf16.msra.mxu0 %v2029
    %2946 = vmatprep.subr.bf16.mxu0 %v2036
    %2947 = vmatpush1.bf16.msra.mxu0 %v2035
    %2948 = vmatprep.subr.bf16.mxu0 %v2042
    %2949 = vmatpush1.bf16.msra.mxu0 %v2041
    %2950 = vmatprep.subr.bf16.mxu0 %v2048
    %2951 = vmatpush1.bf16.msra.mxu0 %v2047
    %2952 = vmatprep.subr.bf16.mxu0 %v2054
    %2953 = vmatpush1.bf16.msra.mxu0 %v2053
    %2954 = vmatprep.subr.bf16.mxu0 %v2060
    %2955 = vmatpush1.bf16.msra.mxu0 %v2059
    %2956 = vmatprep.subr.bf16.mxu0 %v2066
    %2957 = vmatpush1.bf16.msra.mxu0 %v2065
    %2958 = vmatprep.subr.bf16.mxu0 %v2072
    %2959 = vmatpush1.bf16.msra.mxu0 %v2071
    %2960 = vmatprep.subr.bf16.mxu0 %v2078
    %2961 = vmatpush1.bf16.msra.mxu0 %v2077
    %2962 = vmatprep.subr.bf16.mxu0 %v2084
    %2963 = vmatpush1.bf16.msra.mxu0 %v2083
    %2964 = vmatprep.subr.bf16.mxu0 %v2090
    %2965 = vmatpush1.bf16.msra.mxu0 %v2089
    %2966 = vmatprep.subr.bf16.mxu0 %v2096
    %2967 = vmatpush1.bf16.msra.mxu0 %v2095
    %2968 = vmatprep.subr.bf16.mxu0 %v2102
    %2969 = vmatpush1.bf16.msra.mxu0 %v2101
    %2970 = vmatprep.mubr.bf16.mxu0 %v558
    %2971 = vmatmul.mubr.bf16.gmra.mrb[0].mxu0 %v557
    %v2972 = vpop.f32.mrb[0].mxu0
    %v2973 = vadd.f32 %v2932, %v2972
    %v2974 = vpop.f32.mrb[0].mxu0
    %v2975 = vadd.f32 %v2934, %v2974
    %v2976 = vpop.f32.mrb[0].mxu0
    %v2977 = vpop.f32.mrb[0].mxu0
    %2978 = vdwg.mxu0
    %v2979 = vmax.f32 %v2645, 0.0
    %v2980 = vmax.f32 %v2647, 0.0
    %v2981 = vmax.f32 %v2809, 0.0
    %v2982 = vmax.f32 %v2811, 0.0
    %v2983 = vmax.f32 %v2973, 0.0
    %v2984 = vmax.f32 %v2975, 0.0
    %v2985 = vpack.c.bf16 %v2979, %v2979
    %v2986 = vpack.c.bf16 %v2980, %v2980
    %v2987 = vpack.c.bf16 %v2981, %v2981
    %v2988 = vpack.c.bf16 %v2982, %v2982
    %v2989 = vpack.c.bf16 %v2983, %v2983
    %v2990 = vpack.c.bf16 %v2984, %v2984
    %v2991 = vld [vmem:[#allocation7] sm:$0xff]
    %v2992 = vld [vmem:[#allocation7 + $0x8] sm:$0xff]
    %v2993 = vld [vmem:[#allocation7 + $0x10] sm:$0xff]
    %v2994 = vld [vmem:[#allocation7 + $0x18] sm:$0xff]
    %v2995 = vld [vmem:[#allocation7 + $0x20] sm:$0xff]
    %v2996 = vld [vmem:[#allocation7 + $0x28] sm:$0xff]
    %v2997 = vld [vmem:[#allocation7 + $0x30] sm:$0xff]
    %v2998 = vld [vmem:[#allocation7 + $0x38] sm:$0xff]
    %v2999 = vld [vmem:[#allocation7 + $0x40] sm:$0xff]
    %v3000 = vld [vmem:[#allocation7 + $0x48] sm:$0xff]
    %v3001 = vld [vmem:[#allocation7 + $0x50] sm:$0xff]
    %v3002 = vld [vmem:[#allocation7 + $0x58] sm:$0xff]
    %v3003 = vld [vmem:[#allocation7 + $0x60] sm:$0xff]
    %v3004 = vld [vmem:[#allocation7 + $0x68] sm:$0xff]
    %v3005 = vld [vmem:[#allocation7 + $0x70] sm:$0xff]
    %v3006 = vld [vmem:[#allocation7 + $0x78] sm:$0xff]
    %v3007 = vld [vmem:[#allocation7 + $0x80] sm:$0xff]
    %v3008 = vld [vmem:[#allocation7 + $0x88] sm:$0xff]
    %v3009 = vld [vmem:[#allocation7 + $0x90] sm:$0xff]
    %v3010 = vld [vmem:[#allocation7 + $0x98] sm:$0xff]
    %v3011 = vld [vmem:[#allocation7 + $0xa0] sm:$0xff]
    %v3012 = vld [vmem:[#allocation7 + $0xa8] sm:$0xff]
    %v3013 = vld [vmem:[#allocation7 + $0xb0] sm:$0xff]
    %v3014 = vld [vmem:[#allocation7 + $0xb8] sm:$0xff]
    %v3015 = vld [vmem:[#allocation7 + $0xc0] sm:$0xff]
    %v3016 = vld [vmem:[#allocation7 + $0xc8] sm:$0xff]
    %v3017 = vld [vmem:[#allocation7 + $0xd0] sm:$0xff]
    %v3018 = vld [vmem:[#allocation7 + $0xd8] sm:$0xff]
    %v3019 = vld [vmem:[#allocation7 + $0xe0] sm:$0xff]
    %v3020 = vld [vmem:[#allocation7 + $0xe8] sm:$0xff]
    %v3021 = vld [vmem:[#allocation7 + $0xf0] sm:$0xff]
    %v3022 = vld [vmem:[#allocation7 + $0xf8] sm:$0xff]
    %v3023 = vld [vmem:[#allocation7 + $0x100] sm:$0xff]
    %v3024 = vld [vmem:[#allocation7 + $0x108] sm:$0xff]
    %v3025 = vld [vmem:[#allocation7 + $0x110] sm:$0xff]
    %v3026 = vld [vmem:[#allocation7 + $0x118] sm:$0xff]
    %v3027 = vld [vmem:[#allocation7 + $0x120] sm:$0xff]
    %v3028 = vld [vmem:[#allocation7 + $0x128] sm:$0xff]
    %v3029 = vld [vmem:[#allocation7 + $0x130] sm:$0xff]
    %v3030 = vld [vmem:[#allocation7 + $0x138] sm:$0xff]
    %v3031 = vld [vmem:[#allocation7 + $0x140] sm:$0xff]
    %v3032 = vld [vmem:[#allocation7 + $0x148] sm:$0xff]
    %v3033 = vld [vmem:[#allocation7 + $0x150] sm:$0xff]
    %v3034 = vld [vmem:[#allocation7 + $0x158] sm:$0xff]
    %v3035 = vld [vmem:[#allocation7 + $0x160] sm:$0xff]
    %v3036 = vld [vmem:[#allocation7 + $0x168] sm:$0xff]
    %v3037 = vld [vmem:[#allocation7 + $0x170] sm:$0xff]
    %v3038 = vld [vmem:[#allocation7 + $0x178] sm:$0xff]
    %v3039 = vld [vmem:[#allocation7 + $0x180] sm:$0xff]
    %v3040 = vld [vmem:[#allocation7 + $0x188] sm:$0xff]
    %v3041 = vld [vmem:[#allocation7 + $0x190] sm:$0xff]
    %v3042 = vld [vmem:[#allocation7 + $0x198] sm:$0xff]
    %v3043 = vld [vmem:[#allocation7 + $0x1a0] sm:$0xff]
    %v3044 = vld [vmem:[#allocation7 + $0x1a8] sm:$0xff]
    %v3045 = vld [vmem:[#allocation7 + $0x1b0] sm:$0xff]
    %v3046 = vld [vmem:[#allocation7 + $0x1b8] sm:$0xff]
    %v3047 = vld [vmem:[#allocation7 + $0x1c0] sm:$0xff]
    %v3048 = vld [vmem:[#allocation7 + $0x1c8] sm:$0xff]
    %v3049 = vld [vmem:[#allocation7 + $0x1d0] sm:$0xff]
    %v3050 = vld [vmem:[#allocation7 + $0x1d8] sm:$0xff]
    %v3051 = vld [vmem:[#allocation7 + $0x1e0] sm:$0xff]
    %v3052 = vld [vmem:[#allocation7 + $0x1e8] sm:$0xff]
    %v3053 = vld [vmem:[#allocation7 + $0x1f0] sm:$0xff]
    %v3054 = vld [vmem:[#allocation7 + $0x1f8] sm:$0xff]
    %v3055 = vld [vmem:[#allocation7 + $0x200] sm:$0xff]
    %v3056 = vld [vmem:[#allocation7 + $0x208] sm:$0xff]
    %v3057 = vld [vmem:[#allocation7 + $0x210] sm:$0xff]
    %v3058 = vld [vmem:[#allocation7 + $0x218] sm:$0xff]
    %v3059 = vld [vmem:[#allocation7 + $0x220] sm:$0xff]
    %v3060 = vld [vmem:[#allocation7 + $0x228] sm:$0xff]
    %v3061 = vld [vmem:[#allocation7 + $0x230] sm:$0xff]
    %v3062 = vld [vmem:[#allocation7 + $0x238] sm:$0xff]
    %v3063 = vld [vmem:[#allocation7 + $0x240] sm:$0xff]
    %v3064 = vld [vmem:[#allocation7 + $0x248] sm:$0xff]
    %v3065 = vld [vmem:[#allocation7 + $0x250] sm:$0xff]
    %v3066 = vld [vmem:[#allocation7 + $0x258] sm:$0xff]
    %v3067 = vld [vmem:[#allocation7 + $0x260] sm:$0xff]
    %v3068 = vld [vmem:[#allocation7 + $0x268] sm:$0xff]
    %v3069 = vld [vmem:[#allocation7 + $0x270] sm:$0xff]
    %v3070 = vld [vmem:[#allocation7 + $0x278] sm:$0xff]
    %v3071 = vld [vmem:[#allocation7 + $0x280] sm:$0xff]
    %v3072 = vld [vmem:[#allocation7 + $0x288] sm:$0xff]
    %v3073 = vld [vmem:[#allocation7 + $0x290] sm:$0xff]
    %v3074 = vld [vmem:[#allocation7 + $0x298] sm:$0xff]
    %v3075 = vld [vmem:[#allocation7 + $0x2a0] sm:$0xff]
    %v3076 = vld [vmem:[#allocation7 + $0x2a8] sm:$0xff]
    %v3077 = vld [vmem:[#allocation7 + $0x2b0] sm:$0xff]
    %v3078 = vld [vmem:[#allocation7 + $0x2b8] sm:$0xff]
    %v3079 = vld [vmem:[#allocation7 + $0x2c0] sm:$0xff]
    %v3080 = vld [vmem:[#allocation7 + $0x2c8] sm:$0xff]
    %v3081 = vld [vmem:[#allocation7 + $0x2d0] sm:$0xff]
    %v3082 = vld [vmem:[#allocation7 + $0x2d8] sm:$0xff]
    %v3083 = vld [vmem:[#allocation7 + $0x2e0] sm:$0xff]
    %v3084 = vld [vmem:[#allocation7 + $0x2e8] sm:$0xff]
    %v3085 = vld [vmem:[#allocation7 + $0x2f0] sm:$0xff]
    %v3086 = vld [vmem:[#allocation7 + $0x2f8] sm:$0xff]
    %v3087 = vld [vmem:[#allocation7 + $0x300] sm:$0xff]
    %v3088 = vld [vmem:[#allocation7 + $0x308] sm:$0xff]
    %v3089 = vld [vmem:[#allocation7 + $0x310] sm:$0xff]
    %v3090 = vld [vmem:[#allocation7 + $0x318] sm:$0xff]
    %v3091 = vld [vmem:[#allocation7 + $0x320] sm:$0xff]
    %v3092 = vld [vmem:[#allocation7 + $0x328] sm:$0xff]
    %v3093 = vld [vmem:[#allocation7 + $0x330] sm:$0xff]
    %v3094 = vld [vmem:[#allocation7 + $0x338] sm:$0xff]
    %v3095 = vld [vmem:[#allocation7 + $0x340] sm:$0xff]
    %v3096 = vld [vmem:[#allocation7 + $0x348] sm:$0xff]
    %v3097 = vld [vmem:[#allocation7 + $0x350] sm:$0xff]
    %v3098 = vld [vmem:[#allocation7 + $0x358] sm:$0xff]
    %v3099 = vld [vmem:[#allocation7 + $0x360] sm:$0xff]
    %v3100 = vld [vmem:[#allocation7 + $0x368] sm:$0xff]
    %v3101 = vld [vmem:[#allocation7 + $0x370] sm:$0xff]
    %v3102 = vld [vmem:[#allocation7 + $0x378] sm:$0xff]
    %v3103 = vld [vmem:[#allocation7 + $0x380] sm:$0xff]
    %v3104 = vld [vmem:[#allocation7 + $0x388] sm:$0xff]
    %v3105 = vld [vmem:[#allocation7 + $0x390] sm:$0xff]
    %v3106 = vld [vmem:[#allocation7 + $0x398] sm:$0xff]
    %v3107 = vld [vmem:[#allocation7 + $0x3a0] sm:$0xff]
    %v3108 = vld [vmem:[#allocation7 + $0x3a8] sm:$0xff]
    %v3109 = vld [vmem:[#allocation7 + $0x3b0] sm:$0xff]
    %v3110 = vld [vmem:[#allocation7 + $0x3b8] sm:$0xff]
    %v3111 = vld [vmem:[#allocation7 + $0x3c0] sm:$0xff]
    %v3112 = vld [vmem:[#allocation7 + $0x3c8] sm:$0xff]
    %v3113 = vld [vmem:[#allocation7 + $0x3d0] sm:$0xff]
    %v3114 = vld [vmem:[#allocation7 + $0x3d8] sm:$0xff]
    %v3115 = vld [vmem:[#allocation7 + $0x3e0] sm:$0xff]
    %v3116 = vld [vmem:[#allocation7 + $0x3e8] sm:$0xff]
    %v3117 = vld [vmem:[#allocation7 + $0x3f0] sm:$0xff]
    %v3118 = vld [vmem:[#allocation7 + $0x3f8] sm:$0xff]
    %v3119 = vld [vmem:[#allocation7 + $0x400] sm:$0xff]
    %v3120 = vld [vmem:[#allocation7 + $0x408] sm:$0xff]
    %v3121 = vld [vmem:[#allocation7 + $0x410] sm:$0xff]
    %v3122 = vld [vmem:[#allocation7 + $0x418] sm:$0xff]
    %v3123 = vld [vmem:[#allocation7 + $0x420] sm:$0xff]
    %v3124 = vld [vmem:[#allocation7 + $0x428] sm:$0xff]
    %v3125 = vld [vmem:[#allocation7 + $0x430] sm:$0xff]
    %v3126 = vld [vmem:[#allocation7 + $0x438] sm:$0xff]
    %v3127 = vld [vmem:[#allocation7 + $0x440] sm:$0xff]
    %v3128 = vld [vmem:[#allocation7 + $0x448] sm:$0xff]
    %v3129 = vld [vmem:[#allocation7 + $0x450] sm:$0xff]
    %v3130 = vld [vmem:[#allocation7 + $0x458] sm:$0xff]
    %v3131 = vld [vmem:[#allocation7 + $0x460] sm:$0xff]
    %v3132 = vld [vmem:[#allocation7 + $0x468] sm:$0xff]
    %v3133 = vld [vmem:[#allocation7 + $0x470] sm:$0xff]
    %v3134 = vld [vmem:[#allocation7 + $0x478] sm:$0xff]
    %v3135 = vld [vmem:[#allocation7 + $0x480] sm:$0xff]
    %v3136 = vld [vmem:[#allocation7 + $0x488] sm:$0xff]
    %v3137 = vld [vmem:[#allocation7 + $0x490] sm:$0xff]
    %v3138 = vld [vmem:[#allocation7 + $0x498] sm:$0xff]
    %v3139 = vld [vmem:[#allocation7 + $0x4a0] sm:$0xff]
    %v3140 = vld [vmem:[#allocation7 + $0x4a8] sm:$0xff]
    %v3141 = vld [vmem:[#allocation7 + $0x4b0] sm:$0xff]
    %v3142 = vld [vmem:[#allocation7 + $0x4b8] sm:$0xff]
    %v3143 = vld [vmem:[#allocation7 + $0x4c0] sm:$0xff]
    %v3144 = vld [vmem:[#allocation7 + $0x4c8] sm:$0xff]
    %v3145 = vld [vmem:[#allocation7 + $0x4d0] sm:$0xff]
    %v3146 = vld [vmem:[#allocation7 + $0x4d8] sm:$0xff]
    %v3147 = vld [vmem:[#allocation7 + $0x4e0] sm:$0xff]
    %v3148 = vld [vmem:[#allocation7 + $0x4e8] sm:$0xff]
    %v3149 = vld [vmem:[#allocation7 + $0x4f0] sm:$0xff]
    %v3150 = vld [vmem:[#allocation7 + $0x4f8] sm:$0xff]
    %v3151 = vld [vmem:[#allocation7 + $0x500] sm:$0xff]
    %v3152 = vld [vmem:[#allocation7 + $0x508] sm:$0xff]
    %v3153 = vld [vmem:[#allocation7 + $0x510] sm:$0xff]
    %v3154 = vld [vmem:[#allocation7 + $0x518] sm:$0xff]
    %v3155 = vld [vmem:[#allocation7 + $0x520] sm:$0xff]
    %v3156 = vld [vmem:[#allocation7 + $0x528] sm:$0xff]
    %v3157 = vld [vmem:[#allocation7 + $0x530] sm:$0xff]
    %v3158 = vld [vmem:[#allocation7 + $0x538] sm:$0xff]
    %v3159 = vld [vmem:[#allocation7 + $0x540] sm:$0xff]
    %v3160 = vld [vmem:[#allocation7 + $0x548] sm:$0xff]
    %v3161 = vld [vmem:[#allocation7 + $0x550] sm:$0xff]
    %v3162 = vld [vmem:[#allocation7 + $0x558] sm:$0xff]
    %v3163 = vld [vmem:[#allocation7 + $0x560] sm:$0xff]
    %v3164 = vld [vmem:[#allocation7 + $0x568] sm:$0xff]
    %v3165 = vld [vmem:[#allocation7 + $0x570] sm:$0xff]
    %v3166 = vld [vmem:[#allocation7 + $0x578] sm:$0xff]
    %v3167 = vld [vmem:[#allocation7 + $0x580] sm:$0xff]
    %v3168 = vld [vmem:[#allocation7 + $0x588] sm:$0xff]
    %v3169 = vld [vmem:[#allocation7 + $0x590] sm:$0xff]
    %v3170 = vld [vmem:[#allocation7 + $0x598] sm:$0xff]
    %v3171 = vld [vmem:[#allocation7 + $0x5a0] sm:$0xff]
    %v3172 = vld [vmem:[#allocation7 + $0x5a8] sm:$0xff]
    %v3173 = vld [vmem:[#allocation7 + $0x5b0] sm:$0xff]
    %v3174 = vld [vmem:[#allocation7 + $0x5b8] sm:$0xff]
    %v3175 = vld [vmem:[#allocation7 + $0x5c0] sm:$0xff]
    %v3176 = vld [vmem:[#allocation7 + $0x5c8] sm:$0xff]
    %v3177 = vld [vmem:[#allocation7 + $0x5d0] sm:$0xff]
    %v3178 = vld [vmem:[#allocation7 + $0x5d8] sm:$0xff]
    %v3179 = vld [vmem:[#allocation7 + $0x5e0] sm:$0xff]
    %v3180 = vld [vmem:[#allocation7 + $0x5e8] sm:$0xff]
    %v3181 = vld [vmem:[#allocation7 + $0x5f0] sm:$0xff]
    %v3182 = vld [vmem:[#allocation7 + $0x5f8] sm:$0xff]
    %v3183 = vld [vmem:[#allocation13 + $0x6] sm:$0xf]
    %v3185 = vlaneseq
    %v3186 = vshrl.u32 %v3185, 7
    %v3187 = vsub.s32 0, %v3186
    %v3188 = vrot.slane %v3183, %v3187
    %v3189 = vlaneseq
    %v3190 = vshrl.u32 %v3189, 7
    %v3191 = vsub.s32 1, %v3190
    %v3192 = vrot.slane %v3183, %v3191
    %v3193 = vlaneseq
    %v3194 = vshrl.u32 %v3193, 7
    %v3195 = vsub.s32 2, %v3194
    %v3196 = vrot.slane %v3183, %v3195
    %v3197 = vlaneseq
    %v3198 = vshrl.u32 %v3197, 7
    %v3199 = vsub.s32 3, %v3198
    %v3200 = vrot.slane %v3183, %v3199
    %v3397 = vunpack.c.l.b16 %v2991
    %v3398 = vunpack.c.h.b16 %v2991
    %v3399 = vunpack.c.l.b16 %v2992
    %v3400 = vunpack.c.h.b16 %v2992
    %v3401 = vunpack.c.l.b16 %v2993
    %v3402 = vunpack.c.h.b16 %v2993
    %v3403 = vunpack.c.l.b16 %v2994
    %v3404 = vunpack.c.h.b16 %v2994
    %v3405 = vunpack.c.l.b16 %v2995
    %v3406 = vunpack.c.h.b16 %v2995
    %v3407 = vunpack.c.l.b16 %v2996
    %v3408 = vunpack.c.h.b16 %v2996
    %v3409 = vunpack.c.l.b16 %v2997
    %v3410 = vunpack.c.h.b16 %v2997
    %v3411 = vunpack.c.l.b16 %v2998
    %v3412 = vunpack.c.h.b16 %v2998
    %v3413 = vunpack.c.l.b16 %v2999
    %v3414 = vunpack.c.h.b16 %v2999
    %v3415 = vunpack.c.l.b16 %v3000
    %v3416 = vunpack.c.h.b16 %v3000
    %v3417 = vunpack.c.l.b16 %v3001
    %v3418 = vunpack.c.h.b16 %v3001
    %v3419 = vunpack.c.l.b16 %v3002
    %v3420 = vunpack.c.h.b16 %v3002
    %v3421 = vunpack.c.l.b16 %v3003
    %v3422 = vunpack.c.h.b16 %v3003
    %v3423 = vunpack.c.l.b16 %v3004
    %v3424 = vunpack.c.h.b16 %v3004
    %v3425 = vunpack.c.l.b16 %v3005
    %v3426 = vunpack.c.h.b16 %v3005
    %v3427 = vunpack.c.l.b16 %v3006
    %v3428 = vunpack.c.h.b16 %v3006
    %v3429 = vunpack.c.l.b16 %v3007
    %v3430 = vunpack.c.h.b16 %v3007
    %v3431 = vunpack.c.l.b16 %v3008
    %v3432 = vunpack.c.h.b16 %v3008
    %v3433 = vunpack.c.l.b16 %v3009
    %v3434 = vunpack.c.h.b16 %v3009
    %v3435 = vunpack.c.l.b16 %v3010
    %v3436 = vunpack.c.h.b16 %v3010
    %v3437 = vunpack.c.l.b16 %v3011
    %v3438 = vunpack.c.h.b16 %v3011
    %v3439 = vunpack.c.l.b16 %v3012
    %v3440 = vunpack.c.h.b16 %v3012
    %v3441 = vunpack.c.l.b16 %v3013
    %v3442 = vunpack.c.h.b16 %v3013
    %v3443 = vunpack.c.l.b16 %v3014
    %v3444 = vunpack.c.h.b16 %v3014
    %v3445 = vunpack.c.l.b16 %v3015
    %v3446 = vunpack.c.h.b16 %v3015
    %v3447 = vunpack.c.l.b16 %v3016
    %v3448 = vunpack.c.h.b16 %v3016
    %v3449 = vunpack.c.l.b16 %v3017
    %v3450 = vunpack.c.h.b16 %v3017
    %v3451 = vunpack.c.l.b16 %v3018
    %v3452 = vunpack.c.h.b16 %v3018
    %v3453 = vunpack.c.l.b16 %v3019
    %v3454 = vunpack.c.h.b16 %v3019
    %v3455 = vunpack.c.l.b16 %v3020
    %v3456 = vunpack.c.h.b16 %v3020
    %v3457 = vunpack.c.l.b16 %v3021
    %v3458 = vunpack.c.h.b16 %v3021
    %v3459 = vunpack.c.l.b16 %v3022
    %v3460 = vunpack.c.h.b16 %v3022
    %v3461 = vunpack.c.l.b16 %v3023
    %v3462 = vunpack.c.h.b16 %v3023
    %v3463 = vunpack.c.l.b16 %v3024
    %v3464 = vunpack.c.h.b16 %v3024
    %v3465 = vunpack.c.l.b16 %v3025
    %v3466 = vunpack.c.h.b16 %v3025
    %v3467 = vunpack.c.l.b16 %v3026
    %v3468 = vunpack.c.h.b16 %v3026
    %v3469 = vunpack.c.l.b16 %v3027
    %v3470 = vunpack.c.h.b16 %v3027
    %v3471 = vunpack.c.l.b16 %v3028
    %v3472 = vunpack.c.h.b16 %v3028
    %v3473 = vunpack.c.l.b16 %v3029
    %v3474 = vunpack.c.h.b16 %v3029
    %v3475 = vunpack.c.l.b16 %v3030
    %v3476 = vunpack.c.h.b16 %v3030
    %v3477 = vunpack.c.l.b16 %v3031
    %v3478 = vunpack.c.h.b16 %v3031
    %v3479 = vunpack.c.l.b16 %v3032
    %v3480 = vunpack.c.h.b16 %v3032
    %v3481 = vunpack.c.l.b16 %v3033
    %v3482 = vunpack.c.h.b16 %v3033
    %v3483 = vunpack.c.l.b16 %v3034
    %v3484 = vunpack.c.h.b16 %v3034
    %v3485 = vunpack.c.l.b16 %v3035
    %v3486 = vunpack.c.h.b16 %v3035
    %v3487 = vunpack.c.l.b16 %v3036
    %v3488 = vunpack.c.h.b16 %v3036
    %v3489 = vunpack.c.l.b16 %v3037
    %v3490 = vunpack.c.h.b16 %v3037
    %v3491 = vunpack.c.l.b16 %v3038
    %v3492 = vunpack.c.h.b16 %v3038
    %v3493 = vunpack.c.l.b16 %v3039
    %v3494 = vunpack.c.h.b16 %v3039
    %v3495 = vunpack.c.l.b16 %v3040
    %v3496 = vunpack.c.h.b16 %v3040
    %v3497 = vunpack.c.l.b16 %v3041
    %v3498 = vunpack.c.h.b16 %v3041
    %v3499 = vunpack.c.l.b16 %v3042
    %v3500 = vunpack.c.h.b16 %v3042
    %v3501 = vunpack.c.l.b16 %v3043
    %v3502 = vunpack.c.h.b16 %v3043
    %v3503 = vunpack.c.l.b16 %v3044
    %v3504 = vunpack.c.h.b16 %v3044
    %v3505 = vunpack.c.l.b16 %v3045
    %v3506 = vunpack.c.h.b16 %v3045
    %v3507 = vunpack.c.l.b16 %v3046
    %v3508 = vunpack.c.h.b16 %v3046
    %v3509 = vunpack.c.l.b16 %v3047
    %v3510 = vunpack.c.h.b16 %v3047
    %v3511 = vunpack.c.l.b16 %v3048
    %v3512 = vunpack.c.h.b16 %v3048
    %v3513 = vunpack.c.l.b16 %v3049
    %v3514 = vunpack.c.h.b16 %v3049
    %v3515 = vunpack.c.l.b16 %v3050
    %v3516 = vunpack.c.h.b16 %v3050
    %v3517 = vunpack.c.l.b16 %v3051
    %v3518 = vunpack.c.h.b16 %v3051
    %v3519 = vunpack.c.l.b16 %v3052
    %v3520 = vunpack.c.h.b16 %v3052
    %v3521 = vunpack.c.l.b16 %v3053
    %v3522 = vunpack.c.h.b16 %v3053
    %v3523 = vunpack.c.l.b16 %v3054
    %v3524 = vunpack.c.h.b16 %v3054
    %v3525 = vunpack.c.l.b16 %v3055
    %v3526 = vunpack.c.h.b16 %v3055
    %v3527 = vunpack.c.l.b16 %v3056
    %v3528 = vunpack.c.h.b16 %v3056
    %v3529 = vunpack.c.l.b16 %v3057
    %v3530 = vunpack.c.h.b16 %v3057
    %v3531 = vunpack.c.l.b16 %v3058
    %v3532 = vunpack.c.h.b16 %v3058
    %v3533 = vunpack.c.l.b16 %v3059
    %v3534 = vunpack.c.h.b16 %v3059
    %v3535 = vunpack.c.l.b16 %v3060
    %v3536 = vunpack.c.h.b16 %v3060
    %v3537 = vunpack.c.l.b16 %v3061
    %v3538 = vunpack.c.h.b16 %v3061
    %v3539 = vunpack.c.l.b16 %v3062
    %v3540 = vunpack.c.h.b16 %v3062
    %v3541 = vunpack.c.l.b16 %v3063
    %v3542 = vunpack.c.h.b16 %v3063
    %v3543 = vunpack.c.l.b16 %v3064
    %v3544 = vunpack.c.h.b16 %v3064
    %v3545 = vunpack.c.l.b16 %v3065
    %v3546 = vunpack.c.h.b16 %v3065
    %v3547 = vunpack.c.l.b16 %v3066
    %v3548 = vunpack.c.h.b16 %v3066
    %v3549 = vunpack.c.l.b16 %v3067
    %v3550 = vunpack.c.h.b16 %v3067
    %v3551 = vunpack.c.l.b16 %v3068
    %v3552 = vunpack.c.h.b16 %v3068
    %v3553 = vunpack.c.l.b16 %v3069
    %v3554 = vunpack.c.h.b16 %v3069
    %v3555 = vunpack.c.l.b16 %v3070
    %v3556 = vunpack.c.h.b16 %v3070
    %v3557 = vunpack.c.l.b16 %v3071
    %v3558 = vunpack.c.h.b16 %v3071
    %v3559 = vunpack.c.l.b16 %v3072
    %v3560 = vunpack.c.h.b16 %v3072
    %v3561 = vunpack.c.l.b16 %v3073
    %v3562 = vunpack.c.h.b16 %v3073
    %v3563 = vunpack.c.l.b16 %v3074
    %v3564 = vunpack.c.h.b16 %v3074
    %v3565 = vunpack.c.l.b16 %v3075
    %v3566 = vunpack.c.h.b16 %v3075
    %v3567 = vunpack.c.l.b16 %v3076
    %v3568 = vunpack.c.h.b16 %v3076
    %v3569 = vunpack.c.l.b16 %v3077
    %v3570 = vunpack.c.h.b16 %v3077
    %v3571 = vunpack.c.l.b16 %v3078
    %v3572 = vunpack.c.h.b16 %v3078
    %v3573 = vunpack.c.l.b16 %v3079
    %v3574 = vunpack.c.h.b16 %v3079
    %v3575 = vunpack.c.l.b16 %v3080
    %v3576 = vunpack.c.h.b16 %v3080
    %v3577 = vunpack.c.l.b16 %v3081
    %v3578 = vunpack.c.h.b16 %v3081
    %v3579 = vunpack.c.l.b16 %v3082
    %v3580 = vunpack.c.h.b16 %v3082
    %v3581 = vunpack.c.l.b16 %v3083
    %v3582 = vunpack.c.h.b16 %v3083
    %v3583 = vunpack.c.l.b16 %v3084
    %v3584 = vunpack.c.h.b16 %v3084
    %v3585 = vunpack.c.l.b16 %v3085
    %v3586 = vunpack.c.h.b16 %v3085
    %v3587 = vunpack.c.l.b16 %v3086
    %v3588 = vunpack.c.h.b16 %v3086
    %v3589 = vunpack.c.l.b16 %v3087
    %v3590 = vunpack.c.h.b16 %v3087
    %v3591 = vunpack.c.l.b16 %v3088
    %v3592 = vunpack.c.h.b16 %v3088
    %v3593 = vunpack.c.l.b16 %v3089
    %v3594 = vunpack.c.h.b16 %v3089
    %v3595 = vunpack.c.l.b16 %v3090
    %v3596 = vunpack.c.h.b16 %v3090
    %v3597 = vunpack.c.l.b16 %v3091
    %v3598 = vunpack.c.h.b16 %v3091
    %v3599 = vunpack.c.l.b16 %v3092
    %v3600 = vunpack.c.h.b16 %v3092
    %v3601 = vunpack.c.l.b16 %v3093
    %v3602 = vunpack.c.h.b16 %v3093
    %v3603 = vunpack.c.l.b16 %v3094
    %v3604 = vunpack.c.h.b16 %v3094
    %v3605 = vunpack.c.l.b16 %v3095
    %v3606 = vunpack.c.h.b16 %v3095
    %v3607 = vunpack.c.l.b16 %v3096
    %v3608 = vunpack.c.h.b16 %v3096
    %v3609 = vunpack.c.l.b16 %v3097
    %v3610 = vunpack.c.h.b16 %v3097
    %v3611 = vunpack.c.l.b16 %v3098
    %v3612 = vunpack.c.h.b16 %v3098
    %v3613 = vunpack.c.l.b16 %v3099
    %v3614 = vunpack.c.h.b16 %v3099
    %v3615 = vunpack.c.l.b16 %v3100
    %v3616 = vunpack.c.h.b16 %v3100
    %v3617 = vunpack.c.l.b16 %v3101
    %v3618 = vunpack.c.h.b16 %v3101
    %v3619 = vunpack.c.l.b16 %v3102
    %v3620 = vunpack.c.h.b16 %v3102
    %v3621 = vunpack.c.l.b16 %v3103
    %v3622 = vunpack.c.h.b16 %v3103
    %v3623 = vunpack.c.l.b16 %v3104
    %v3624 = vunpack.c.h.b16 %v3104
    %v3625 = vunpack.c.l.b16 %v3105
    %v3626 = vunpack.c.h.b16 %v3105
    %v3627 = vunpack.c.l.b16 %v3106
    %v3628 = vunpack.c.h.b16 %v3106
    %v3629 = vunpack.c.l.b16 %v3107
    %v3630 = vunpack.c.h.b16 %v3107
    %v3631 = vunpack.c.l.b16 %v3108
    %v3632 = vunpack.c.h.b16 %v3108
    %v3633 = vunpack.c.l.b16 %v3109
    %v3634 = vunpack.c.h.b16 %v3109
    %v3635 = vunpack.c.l.b16 %v3110
    %v3636 = vunpack.c.h.b16 %v3110
    %v3637 = vunpack.c.l.b16 %v3111
    %v3638 = vunpack.c.h.b16 %v3111
    %v3639 = vunpack.c.l.b16 %v3112
    %v3640 = vunpack.c.h.b16 %v3112
    %v3641 = vunpack.c.l.b16 %v3113
    %v3642 = vunpack.c.h.b16 %v3113
    %v3643 = vunpack.c.l.b16 %v3114
    %v3644 = vunpack.c.h.b16 %v3114
    %v3645 = vunpack.c.l.b16 %v3115
    %v3646 = vunpack.c.h.b16 %v3115
    %v3647 = vunpack.c.l.b16 %v3116
    %v3648 = vunpack.c.h.b16 %v3116
    %v3649 = vunpack.c.l.b16 %v3117
    %v3650 = vunpack.c.h.b16 %v3117
    %v3651 = vunpack.c.l.b16 %v3118
    %v3652 = vunpack.c.h.b16 %v3118
    %v3653 = vunpack.c.l.b16 %v3119
    %v3654 = vunpack.c.h.b16 %v3119
    %v3655 = vunpack.c.l.b16 %v3120
    %v3656 = vunpack.c.h.b16 %v3120
    %v3657 = vunpack.c.l.b16 %v3121
    %v3658 = vunpack.c.h.b16 %v3121
    %v3659 = vunpack.c.l.b16 %v3122
    %v3660 = vunpack.c.h.b16 %v3122
    %v3661 = vunpack.c.l.b16 %v3123
    %v3662 = vunpack.c.h.b16 %v3123
    %v3663 = vunpack.c.l.b16 %v3124
    %v3664 = vunpack.c.h.b16 %v3124
    %v3665 = vunpack.c.l.b16 %v3125
    %v3666 = vunpack.c.h.b16 %v3125
    %v3667 = vunpack.c.l.b16 %v3126
    %v3668 = vunpack.c.h.b16 %v3126
    %v3669 = vunpack.c.l.b16 %v3127
    %v3670 = vunpack.c.h.b16 %v3127
    %v3671 = vunpack.c.l.b16 %v3128
    %v3672 = vunpack.c.h.b16 %v3128
    %v3673 = vunpack.c.l.b16 %v3129
    %v3674 = vunpack.c.h.b16 %v3129
    %v3675 = vunpack.c.l.b16 %v3130
    %v3676 = vunpack.c.h.b16 %v3130
    %v3677 = vunpack.c.l.b16 %v3131
    %v3678 = vunpack.c.h.b16 %v3131
    %v3679 = vunpack.c.l.b16 %v3132
    %v3680 = vunpack.c.h.b16 %v3132
    %v3681 = vunpack.c.l.b16 %v3133
    %v3682 = vunpack.c.h.b16 %v3133
    %v3683 = vunpack.c.l.b16 %v3134
    %v3684 = vunpack.c.h.b16 %v3134
    %v3685 = vunpack.c.l.b16 %v3135
    %v3686 = vunpack.c.h.b16 %v3135
    %v3687 = vunpack.c.l.b16 %v3136
    %v3688 = vunpack.c.h.b16 %v3136
    %v3689 = vunpack.c.l.b16 %v3137
    %v3690 = vunpack.c.h.b16 %v3137
    %v3691 = vunpack.c.l.b16 %v3138
    %v3692 = vunpack.c.h.b16 %v3138
    %v3693 = vunpack.c.l.b16 %v3139
    %v3694 = vunpack.c.h.b16 %v3139
    %v3695 = vunpack.c.l.b16 %v3140
    %v3696 = vunpack.c.h.b16 %v3140
    %v3697 = vunpack.c.l.b16 %v3141
    %v3698 = vunpack.c.h.b16 %v3141
    %v3699 = vunpack.c.l.b16 %v3142
    %v3700 = vunpack.c.h.b16 %v3142
    %v3701 = vunpack.c.l.b16 %v3143
    %v3702 = vunpack.c.h.b16 %v3143
    %v3703 = vunpack.c.l.b16 %v3144
    %v3704 = vunpack.c.h.b16 %v3144
    %v3705 = vunpack.c.l.b16 %v3145
    %v3706 = vunpack.c.h.b16 %v3145
    %v3707 = vunpack.c.l.b16 %v3146
    %v3708 = vunpack.c.h.b16 %v3146
    %v3709 = vunpack.c.l.b16 %v3147
    %v3710 = vunpack.c.h.b16 %v3147
    %v3711 = vunpack.c.l.b16 %v3148
    %v3712 = vunpack.c.h.b16 %v3148
    %v3713 = vunpack.c.l.b16 %v3149
    %v3714 = vunpack.c.h.b16 %v3149
    %v3715 = vunpack.c.l.b16 %v3150
    %v3716 = vunpack.c.h.b16 %v3150
    %v3717 = vunpack.c.l.b16 %v3151
    %v3718 = vunpack.c.h.b16 %v3151
    %v3719 = vunpack.c.l.b16 %v3152
    %v3720 = vunpack.c.h.b16 %v3152
    %v3721 = vunpack.c.l.b16 %v3153
    %v3722 = vunpack.c.h.b16 %v3153
    %v3723 = vunpack.c.l.b16 %v3154
    %v3724 = vunpack.c.h.b16 %v3154
    %v3725 = vunpack.c.l.b16 %v3155
    %v3726 = vunpack.c.h.b16 %v3155
    %v3727 = vunpack.c.l.b16 %v3156
    %v3728 = vunpack.c.h.b16 %v3156
    %v3729 = vunpack.c.l.b16 %v3157
    %v3730 = vunpack.c.h.b16 %v3157
    %v3731 = vunpack.c.l.b16 %v3158
    %v3732 = vunpack.c.h.b16 %v3158
    %v3733 = vunpack.c.l.b16 %v3159
    %v3734 = vunpack.c.h.b16 %v3159
    %v3735 = vunpack.c.l.b16 %v3160
    %v3736 = vunpack.c.h.b16 %v3160
    %v3737 = vunpack.c.l.b16 %v3161
    %v3738 = vunpack.c.h.b16 %v3161
    %v3739 = vunpack.c.l.b16 %v3162
    %v3740 = vunpack.c.h.b16 %v3162
    %v3741 = vunpack.c.l.b16 %v3163
    %v3742 = vunpack.c.h.b16 %v3163
    %v3743 = vunpack.c.l.b16 %v3164
    %v3744 = vunpack.c.h.b16 %v3164
    %v3745 = vunpack.c.l.b16 %v3165
    %v3746 = vunpack.c.h.b16 %v3165
    %v3747 = vunpack.c.l.b16 %v3166
    %v3748 = vunpack.c.h.b16 %v3166
    %v3749 = vunpack.c.l.b16 %v3167
    %v3750 = vunpack.c.h.b16 %v3167
    %v3751 = vunpack.c.l.b16 %v3168
    %v3752 = vunpack.c.h.b16 %v3168
    %v3753 = vunpack.c.l.b16 %v3169
    %v3754 = vunpack.c.h.b16 %v3169
    %v3755 = vunpack.c.l.b16 %v3170
    %v3756 = vunpack.c.h.b16 %v3170
    %v3757 = vunpack.c.l.b16 %v3171
    %v3758 = vunpack.c.h.b16 %v3171
    %v3759 = vunpack.c.l.b16 %v3172
    %v3760 = vunpack.c.h.b16 %v3172
    %v3761 = vunpack.c.l.b16 %v3173
    %v3762 = vunpack.c.h.b16 %v3173
    %v3763 = vunpack.c.l.b16 %v3174
    %v3764 = vunpack.c.h.b16 %v3174
    %v3765 = vunpack.c.l.b16 %v3175
    %v3766 = vunpack.c.h.b16 %v3175
    %v3767 = vunpack.c.l.b16 %v3176
    %v3768 = vunpack.c.h.b16 %v3176
    %v3769 = vunpack.c.l.b16 %v3177
    %v3770 = vunpack.c.h.b16 %v3177
    %v3771 = vunpack.c.l.b16 %v3178
    %v3772 = vunpack.c.h.b16 %v3178
    %v3773 = vunpack.c.l.b16 %v3179
    %v3774 = vunpack.c.h.b16 %v3179
    %v3775 = vunpack.c.l.b16 %v3180
    %v3776 = vunpack.c.h.b16 %v3180
    %v3777 = vunpack.c.l.b16 %v3181
    %v3778 = vunpack.c.h.b16 %v3181
    %v3779 = vunpack.c.l.b16 %v3182
    %v3780 = vunpack.c.h.b16 %v3182
    %v3781 = vpack.c.b16 %v3401, %v3397
    %v3782 = vpack.c.b16 %v3402, %v3398
    %v3783 = vpack.c.b16 %v3403, %v3399
    %v3784 = vpack.c.b16 %v3404, %v3400
    %v3785 = vpack.c.b16 %v3409, %v3405
    %v3786 = vpack.c.b16 %v3410, %v3406
    %v3787 = vpack.c.b16 %v3411, %v3407
    %v3788 = vpack.c.b16 %v3412, %v3408
    %v3789 = vpack.c.b16 %v3417, %v3413
    %v3790 = vpack.c.b16 %v3418, %v3414
    %v3791 = vpack.c.b16 %v3419, %v3415
    %v3792 = vpack.c.b16 %v3420, %v3416
    %v3793 = vpack.c.b16 %v3425, %v3421
    %v3794 = vpack.c.b16 %v3426, %v3422
    %v3795 = vpack.c.b16 %v3427, %v3423
    %v3796 = vpack.c.b16 %v3428, %v3424
    %v3797 = vpack.c.b16 %v3433, %v3429
    %v3798 = vpack.c.b16 %v3434, %v3430
    %v3799 = vpack.c.b16 %v3435, %v3431
    %v3800 = vpack.c.b16 %v3436, %v3432
    %v3801 = vpack.c.b16 %v3441, %v3437
    %v3802 = vpack.c.b16 %v3442, %v3438
    %v3803 = vpack.c.b16 %v3443, %v3439
    %v3804 = vpack.c.b16 %v3444, %v3440
    %v3805 = vpack.c.b16 %v3449, %v3445
    %v3806 = vpack.c.b16 %v3450, %v3446
    %v3807 = vpack.c.b16 %v3451, %v3447
    %v3808 = vpack.c.b16 %v3452, %v3448
    %v3809 = vpack.c.b16 %v3457, %v3453
    %v3810 = vpack.c.b16 %v3458, %v3454
    %v3811 = vpack.c.b16 %v3459, %v3455
    %v3812 = vpack.c.b16 %v3460, %v3456
    %v3813 = vpack.c.b16 %v3465, %v3461
    %v3814 = vpack.c.b16 %v3466, %v3462
    %v3815 = vpack.c.b16 %v3467, %v3463
    %v3816 = vpack.c.b16 %v3468, %v3464
    %v3817 = vpack.c.b16 %v3473, %v3469
    %v3818 = vpack.c.b16 %v3474, %v3470
    %v3819 = vpack.c.b16 %v3475, %v3471
    %v3820 = vpack.c.b16 %v3476, %v3472
    %v3821 = vpack.c.b16 %v3481, %v3477
    %v3822 = vpack.c.b16 %v3482, %v3478
    %v3823 = vpack.c.b16 %v3483, %v3479
    %v3824 = vpack.c.b16 %v3484, %v3480
    %v3825 = vpack.c.b16 %v3489, %v3485
    %v3826 = vpack.c.b16 %v3490, %v3486
    %v3827 = vpack.c.b16 %v3491, %v3487
    %v3828 = vpack.c.b16 %v3492, %v3488
    %v3829 = vpack.c.b16 %v3497, %v3493
    %v3830 = vpack.c.b16 %v3498, %v3494
    %v3831 = vpack.c.b16 %v3499, %v3495
    %v3832 = vpack.c.b16 %v3500, %v3496
    %v3833 = vpack.c.b16 %v3505, %v3501
    %v3834 = vpack.c.b16 %v3506, %v3502
    %v3835 = vpack.c.b16 %v3507, %v3503
    %v3836 = vpack.c.b16 %v3508, %v3504
    %v3837 = vpack.c.b16 %v3513, %v3509
    %v3838 = vpack.c.b16 %v3514, %v3510
    %v3839 = vpack.c.b16 %v3515, %v3511
    %v3840 = vpack.c.b16 %v3516, %v3512
    %v3841 = vpack.c.b16 %v3521, %v3517
    %v3842 = vpack.c.b16 %v3522, %v3518
    %v3843 = vpack.c.b16 %v3523, %v3519
    %v3844 = vpack.c.b16 %v3524, %v3520
    %v3845 = vpack.c.b16 %v3529, %v3525
    %v3846 = vpack.c.b16 %v3530, %v3526
    %v3847 = vpack.c.b16 %v3531, %v3527
    %v3848 = vpack.c.b16 %v3532, %v3528
    %v3849 = vpack.c.b16 %v3537, %v3533
    %v3850 = vpack.c.b16 %v3538, %v3534
    %v3851 = vpack.c.b16 %v3539, %v3535
    %v3852 = vpack.c.b16 %v3540, %v3536
    %v3853 = vpack.c.b16 %v3545, %v3541
    %v3854 = vpack.c.b16 %v3546, %v3542
    %v3855 = vpack.c.b16 %v3547, %v3543
    %v3856 = vpack.c.b16 %v3548, %v3544
    %v3857 = vpack.c.b16 %v3553, %v3549
    %v3858 = vpack.c.b16 %v3554, %v3550
    %v3859 = vpack.c.b16 %v3555, %v3551
    %v3860 = vpack.c.b16 %v3556, %v3552
    %v3861 = vpack.c.b16 %v3561, %v3557
    %v3862 = vpack.c.b16 %v3562, %v3558
    %v3863 = vpack.c.b16 %v3563, %v3559
    %v3864 = vpack.c.b16 %v3564, %v3560
    %v3865 = vpack.c.b16 %v3569, %v3565
    %v3866 = vpack.c.b16 %v3570, %v3566
    %v3867 = vpack.c.b16 %v3571, %v3567
    %v3868 = vpack.c.b16 %v3572, %v3568
    %v3869 = vpack.c.b16 %v3577, %v3573
    %v3870 = vpack.c.b16 %v3578, %v3574
    %v3871 = vpack.c.b16 %v3579, %v3575
    %v3872 = vpack.c.b16 %v3580, %v3576
    %v3873 = vpack.c.b16 %v3585, %v3581
    %v3874 = vpack.c.b16 %v3586, %v3582
    %v3875 = vpack.c.b16 %v3587, %v3583
    %v3876 = vpack.c.b16 %v3588, %v3584
    %v3877 = vpack.c.b16 %v3593, %v3589
    %v3878 = vpack.c.b16 %v3594, %v3590
    %v3879 = vpack.c.b16 %v3595, %v3591
    %v3880 = vpack.c.b16 %v3596, %v3592
    %v3881 = vpack.c.b16 %v3601, %v3597
    %v3882 = vpack.c.b16 %v3602, %v3598
    %v3883 = vpack.c.b16 %v3603, %v3599
    %v3884 = vpack.c.b16 %v3604, %v3600
    %v3885 = vpack.c.b16 %v3609, %v3605
    %v3886 = vpack.c.b16 %v3610, %v3606
    %v3887 = vpack.c.b16 %v3611, %v3607
    %v3888 = vpack.c.b16 %v3612, %v3608
    %v3889 = vpack.c.b16 %v3617, %v3613
    %v3890 = vpack.c.b16 %v3618, %v3614
    %v3891 = vpack.c.b16 %v3619, %v3615
    %v3892 = vpack.c.b16 %v3620, %v3616
    %v3893 = vpack.c.b16 %v3625, %v3621
    %v3894 = vpack.c.b16 %v3626, %v3622
    %v3895 = vpack.c.b16 %v3627, %v3623
    %v3896 = vpack.c.b16 %v3628, %v3624
    %v3897 = vpack.c.b16 %v3633, %v3629
    %v3898 = vpack.c.b16 %v3634, %v3630
    %v3899 = vpack.c.b16 %v3635, %v3631
    %v3900 = vpack.c.b16 %v3636, %v3632
    %v3901 = vpack.c.b16 %v3641, %v3637
    %v3902 = vpack.c.b16 %v3642, %v3638
    %v3903 = vpack.c.b16 %v3643, %v3639
    %v3904 = vpack.c.b16 %v3644, %v3640
    %v3905 = vpack.c.b16 %v3649, %v3645
    %v3906 = vpack.c.b16 %v3650, %v3646
    %v3907 = vpack.c.b16 %v3651, %v3647
    %v3908 = vpack.c.b16 %v3652, %v3648
    %v3909 = vpack.c.b16 %v3657, %v3653
    %v3910 = vpack.c.b16 %v3658, %v3654
    %v3911 = vpack.c.b16 %v3659, %v3655
    %v3912 = vpack.c.b16 %v3660, %v3656
    %v3913 = vpack.c.b16 %v3665, %v3661
    %v3914 = vpack.c.b16 %v3666, %v3662
    %v3915 = vpack.c.b16 %v3667, %v3663
    %v3916 = vpack.c.b16 %v3668, %v3664
    %v3917 = vpack.c.b16 %v3673, %v3669
    %v3918 = vpack.c.b16 %v3674, %v3670
    %v3919 = vpack.c.b16 %v3675, %v3671
    %v3920 = vpack.c.b16 %v3676, %v3672
    %v3921 = vpack.c.b16 %v3681, %v3677
    %v3922 = vpack.c.b16 %v3682, %v3678
    %v3923 = vpack.c.b16 %v3683, %v3679
    %v3924 = vpack.c.b16 %v3684, %v3680
    %v3925 = vpack.c.b16 %v3689, %v3685
    %v3926 = vpack.c.b16 %v3690, %v3686
    %v3927 = vpack.c.b16 %v3691, %v3687
    %v3928 = vpack.c.b16 %v3692, %v3688
    %v3929 = vpack.c.b16 %v3697, %v3693
    %v3930 = vpack.c.b16 %v3698, %v3694
    %v3931 = vpack.c.b16 %v3699, %v3695
    %v3932 = vpack.c.b16 %v3700, %v3696
    %v3933 = vpack.c.b16 %v3705, %v3701
    %v3934 = vpack.c.b16 %v3706, %v3702
    %v3935 = vpack.c.b16 %v3707, %v3703
    %v3936 = vpack.c.b16 %v3708, %v3704
    %v3937 = vpack.c.b16 %v3713, %v3709
    %v3938 = vpack.c.b16 %v3714, %v3710
    %v3939 = vpack.c.b16 %v3715, %v3711
    %v3940 = vpack.c.b16 %v3716, %v3712
    %v3941 = vpack.c.b16 %v3721, %v3717
    %v3942 = vpack.c.b16 %v3722, %v3718
    %v3943 = vpack.c.b16 %v3723, %v3719
    %v3944 = vpack.c.b16 %v3724, %v3720
    %v3945 = vpack.c.b16 %v3729, %v3725
    %v3946 = vpack.c.b16 %v3730, %v3726
    %v3947 = vpack.c.b16 %v3731, %v3727
    %v3948 = vpack.c.b16 %v3732, %v3728
    %v3949 = vpack.c.b16 %v3737, %v3733
    %v3950 = vpack.c.b16 %v3738, %v3734
    %v3951 = vpack.c.b16 %v3739, %v3735
    %v3952 = vpack.c.b16 %v3740, %v3736
    %v3953 = vpack.c.b16 %v3745, %v3741
    %v3954 = vpack.c.b16 %v3746, %v3742
    %v3955 = vpack.c.b16 %v3747, %v3743
    %v3956 = vpack.c.b16 %v3748, %v3744
    %v3957 = vpack.c.b16 %v3753, %v3749
    %v3958 = vpack.c.b16 %v3754, %v3750
    %v3959 = vpack.c.b16 %v3755, %v3751
    %v3960 = vpack.c.b16 %v3756, %v3752
    %v3961 = vpack.c.b16 %v3761, %v3757
    %v3962 = vpack.c.b16 %v3762, %v3758
    %v3963 = vpack.c.b16 %v3763, %v3759
    %v3964 = vpack.c.b16 %v3764, %v3760
    %v3965 = vpack.c.b16 %v3769, %v3765
    %v3966 = vpack.c.b16 %v3770, %v3766
    %v3967 = vpack.c.b16 %v3771, %v3767
    %v3968 = vpack.c.b16 %v3772, %v3768
    %v3969 = vpack.c.b16 %v3777, %v3773
    %v3970 = vpack.c.b16 %v3778, %v3774
    %v3971 = vpack.c.b16 %v3779, %v3775
    %v3972 = vpack.c.b16 %v3780, %v3776
    %4165 = vmatprep.subr.bf16.mxu0 %v3782
    %4166 = vmatpush1.bf16.msra.mxu0 %v3781
    %4167 = vmatprep.subr.bf16.mxu0 %v3786
    %4168 = vmatpush1.bf16.msra.mxu0 %v3785
    %4169 = vmatprep.subr.bf16.mxu0 %v3790
    %4170 = vmatpush1.bf16.msra.mxu0 %v3789
    %4171 = vmatprep.subr.bf16.mxu0 %v3794
    %4172 = vmatpush1.bf16.msra.mxu0 %v3793
    %4173 = vmatprep.subr.bf16.mxu0 %v3798
    %4174 = vmatpush1.bf16.msra.mxu0 %v3797
    %4175 = vmatprep.subr.bf16.mxu0 %v3802
    %4176 = vmatpush1.bf16.msra.mxu0 %v3801
    %4177 = vmatprep.subr.bf16.mxu0 %v3806
    %4178 = vmatpush1.bf16.msra.mxu0 %v3805
    %4179 = vmatprep.subr.bf16.mxu0 %v3810
    %4180 = vmatpush1.bf16.msra.mxu0 %v3809
    %4181 = vmatprep.subr.bf16.mxu0 %v3814
    %4182 = vmatpush1.bf16.msra.mxu0 %v3813
    %4183 = vmatprep.subr.bf16.mxu0 %v3818
    %4184 = vmatpush1.bf16.msra.mxu0 %v3817
    %4185 = vmatprep.subr.bf16.mxu0 %v3822
    %4186 = vmatpush1.bf16.msra.mxu0 %v3821
    %4187 = vmatprep.subr.bf16.mxu0 %v3826
    %4188 = vmatpush1.bf16.msra.mxu0 %v3825
    %4189 = vmatprep.subr.bf16.mxu0 %v3830
    %4190 = vmatpush1.bf16.msra.mxu0 %v3829
    %4191 = vmatprep.subr.bf16.mxu0 %v3834
    %4192 = vmatpush1.bf16.msra.mxu0 %v3833
    %4193 = vmatprep.subr.bf16.mxu0 %v3838
    %4194 = vmatpush1.bf16.msra.mxu0 %v3837
    %4195 = vmatprep.subr.bf16.mxu0 %v3842
    %4196 = vmatpush1.bf16.msra.mxu0 %v3841
    %4197 = vmatprep.mubr.bf16.mxu0 %v2986
    %4198 = vmatmul.mubr.bf16.gmra.mrb[0].mxu0 %v2985
    %v4199 = vpop.f32.mrb[0].mxu0
    %v4200 = vadd.f32 %v3188, %v4199
    %v4201 = vpop.f32.mrb[0].mxu0
    %v4202 = vadd.f32 %v3192, %v4201
    %v4203 = vpop.f32.mrb[0].mxu0
    %v4204 = vpop.f32.mrb[0].mxu0
    %4205 = vdwg.mxu0
    %4206 = vmatprep.subr.bf16.mxu0 %v3846
    %4207 = vmatpush1.bf16.msra.mxu0 %v3845
    %4208 = vmatprep.subr.bf16.mxu0 %v3850
    %4209 = vmatpush1.bf16.msra.mxu0 %v3849
    %4210 = vmatprep.subr.bf16.mxu0 %v3854
    %4211 = vmatpush1.bf16.msra.mxu0 %v3853
    %4212 = vmatprep.subr.bf16.mxu0 %v3858
    %4213 = vmatpush1.bf16.msra.mxu0 %v3857
    %4214 = vmatprep.subr.bf16.mxu0 %v3862
    %4215 = vmatpush1.bf16.msra.mxu0 %v3861
    %4216 = vmatprep.subr.bf16.mxu0 %v3866
    %4217 = vmatpush1.bf16.msra.mxu0 %v3865
    %4218 = vmatprep.subr.bf16.mxu0 %v3870
    %4219 = vmatpush1.bf16.msra.mxu0 %v3869
    %4220 = vmatprep.subr.bf16.mxu0 %v3874
    %4221 = vmatpush1.bf16.msra.mxu0 %v3873
    %4222 = vmatprep.subr.bf16.mxu0 %v3878
    %4223 = vmatpush1.bf16.msra.mxu0 %v3877
    %4224 = vmatprep.subr.bf16.mxu0 %v3882
    %4225 = vmatpush1.bf16.msra.mxu0 %v3881
    %4226 = vmatprep.subr.bf16.mxu0 %v3886
    %4227 = vmatpush1.bf16.msra.mxu0 %v3885
    %4228 = vmatprep.subr.bf16.mxu0 %v3890
    %4229 = vmatpush1.bf16.msra.mxu0 %v3889
    %4230 = vmatprep.subr.bf16.mxu0 %v3894
    %4231 = vmatpush1.bf16.msra.mxu0 %v3893
    %4232 = vmatprep.subr.bf16.mxu0 %v3898
    %4233 = vmatpush1.bf16.msra.mxu0 %v3897
    %4234 = vmatprep.subr.bf16.mxu0 %v3902
    %4235 = vmatpush1.bf16.msra.mxu0 %v3901
    %4236 = vmatprep.subr.bf16.mxu0 %v3906
    %4237 = vmatpush1.bf16.msra.mxu0 %v3905
    %4238 = vmatprep.mubr.bf16.mxu0 %v2988
    %4239 = vmatmul.mubr.bf16.gmra.mrb[0].mxu0 %v2987
    %v4240 = vpop.f32.mrb[0].mxu0
    %v4241 = vadd.f32 %v4200, %v4240
    %v4242 = vpop.f32.mrb[0].mxu0
    %v4243 = vadd.f32 %v4202, %v4242
    %v4244 = vpop.f32.mrb[0].mxu0
    %v4245 = vpop.f32.mrb[0].mxu0
    %4246 = vdwg.mxu0
    %4247 = vmatprep.subr.bf16.mxu0 %v3910
    %4248 = vmatpush1.bf16.msra.mxu0 %v3909
    %4249 = vmatprep.subr.bf16.mxu0 %v3914
    %4250 = vmatpush1.bf16.msra.mxu0 %v3913
    %4251 = vmatprep.subr.bf16.mxu0 %v3918
    %4252 = vmatpush1.bf16.msra.mxu0 %v3917
    %4253 = vmatprep.subr.bf16.mxu0 %v3922
    %4254 = vmatpush1.bf16.msra.mxu0 %v3921
    %4255 = vmatprep.subr.bf16.mxu0 %v3926
    %4256 = vmatpush1.bf16.msra.mxu0 %v3925
    %4257 = vmatprep.subr.bf16.mxu0 %v3930
    %4258 = vmatpush1.bf16.msra.mxu0 %v3929
    %4259 = vmatprep.subr.bf16.mxu0 %v3934
    %4260 = vmatpush1.bf16.msra.mxu0 %v3933
    %4261 = vmatprep.subr.bf16.mxu0 %v3938
    %4262 = vmatpush1.bf16.msra.mxu0 %v3937
    %4263 = vmatprep.subr.bf16.mxu0 %v3942
    %4264 = vmatpush1.bf16.msra.mxu0 %v3941
    %4265 = vmatprep.subr.bf16.mxu0 %v3946
    %4266 = vmatpush1.bf16.msra.mxu0 %v3945
    %4267 = vmatprep.subr.bf16.mxu0 %v3950
    %4268 = vmatpush1.bf16.msra.mxu0 %v3949
    %4269 = vmatprep.subr.bf16.mxu0 %v3954
    %4270 = vmatpush1.bf16.msra.mxu0 %v3953
    %4271 = vmatprep.subr.bf16.mxu0 %v3958
    %4272 = vmatpush1.bf16.msra.mxu0 %v3957
    %4273 = vmatprep.subr.bf16.mxu0 %v3962
    %4274 = vmatpush1.bf16.msra.mxu0 %v3961
    %4275 = vmatprep.subr.bf16.mxu0 %v3966
    %4276 = vmatpush1.bf16.msra.mxu0 %v3965
    %4277 = vmatprep.subr.bf16.mxu0 %v3970
    %4278 = vmatpush1.bf16.msra.mxu0 %v3969
    %4279 = vmatprep.mubr.bf16.mxu0 %v2990
    %4280 = vmatmul.mubr.bf16.gmra.mrb[0].mxu0 %v2989
    %v4281 = vpop.f32.mrb[0].mxu0
    %v4282 = vadd.f32 %v4241, %v4281
    %v4283 = vpop.f32.mrb[0].mxu0
    %v4284 = vadd.f32 %v4243, %v4283
    %v4285 = vpop.f32.mrb[0].mxu0
    %v4286 = vpop.f32.mrb[0].mxu0
    %4287 = vdwg.mxu0
    %4288 = vmatprep.subr.bf16.mxu0 %v3784
    %4289 = vmatpush1.bf16.msra.mxu0 %v3783
    %4290 = vmatprep.subr.bf16.mxu0 %v3788
    %4291 = vmatpush1.bf16.msra.mxu0 %v3787
    %4292 = vmatprep.subr.bf16.mxu0 %v3792
    %4293 = vmatpush1.bf16.msra.mxu0 %v3791
    %4294 = vmatprep.subr.bf16.mxu0 %v3796
    %4295 = vmatpush1.bf16.msra.mxu0 %v3795
    %4296 = vmatprep.subr.bf16.mxu0 %v3800
    %4297 = vmatpush1.bf16.msra.mxu0 %v3799
    %4298 = vmatprep.subr.bf16.mxu0 %v3804
    %4299 = vmatpush1.bf16.msra.mxu0 %v3803
    %4300 = vmatprep.subr.bf16.mxu0 %v3808
    %4301 = vmatpush1.bf16.msra.mxu0 %v3807
    %4302 = vmatprep.subr.bf16.mxu0 %v3812
    %4303 = vmatpush1.bf16.msra.mxu0 %v3811
    %4304 = vmatprep.subr.bf16.mxu0 %v3816
    %4305 = vmatpush1.bf16.msra.mxu0 %v3815
    %4306 = vmatprep.subr.bf16.mxu0 %v3820
    %4307 = vmatpush1.bf16.msra.mxu0 %v3819
    %4308 = vmatprep.subr.bf16.mxu0 %v3824
    %4309 = vmatpush1.bf16.msra.mxu0 %v3823
    %4310 = vmatprep.subr.bf16.mxu0 %v3828
    %4311 = vmatpush1.bf16.msra.mxu0 %v3827
    %4312 = vmatprep.subr.bf16.mxu0 %v3832
    %4313 = vmatpush1.bf16.msra.mxu0 %v3831
    %4314 = vmatprep.subr.bf16.mxu0 %v3836
    %4315 = vmatpush1.bf16.msra.mxu0 %v3835
    %4316 = vmatprep.subr.bf16.mxu0 %v3840
    %4317 = vmatpush1.bf16.msra.mxu0 %v3839
    %4318 = vmatprep.subr.bf16.mxu0 %v3844
    %4319 = vmatpush1.bf16.msra.mxu0 %v3843
    %4320 = vmatprep.mubr.bf16.mxu0 %v2986
    %4321 = vmatmul.mubr.bf16.gmra.mrb[0].mxu0 %v2985
    %v4322 = vpop.f32.mrb[0].mxu0
    %v4323 = vadd.f32 %v3196, %v4322
    %v4324 = vpop.f32.mrb[0].mxu0
    %v4325 = vadd.f32 %v3200, %v4324
    %v4326 = vpop.f32.mrb[0].mxu0
    %v4327 = vpop.f32.mrb[0].mxu0
    %4328 = vdwg.mxu0
    %4329 = vmatprep.subr.bf16.mxu0 %v3848
    %4330 = vmatpush1.bf16.msra.mxu0 %v3847
    %4331 = vmatprep.subr.bf16.mxu0 %v3852
    %4332 = vmatpush1.bf16.msra.mxu0 %v3851
    %4333 = vmatprep.subr.bf16.mxu0 %v3856
    %4334 = vmatpush1.bf16.msra.mxu0 %v3855
    %4335 = vmatprep.subr.bf16.mxu0 %v3860
    %4336 = vmatpush1.bf16.msra.mxu0 %v3859
    %4337 = vmatprep.subr.bf16.mxu0 %v3864
    %4338 = vmatpush1.bf16.msra.mxu0 %v3863
    %4339 = vmatprep.subr.bf16.mxu0 %v3868
    %4340 = vmatpush1.bf16.msra.mxu0 %v3867
    %4341 = vmatprep.subr.bf16.mxu0 %v3872
    %4342 = vmatpush1.bf16.msra.mxu0 %v3871
    %4343 = vmatprep.subr.bf16.mxu0 %v3876
    %4344 = vmatpush1.bf16.msra.mxu0 %v3875
    %4345 = vmatprep.subr.bf16.mxu0 %v3880
    %4346 = vmatpush1.bf16.msra.mxu0 %v3879
    %4347 = vmatprep.subr.bf16.mxu0 %v3884
    %4348 = vmatpush1.bf16.msra.mxu0 %v3883
    %4349 = vmatprep.subr.bf16.mxu0 %v3888
    %4350 = vmatpush1.bf16.msra.mxu0 %v3887
    %4351 = vmatprep.subr.bf16.mxu0 %v3892
    %4352 = vmatpush1.bf16.msra.mxu0 %v3891
    %4353 = vmatprep.subr.bf16.mxu0 %v3896
    %4354 = vmatpush1.bf16.msra.mxu0 %v3895
    %4355 = vmatprep.subr.bf16.mxu0 %v3900
    %4356 = vmatpush1.bf16.msra.mxu0 %v3899
    %4357 = vmatprep.subr.bf16.mxu0 %v3904
    %4358 = vmatpush1.bf16.msra.mxu0 %v3903
    %4359 = vmatprep.subr.bf16.mxu0 %v3908
    %4360 = vmatpush1.bf16.msra.mxu0 %v3907
    %4361 = vmatprep.mubr.bf16.mxu0 %v2988
    %4362 = vmatmul.mubr.bf16.gmra.mrb[0].mxu0 %v2987
    %v4363 = vpop.f32.mrb[0].mxu0
    %v4364 = vadd.f32 %v4323, %v4363
    %v4365 = vpop.f32.mrb[0].mxu0
    %v4366 = vadd.f32 %v4325, %v4365
    %v4367 = vpop.f32.mrb[0].mxu0
    %v4368 = vpop.f32.mrb[0].mxu0
    %4369 = vdwg.mxu0
    %4370 = vmatprep.subr.bf16.mxu0 %v3912
    %4371 = vmatpush1.bf16.msra.mxu0 %v3911
    %4372 = vmatprep.subr.bf16.mxu0 %v3916
    %4373 = vmatpush1.bf16.msra.mxu0 %v3915
    %4374 = vmatprep.subr.bf16.mxu0 %v3920
    %4375 = vmatpush1.bf16.msra.mxu0 %v3919
    %4376 = vmatprep.subr.bf16.mxu0 %v3924
    %4377 = vmatpush1.bf16.msra.mxu0 %v3923
    %4378 = vmatprep.subr.bf16.mxu0 %v3928
    %4379 = vmatpush1.bf16.msra.mxu0 %v3927
    %4380 = vmatprep.subr.bf16.mxu0 %v3932
    %4381 = vmatpush1.bf16.msra.mxu0 %v3931
    %4382 = vmatprep.subr.bf16.mxu0 %v3936
    %4383 = vmatpush1.bf16.msra.mxu0 %v3935
    %4384 = vmatprep.subr.bf16.mxu0 %v3940
    %4385 = vmatpush1.bf16.msra.mxu0 %v3939
    %4386 = vmatprep.subr.bf16.mxu0 %v3944
    %4387 = vmatpush1.bf16.msra.mxu0 %v3943
    %4388 = vmatprep.subr.bf16.mxu0 %v3948
    %4389 = vmatpush1.bf16.msra.mxu0 %v3947
    %4390 = vmatprep.subr.bf16.mxu0 %v3952
    %4391 = vmatpush1.bf16.msra.mxu0 %v3951
    %4392 = vmatprep.subr.bf16.mxu0 %v3956
    %4393 = vmatpush1.bf16.msra.mxu0 %v3955
    %4394 = vmatprep.subr.bf16.mxu0 %v3960
    %4395 = vmatpush1.bf16.msra.mxu0 %v3959
    %4396 = vmatprep.subr.bf16.mxu0 %v3964
    %4397 = vmatpush1.bf16.msra.mxu0 %v3963
    %4398 = vmatprep.subr.bf16.mxu0 %v3968
    %4399 = vmatpush1.bf16.msra.mxu0 %v3967
    %4400 = vmatprep.subr.bf16.mxu0 %v3972
    %4401 = vmatpush1.bf16.msra.mxu0 %v3971
    %4402 = vmatprep.mubr.bf16.mxu0 %v2990
    %4403 = vmatmul.mubr.bf16.gmra.mrb[0].mxu0 %v2989
    %v4404 = vpop.f32.mrb[0].mxu0
    %v4405 = vadd.f32 %v4364, %v4404
    %v4406 = vpop.f32.mrb[0].mxu0
    %v4407 = vadd.f32 %v4366, %v4406
    %v4408 = vpop.f32.mrb[0].mxu0
    %v4409 = vpop.f32.mrb[0].mxu0
    %4410 = vdwg.mxu0
    %v4411 = vmax.f32 %v4282, 0.0
    %v4412 = vmax.f32 %v4284, 0.0
    %v4413 = vmax.f32 %v4405, 0.0
    %v4414 = vmax.f32 %v4407, 0.0
    %v4415 = vpack.c.bf16 %v4411, %v4411
    %v4416 = vpack.c.bf16 %v4412, %v4412
    %v4417 = vpack.c.bf16 %v4413, %v4413
    %v4418 = vpack.c.bf16 %v4414, %v4414
    %v4419 = vld [vmem:[#allocation8] sm:$0xff]
    %v4420 = vld [vmem:[#allocation8 + $0x8] sm:$0xf]
    %v4421 = vld [vmem:[#allocation8 + $0xc] sm:$0xff]
    %v4422 = vld [vmem:[#allocation8 + $0x14] sm:$0xf]
    %v4423 = vld [vmem:[#allocation8 + $0x18] sm:$0xff]
    %v4424 = vld [vmem:[#allocation8 + $0x20] sm:$0xf]
    %v4425 = vld [vmem:[#allocation8 + $0x24] sm:$0xff]
    %v4426 = vld [vmem:[#allocation8 + $0x2c] sm:$0xf]
    %v4427 = vld [vmem:[#allocation8 + $0x30] sm:$0xff]
    %v4428 = vld [vmem:[#allocation8 + $0x38] sm:$0xf]
    %v4429 = vld [vmem:[#allocation8 + $0x3c] sm:$0xff]
    %v4430 = vld [vmem:[#allocation8 + $0x44] sm:$0xf]
    %v4431 = vld [vmem:[#allocation8 + $0x48] sm:$0xff]
    %v4432 = vld [vmem:[#allocation8 + $0x50] sm:$0xf]
    %v4433 = vld [vmem:[#allocation8 + $0x54] sm:$0xff]
    %v4434 = vld [vmem:[#allocation8 + $0x5c] sm:$0xf]
    %v4435 = vld [vmem:[#allocation8 + $0x60] sm:$0xff]
    %v4436 = vld [vmem:[#allocation8 + $0x68] sm:$0xf]
    %v4437 = vld [vmem:[#allocation8 + $0x6c] sm:$0xff]
    %v4438 = vld [vmem:[#allocation8 + $0x74] sm:$0xf]
    %v4439 = vld [vmem:[#allocation8 + $0x78] sm:$0xff]
    %v4440 = vld [vmem:[#allocation8 + $0x80] sm:$0xf]
    %v4441 = vld [vmem:[#allocation8 + $0x84] sm:$0xff]
    %v4442 = vld [vmem:[#allocation8 + $0x8c] sm:$0xf]
    %v4443 = vld [vmem:[#allocation8 + $0x90] sm:$0xff]
    %v4444 = vld [vmem:[#allocation8 + $0x98] sm:$0xf]
    %v4445 = vld [vmem:[#allocation8 + $0x9c] sm:$0xff]
    %v4446 = vld [vmem:[#allocation8 + $0xa4] sm:$0xf]
    %v4447 = vld [vmem:[#allocation8 + $0xa8] sm:$0xff]
    %v4448 = vld [vmem:[#allocation8 + $0xb0] sm:$0xf]
    %v4449 = vld [vmem:[#allocation8 + $0xb4] sm:$0xff]
    %v4450 = vld [vmem:[#allocation8 + $0xbc] sm:$0xf]
    %v4451 = vld [vmem:[#allocation8 + $0xc0] sm:$0xff]
    %v4452 = vld [vmem:[#allocation8 + $0xc8] sm:$0xf]
    %v4453 = vld [vmem:[#allocation8 + $0xcc] sm:$0xff]
    %v4454 = vld [vmem:[#allocation8 + $0xd4] sm:$0xf]
    %v4455 = vld [vmem:[#allocation8 + $0xd8] sm:$0xff]
    %v4456 = vld [vmem:[#allocation8 + $0xe0] sm:$0xf]
    %v4457 = vld [vmem:[#allocation8 + $0xe4] sm:$0xff]
    %v4458 = vld [vmem:[#allocation8 + $0xec] sm:$0xf]
    %v4459 = vld [vmem:[#allocation8 + $0xf0] sm:$0xff]
    %v4460 = vld [vmem:[#allocation8 + $0xf8] sm:$0xf]
    %v4461 = vld [vmem:[#allocation8 + $0xfc] sm:$0xff]
    %v4462 = vld [vmem:[#allocation8 + $0x104] sm:$0xf]
    %v4463 = vld [vmem:[#allocation8 + $0x108] sm:$0xff]
    %v4464 = vld [vmem:[#allocation8 + $0x110] sm:$0xf]
    %v4465 = vld [vmem:[#allocation8 + $0x114] sm:$0xff]
    %v4466 = vld [vmem:[#allocation8 + $0x11c] sm:$0xf]
    %v4467 = vld [vmem:[#allocation8 + $0x120] sm:$0xff]
    %v4468 = vld [vmem:[#allocation8 + $0x128] sm:$0xf]
    %v4469 = vld [vmem:[#allocation8 + $0x12c] sm:$0xff]
    %v4470 = vld [vmem:[#allocation8 + $0x134] sm:$0xf]
    %v4471 = vld [vmem:[#allocation8 + $0x138] sm:$0xff]
    %v4472 = vld [vmem:[#allocation8 + $0x140] sm:$0xf]
    %v4473 = vld [vmem:[#allocation8 + $0x144] sm:$0xff]
    %v4474 = vld [vmem:[#allocation8 + $0x14c] sm:$0xf]
    %v4475 = vld [vmem:[#allocation8 + $0x150] sm:$0xff]
    %v4476 = vld [vmem:[#allocation8 + $0x158] sm:$0xf]
    %v4477 = vld [vmem:[#allocation8 + $0x15c] sm:$0xff]
    %v4478 = vld [vmem:[#allocation8 + $0x164] sm:$0xf]
    %v4479 = vld [vmem:[#allocation8 + $0x168] sm:$0xff]
    %v4480 = vld [vmem:[#allocation8 + $0x170] sm:$0xf]
    %v4481 = vld [vmem:[#allocation8 + $0x174] sm:$0xff]
    %v4482 = vld [vmem:[#allocation8 + $0x17c] sm:$0xf]
    %v4483 = vld [vmem:[#allocation8 + $0x180] sm:$0xff]
    %v4484 = vld [vmem:[#allocation8 + $0x188] sm:$0xf]
    %v4485 = vld [vmem:[#allocation8 + $0x18c] sm:$0xff]
    %v4486 = vld [vmem:[#allocation8 + $0x194] sm:$0xf]
    %v4487 = vld [vmem:[#allocation8 + $0x198] sm:$0xff]
    %v4488 = vld [vmem:[#allocation8 + $0x1a0] sm:$0xf]
    %v4489 = vld [vmem:[#allocation8 + $0x1a4] sm:$0xff]
    %v4490 = vld [vmem:[#allocation8 + $0x1ac] sm:$0xf]
    %v4491 = vld [vmem:[#allocation8 + $0x1b0] sm:$0xff]
    %v4492 = vld [vmem:[#allocation8 + $0x1b8] sm:$0xf]
    %v4493 = vld [vmem:[#allocation8 + $0x1bc] sm:$0xff]
    %v4494 = vld [vmem:[#allocation8 + $0x1c4] sm:$0xf]
    %v4495 = vld [vmem:[#allocation8 + $0x1c8] sm:$0xff]
    %v4496 = vld [vmem:[#allocation8 + $0x1d0] sm:$0xf]
    %v4497 = vld [vmem:[#allocation8 + $0x1d4] sm:$0xff]
    %v4498 = vld [vmem:[#allocation8 + $0x1dc] sm:$0xf]
    %v4499 = vld [vmem:[#allocation8 + $0x1e0] sm:$0xff]
    %v4500 = vld [vmem:[#allocation8 + $0x1e8] sm:$0xf]
    %v4501 = vld [vmem:[#allocation8 + $0x1ec] sm:$0xff]
    %v4502 = vld [vmem:[#allocation8 + $0x1f4] sm:$0xf]
    %v4503 = vld [vmem:[#allocation8 + $0x1f8] sm:$0xff]
    %v4504 = vld [vmem:[#allocation8 + $0x200] sm:$0xf]
    %v4505 = vld [vmem:[#allocation8 + $0x204] sm:$0xff]
    %v4506 = vld [vmem:[#allocation8 + $0x20c] sm:$0xf]
    %v4507 = vld [vmem:[#allocation8 + $0x210] sm:$0xff]
    %v4508 = vld [vmem:[#allocation8 + $0x218] sm:$0xf]
    %v4509 = vld [vmem:[#allocation8 + $0x21c] sm:$0xff]
    %v4510 = vld [vmem:[#allocation8 + $0x224] sm:$0xf]
    %v4511 = vld [vmem:[#allocation8 + $0x228] sm:$0xff]
    %v4512 = vld [vmem:[#allocation8 + $0x230] sm:$0xf]
    %v4513 = vld [vmem:[#allocation8 + $0x234] sm:$0xff]
    %v4514 = vld [vmem:[#allocation8 + $0x23c] sm:$0xf]
    %v4515 = vld [vmem:[#allocation8 + $0x240] sm:$0xff]
    %v4516 = vld [vmem:[#allocation8 + $0x248] sm:$0xf]
    %v4517 = vld [vmem:[#allocation8 + $0x24c] sm:$0xff]
    %v4518 = vld [vmem:[#allocation8 + $0x254] sm:$0xf]
    %v4519 = vld [vmem:[#allocation8 + $0x258] sm:$0xff]
    %v4520 = vld [vmem:[#allocation8 + $0x260] sm:$0xf]
    %v4521 = vld [vmem:[#allocation8 + $0x264] sm:$0xff]
    %v4522 = vld [vmem:[#allocation8 + $0x26c] sm:$0xf]
    %v4523 = vld [vmem:[#allocation8 + $0x270] sm:$0xff]
    %v4524 = vld [vmem:[#allocation8 + $0x278] sm:$0xf]
    %v4525 = vld [vmem:[#allocation8 + $0x27c] sm:$0xff]
    %v4526 = vld [vmem:[#allocation8 + $0x284] sm:$0xf]
    %v4527 = vld [vmem:[#allocation8 + $0x288] sm:$0xff]
    %v4528 = vld [vmem:[#allocation8 + $0x290] sm:$0xf]
    %v4529 = vld [vmem:[#allocation8 + $0x294] sm:$0xff]
    %v4530 = vld [vmem:[#allocation8 + $0x29c] sm:$0xf]
    %v4531 = vld [vmem:[#allocation8 + $0x2a0] sm:$0xff]
    %v4532 = vld [vmem:[#allocation8 + $0x2a8] sm:$0xf]
    %v4533 = vld [vmem:[#allocation8 + $0x2ac] sm:$0xff]
    %v4534 = vld [vmem:[#allocation8 + $0x2b4] sm:$0xf]
    %v4535 = vld [vmem:[#allocation8 + $0x2b8] sm:$0xff]
    %v4536 = vld [vmem:[#allocation8 + $0x2c0] sm:$0xf]
    %v4537 = vld [vmem:[#allocation8 + $0x2c4] sm:$0xff]
    %v4538 = vld [vmem:[#allocation8 + $0x2cc] sm:$0xf]
    %v4539 = vld [vmem:[#allocation8 + $0x2d0] sm:$0xff]
    %v4540 = vld [vmem:[#allocation8 + $0x2d8] sm:$0xf]
    %v4541 = vld [vmem:[#allocation8 + $0x2dc] sm:$0xff]
    %v4542 = vld [vmem:[#allocation8 + $0x2e4] sm:$0xf]
    %v4543 = vld [vmem:[#allocation8 + $0x2e8] sm:$0xff]
    %v4544 = vld [vmem:[#allocation8 + $0x2f0] sm:$0xf]
    %v4545 = vld [vmem:[#allocation8 + $0x2f4] sm:$0xff]
    %v4546 = vld [vmem:[#allocation8 + $0x2fc] sm:$0xf]
    %v4547 = vld [vmem:[#allocation13 + $0xa] sm:$0x7]
    %v4549 = vlaneseq
    %v4550 = vshrl.u32 %v4549, 7
    %v4551 = vsub.s32 0, %v4550
    %v4552 = vrot.slane %v4547, %v4551
    %v4553 = vlaneseq
    %v4554 = vshrl.u32 %v4553, 7
    %v4555 = vsub.s32 1, %v4554
    %v4556 = vrot.slane %v4547, %v4555
    %v4557 = vlaneseq
    %v4558 = vshrl.u32 %v4557, 7
    %v4559 = vsub.s32 2, %v4558
    %v4560 = vrot.slane %v4547, %v4559
    %v4692 = vunpack.c.l.b16 %v4419
    %v4693 = vunpack.c.h.b16 %v4419
    %v4694 = vunpack.c.l.b16 %v4420
    %v4695 = vunpack.c.l.b16 %v4421
    %v4696 = vunpack.c.h.b16 %v4421
    %v4697 = vunpack.c.l.b16 %v4422
    %v4698 = vunpack.c.l.b16 %v4423
    %v4699 = vunpack.c.h.b16 %v4423
    %v4700 = vunpack.c.l.b16 %v4424
    %v4701 = vunpack.c.l.b16 %v4425
    %v4702 = vunpack.c.h.b16 %v4425
    %v4703 = vunpack.c.l.b16 %v4426
    %v4704 = vunpack.c.l.b16 %v4427
    %v4705 = vunpack.c.h.b16 %v4427
    %v4706 = vunpack.c.l.b16 %v4428
    %v4707 = vunpack.c.l.b16 %v4429
    %v4708 = vunpack.c.h.b16 %v4429
    %v4709 = vunpack.c.l.b16 %v4430
    %v4710 = vunpack.c.l.b16 %v4431
    %v4711 = vunpack.c.h.b16 %v4431
    %v4712 = vunpack.c.l.b16 %v4432
    %v4713 = vunpack.c.l.b16 %v4433
    %v4714 = vunpack.c.h.b16 %v4433
    %v4715 = vunpack.c.l.b16 %v4434
    %v4716 = vunpack.c.l.b16 %v4435
    %v4717 = vunpack.c.h.b16 %v4435
    %v4718 = vunpack.c.l.b16 %v4436
    %v4719 = vunpack.c.l.b16 %v4437
    %v4720 = vunpack.c.h.b16 %v4437
    %v4721 = vunpack.c.l.b16 %v4438
    %v4722 = vunpack.c.l.b16 %v4439
    %v4723 = vunpack.c.h.b16 %v4439
    %v4724 = vunpack.c.l.b16 %v4440
    %v4725 = vunpack.c.l.b16 %v4441
    %v4726 = vunpack.c.h.b16 %v4441
    %v4727 = vunpack.c.l.b16 %v4442
    %v4728 = vunpack.c.l.b16 %v4443
    %v4729 = vunpack.c.h.b16 %v4443
    %v4730 = vunpack.c.l.b16 %v4444
    %v4731 = vunpack.c.l.b16 %v4445
    %v4732 = vunpack.c.h.b16 %v4445
    %v4733 = vunpack.c.l.b16 %v4446
    %v4734 = vunpack.c.l.b16 %v4447
    %v4735 = vunpack.c.h.b16 %v4447
    %v4736 = vunpack.c.l.b16 %v4448
    %v4737 = vunpack.c.l.b16 %v4449
    %v4738 = vunpack.c.h.b16 %v4449
    %v4739 = vunpack.c.l.b16 %v4450
    %v4740 = vunpack.c.l.b16 %v4451
    %v4741 = vunpack.c.h.b16 %v4451
    %v4742 = vunpack.c.l.b16 %v4452
    %v4743 = vunpack.c.l.b16 %v4453
    %v4744 = vunpack.c.h.b16 %v4453
    %v4745 = vunpack.c.l.b16 %v4454
    %v4746 = vunpack.c.l.b16 %v4455
    %v4747 = vunpack.c.h.b16 %v4455
    %v4748 = vunpack.c.l.b16 %v4456
    %v4749 = vunpack.c.l.b16 %v4457
    %v4750 = vunpack.c.h.b16 %v4457
    %v4751 = vunpack.c.l.b16 %v4458
    %v4752 = vunpack.c.l.b16 %v4459
    %v4753 = vunpack.c.h.b16 %v4459
    %v4754 = vunpack.c.l.b16 %v4460
    %v4755 = vunpack.c.l.b16 %v4461
    %v4756 = vunpack.c.h.b16 %v4461
    %v4757 = vunpack.c.l.b16 %v4462
    %v4758 = vunpack.c.l.b16 %v4463
    %v4759 = vunpack.c.h.b16 %v4463
    %v4760 = vunpack.c.l.b16 %v4464
    %v4761 = vunpack.c.l.b16 %v4465
    %v4762 = vunpack.c.h.b16 %v4465
    %v4763 = vunpack.c.l.b16 %v4466
    %v4764 = vunpack.c.l.b16 %v4467
    %v4765 = vunpack.c.h.b16 %v4467
    %v4766 = vunpack.c.l.b16 %v4468
    %v4767 = vunpack.c.l.b16 %v4469
    %v4768 = vunpack.c.h.b16 %v4469
    %v4769 = vunpack.c.l.b16 %v4470
    %v4770 = vunpack.c.l.b16 %v4471
    %v4771 = vunpack.c.h.b16 %v4471
    %v4772 = vunpack.c.l.b16 %v4472
    %v4773 = vunpack.c.l.b16 %v4473
    %v4774 = vunpack.c.h.b16 %v4473
    %v4775 = vunpack.c.l.b16 %v4474
    %v4776 = vunpack.c.l.b16 %v4475
    %v4777 = vunpack.c.h.b16 %v4475
    %v4778 = vunpack.c.l.b16 %v4476
    %v4779 = vunpack.c.l.b16 %v4477
    %v4780 = vunpack.c.h.b16 %v4477
    %v4781 = vunpack.c.l.b16 %v4478
    %v4782 = vunpack.c.l.b16 %v4479
    %v4783 = vunpack.c.h.b16 %v4479
    %v4784 = vunpack.c.l.b16 %v4480
    %v4785 = vunpack.c.l.b16 %v4481
    %v4786 = vunpack.c.h.b16 %v4481
    %v4787 = vunpack.c.l.b16 %v4482
    %v4788 = vunpack.c.l.b16 %v4483
    %v4789 = vunpack.c.h.b16 %v4483
    %v4790 = vunpack.c.l.b16 %v4484
    %v4791 = vunpack.c.l.b16 %v4485
    %v4792 = vunpack.c.h.b16 %v4485
    %v4793 = vunpack.c.l.b16 %v4486
    %v4794 = vunpack.c.l.b16 %v4487
    %v4795 = vunpack.c.h.b16 %v4487
    %v4796 = vunpack.c.l.b16 %v4488
    %v4797 = vunpack.c.l.b16 %v4489
    %v4798 = vunpack.c.h.b16 %v4489
    %v4799 = vunpack.c.l.b16 %v4490
    %v4800 = vunpack.c.l.b16 %v4491
    %v4801 = vunpack.c.h.b16 %v4491
    %v4802 = vunpack.c.l.b16 %v4492
    %v4803 = vunpack.c.l.b16 %v4493
    %v4804 = vunpack.c.h.b16 %v4493
    %v4805 = vunpack.c.l.b16 %v4494
    %v4806 = vunpack.c.l.b16 %v4495
    %v4807 = vunpack.c.h.b16 %v4495
    %v4808 = vunpack.c.l.b16 %v4496
    %v4809 = vunpack.c.l.b16 %v4497
    %v4810 = vunpack.c.h.b16 %v4497
    %v4811 = vunpack.c.l.b16 %v4498
    %v4812 = vunpack.c.l.b16 %v4499
    %v4813 = vunpack.c.h.b16 %v4499
    %v4814 = vunpack.c.l.b16 %v4500
    %v4815 = vunpack.c.l.b16 %v4501
    %v4816 = vunpack.c.h.b16 %v4501
    %v4817 = vunpack.c.l.b16 %v4502
    %v4818 = vunpack.c.l.b16 %v4503
    %v4819 = vunpack.c.h.b16 %v4503
    %v4820 = vunpack.c.l.b16 %v4504
    %v4821 = vunpack.c.l.b16 %v4505
    %v4822 = vunpack.c.h.b16 %v4505
    %v4823 = vunpack.c.l.b16 %v4506
    %v4824 = vunpack.c.l.b16 %v4507
    %v4825 = vunpack.c.h.b16 %v4507
    %v4826 = vunpack.c.l.b16 %v4508
    %v4827 = vunpack.c.l.b16 %v4509
    %v4828 = vunpack.c.h.b16 %v4509
    %v4829 = vunpack.c.l.b16 %v4510
    %v4830 = vunpack.c.l.b16 %v4511
    %v4831 = vunpack.c.h.b16 %v4511
    %v4832 = vunpack.c.l.b16 %v4512
    %v4833 = vunpack.c.l.b16 %v4513
    %v4834 = vunpack.c.h.b16 %v4513
    %v4835 = vunpack.c.l.b16 %v4514
    %v4836 = vunpack.c.l.b16 %v4515
    %v4837 = vunpack.c.h.b16 %v4515
    %v4838 = vunpack.c.l.b16 %v4516
    %v4839 = vunpack.c.l.b16 %v4517
    %v4840 = vunpack.c.h.b16 %v4517
    %v4841 = vunpack.c.l.b16 %v4518
    %v4842 = vunpack.c.l.b16 %v4519
    %v4843 = vunpack.c.h.b16 %v4519
    %v4844 = vunpack.c.l.b16 %v4520
    %v4845 = vunpack.c.l.b16 %v4521
    %v4846 = vunpack.c.h.b16 %v4521
    %v4847 = vunpack.c.l.b16 %v4522
    %v4848 = vunpack.c.l.b16 %v4523
    %v4849 = vunpack.c.h.b16 %v4523
    %v4850 = vunpack.c.l.b16 %v4524
    %v4851 = vunpack.c.l.b16 %v4525
    %v4852 = vunpack.c.h.b16 %v4525
    %v4853 = vunpack.c.l.b16 %v4526
    %v4854 = vunpack.c.l.b16 %v4527
    %v4855 = vunpack.c.h.b16 %v4527
    %v4856 = vunpack.c.l.b16 %v4528
    %v4857 = vunpack.c.l.b16 %v4529
    %v4858 = vunpack.c.h.b16 %v4529
    %v4859 = vunpack.c.l.b16 %v4530
    %v4860 = vunpack.c.l.b16 %v4531
    %v4861 = vunpack.c.h.b16 %v4531
    %v4862 = vunpack.c.l.b16 %v4532
    %v4863 = vunpack.c.l.b16 %v4533
    %v4864 = vunpack.c.h.b16 %v4533
    %v4865 = vunpack.c.l.b16 %v4534
    %v4866 = vunpack.c.l.b16 %v4535
    %v4867 = vunpack.c.h.b16 %v4535
    %v4868 = vunpack.c.l.b16 %v4536
    %v4869 = vunpack.c.l.b16 %v4537
    %v4870 = vunpack.c.h.b16 %v4537
    %v4871 = vunpack.c.l.b16 %v4538
    %v4872 = vunpack.c.l.b16 %v4539
    %v4873 = vunpack.c.h.b16 %v4539
    %v4874 = vunpack.c.l.b16 %v4540
    %v4875 = vunpack.c.l.b16 %v4541
    %v4876 = vunpack.c.h.b16 %v4541
    %v4877 = vunpack.c.l.b16 %v4542
    %v4878 = vunpack.c.l.b16 %v4543
    %v4879 = vunpack.c.h.b16 %v4543
    %v4880 = vunpack.c.l.b16 %v4544
    %v4881 = vunpack.c.l.b16 %v4545
    %v4882 = vunpack.c.h.b16 %v4545
    %v4883 = vunpack.c.l.b16 %v4546
    %v4884 = vpack.c.b16 %v4695, %v4692
    %v4885 = vpack.c.b16 %v4696, %v4693
    %v4886 = vpack.c.b16 %v4697, %v4694
    %v4887 = vpack.c.b16 %v4701, %v4698
    %v4888 = vpack.c.b16 %v4702, %v4699
    %v4889 = vpack.c.b16 %v4703, %v4700
    %v4890 = vpack.c.b16 %v4707, %v4704
    %v4891 = vpack.c.b16 %v4708, %v4705
    %v4892 = vpack.c.b16 %v4709, %v4706
    %v4893 = vpack.c.b16 %v4713, %v4710
    %v4894 = vpack.c.b16 %v4714, %v4711
    %v4895 = vpack.c.b16 %v4715, %v4712
    %v4896 = vpack.c.b16 %v4719, %v4716
    %v4897 = vpack.c.b16 %v4720, %v4717
    %v4898 = vpack.c.b16 %v4721, %v4718
    %v4899 = vpack.c.b16 %v4725, %v4722
    %v4900 = vpack.c.b16 %v4726, %v4723
    %v4901 = vpack.c.b16 %v4727, %v4724
    %v4902 = vpack.c.b16 %v4731, %v4728
    %v4903 = vpack.c.b16 %v4732, %v4729
    %v4904 = vpack.c.b16 %v4733, %v4730
    %v4905 = vpack.c.b16 %v4737, %v4734
    %v4906 = vpack.c.b16 %v4738, %v4735
    %v4907 = vpack.c.b16 %v4739, %v4736
    %v4908 = vpack.c.b16 %v4743, %v4740
    %v4909 = vpack.c.b16 %v4744, %v4741
    %v4910 = vpack.c.b16 %v4745, %v4742
    %v4911 = vpack.c.b16 %v4749, %v4746
    %v4912 = vpack.c.b16 %v4750, %v4747
    %v4913 = vpack.c.b16 %v4751, %v4748
    %v4914 = vpack.c.b16 %v4755, %v4752
    %v4915 = vpack.c.b16 %v4756, %v4753
    %v4916 = vpack.c.b16 %v4757, %v4754
    %v4917 = vpack.c.b16 %v4761, %v4758
    %v4918 = vpack.c.b16 %v4762, %v4759
    %v4919 = vpack.c.b16 %v4763, %v4760
    %v4920 = vpack.c.b16 %v4767, %v4764
    %v4921 = vpack.c.b16 %v4768, %v4765
    %v4922 = vpack.c.b16 %v4769, %v4766
    %v4923 = vpack.c.b16 %v4773, %v4770
    %v4924 = vpack.c.b16 %v4774, %v4771
    %v4925 = vpack.c.b16 %v4775, %v4772
    %v4926 = vpack.c.b16 %v4779, %v4776
    %v4927 = vpack.c.b16 %v4780, %v4777
    %v4928 = vpack.c.b16 %v4781, %v4778
    %v4929 = vpack.c.b16 %v4785, %v4782
    %v4930 = vpack.c.b16 %v4786, %v4783
    %v4931 = vpack.c.b16 %v4787, %v4784
    %v4932 = vpack.c.b16 %v4791, %v4788
    %v4933 = vpack.c.b16 %v4792, %v4789
    %v4934 = vpack.c.b16 %v4793, %v4790
    %v4935 = vpack.c.b16 %v4797, %v4794
    %v4936 = vpack.c.b16 %v4798, %v4795
    %v4937 = vpack.c.b16 %v4799, %v4796
    %v4938 = vpack.c.b16 %v4803, %v4800
    %v4939 = vpack.c.b16 %v4804, %v4801
    %v4940 = vpack.c.b16 %v4805, %v4802
    %v4941 = vpack.c.b16 %v4809, %v4806
    %v4942 = vpack.c.b16 %v4810, %v4807
    %v4943 = vpack.c.b16 %v4811, %v4808
    %v4944 = vpack.c.b16 %v4815, %v4812
    %v4945 = vpack.c.b16 %v4816, %v4813
    %v4946 = vpack.c.b16 %v4817, %v4814
    %v4947 = vpack.c.b16 %v4821, %v4818
    %v4948 = vpack.c.b16 %v4822, %v4819
    %v4949 = vpack.c.b16 %v4823, %v4820
    %v4950 = vpack.c.b16 %v4827, %v4824
    %v4951 = vpack.c.b16 %v4828, %v4825
    %v4952 = vpack.c.b16 %v4829, %v4826
    %v4953 = vpack.c.b16 %v4833, %v4830
    %v4954 = vpack.c.b16 %v4834, %v4831
    %v4955 = vpack.c.b16 %v4835, %v4832
    %v4956 = vpack.c.b16 %v4839, %v4836
    %v4957 = vpack.c.b16 %v4840, %v4837
    %v4958 = vpack.c.b16 %v4841, %v4838
    %v4959 = vpack.c.b16 %v4845, %v4842
    %v4960 = vpack.c.b16 %v4846, %v4843
    %v4961 = vpack.c.b16 %v4847, %v4844
    %v4962 = vpack.c.b16 %v4851, %v4848
    %v4963 = vpack.c.b16 %v4852, %v4849
    %v4964 = vpack.c.b16 %v4853, %v4850
    %v4965 = vpack.c.b16 %v4857, %v4854
    %v4966 = vpack.c.b16 %v4858, %v4855
    %v4967 = vpack.c.b16 %v4859, %v4856
    %v4968 = vpack.c.b16 %v4863, %v4860
    %v4969 = vpack.c.b16 %v4864, %v4861
    %v4970 = vpack.c.b16 %v4865, %v4862
    %v4971 = vpack.c.b16 %v4869, %v4866
    %v4972 = vpack.c.b16 %v4870, %v4867
    %v4973 = vpack.c.b16 %v4871, %v4868
    %v4974 = vpack.c.b16 %v4875, %v4872
    %v4975 = vpack.c.b16 %v4876, %v4873
    %v4976 = vpack.c.b16 %v4877, %v4874
    %v4977 = vpack.c.b16 %v4881, %v4878
    %v4978 = vpack.c.b16 %v4882, %v4879
    %v4979 = vpack.c.b16 %v4883, %v4880
    %5076 = vmatprep.subr.bf16.mxu0 %v4885
    %5077 = vmatpush1.bf16.msra.mxu0 %v4884
    %5078 = vmatprep.subr.bf16.mxu0 %v4888
    %5079 = vmatpush1.bf16.msra.mxu0 %v4887
    %5080 = vmatprep.subr.bf16.mxu0 %v4891
    %5081 = vmatpush1.bf16.msra.mxu0 %v4890
    %5082 = vmatprep.subr.bf16.mxu0 %v4894
    %5083 = vmatpush1.bf16.msra.mxu0 %v4893
    %5084 = vmatprep.subr.bf16.mxu0 %v4897
    %5085 = vmatpush1.bf16.msra.mxu0 %v4896
    %5086 = vmatprep.subr.bf16.mxu0 %v4900
    %5087 = vmatpush1.bf16.msra.mxu0 %v4899
    %5088 = vmatprep.subr.bf16.mxu0 %v4903
    %5089 = vmatpush1.bf16.msra.mxu0 %v4902
    %5090 = vmatprep.subr.bf16.mxu0 %v4906
    %5091 = vmatpush1.bf16.msra.mxu0 %v4905
    %5092 = vmatprep.subr.bf16.mxu0 %v4909
    %5093 = vmatpush1.bf16.msra.mxu0 %v4908
    %5094 = vmatprep.subr.bf16.mxu0 %v4912
    %5095 = vmatpush1.bf16.msra.mxu0 %v4911
    %5096 = vmatprep.subr.bf16.mxu0 %v4915
    %5097 = vmatpush1.bf16.msra.mxu0 %v4914
    %5098 = vmatprep.subr.bf16.mxu0 %v4918
    %5099 = vmatpush1.bf16.msra.mxu0 %v4917
    %5100 = vmatprep.subr.bf16.mxu0 %v4921
    %5101 = vmatpush1.bf16.msra.mxu0 %v4920
    %5102 = vmatprep.subr.bf16.mxu0 %v4924
    %5103 = vmatpush1.bf16.msra.mxu0 %v4923
    %5104 = vmatprep.subr.bf16.mxu0 %v4927
    %5105 = vmatpush1.bf16.msra.mxu0 %v4926
    %5106 = vmatprep.subr.bf16.mxu0 %v4930
    %5107 = vmatpush1.bf16.msra.mxu0 %v4929
    %5108 = vmatprep.mubr.bf16.mxu0 %v4416
    %5109 = vmatmul.mubr.bf16.gmra.mrb[0].mxu0 %v4415
    %v5110 = vpop.f32.mrb[0].mxu0
    %v5111 = vadd.f32 %v4552, %v5110
    %v5112 = vpop.f32.mrb[0].mxu0
    %v5113 = vadd.f32 %v4556, %v5112
    %v5114 = vpop.f32.mrb[0].mxu0
    %v5115 = vpop.f32.mrb[0].mxu0
    %5116 = vdwg.mxu0
    %5117 = vmatprep.subr.bf16.mxu0 %v4933
    %5118 = vmatpush1.bf16.msra.mxu0 %v4932
    %5119 = vmatprep.subr.bf16.mxu0 %v4936
    %5120 = vmatpush1.bf16.msra.mxu0 %v4935
    %5121 = vmatprep.subr.bf16.mxu0 %v4939
    %5122 = vmatpush1.bf16.msra.mxu0 %v4938
    %5123 = vmatprep.subr.bf16.mxu0 %v4942
    %5124 = vmatpush1.bf16.msra.mxu0 %v4941
    %5125 = vmatprep.subr.bf16.mxu0 %v4945
    %5126 = vmatpush1.bf16.msra.mxu0 %v4944
    %5127 = vmatprep.subr.bf16.mxu0 %v4948
    %5128 = vmatpush1.bf16.msra.mxu0 %v4947
    %5129 = vmatprep.subr.bf16.mxu0 %v4951
    %5130 = vmatpush1.bf16.msra.mxu0 %v4950
    %5131 = vmatprep.subr.bf16.mxu0 %v4954
    %5132 = vmatpush1.bf16.msra.mxu0 %v4953
    %5133 = vmatprep.subr.bf16.mxu0 %v4957
    %5134 = vmatpush1.bf16.msra.mxu0 %v4956
    %5135 = vmatprep.subr.bf16.mxu0 %v4960
    %5136 = vmatpush1.bf16.msra.mxu0 %v4959
    %5137 = vmatprep.subr.bf16.mxu0 %v4963
    %5138 = vmatpush1.bf16.msra.mxu0 %v4962
    %5139 = vmatprep.subr.bf16.mxu0 %v4966
    %5140 = vmatpush1.bf16.msra.mxu0 %v4965
    %5141 = vmatprep.subr.bf16.mxu0 %v4969
    %5142 = vmatpush1.bf16.msra.mxu0 %v4968
    %5143 = vmatprep.subr.bf16.mxu0 %v4972
    %5144 = vmatpush1.bf16.msra.mxu0 %v4971
    %5145 = vmatprep.subr.bf16.mxu0 %v4975
    %5146 = vmatpush1.bf16.msra.mxu0 %v4974
    %5147 = vmatprep.subr.bf16.mxu0 %v4978
    %5148 = vmatpush1.bf16.msra.mxu0 %v4977
    %5149 = vmatprep.mubr.bf16.mxu0 %v4418
    %5150 = vmatmul.mubr.bf16.gmra.mrb[0].mxu0 %v4417
    %v5151 = vpop.f32.mrb[0].mxu0
    %v5152 = vadd.f32 %v5111, %v5151
    %v5153 = vpop.f32.mrb[0].mxu0
    %v5154 = vadd.f32 %v5113, %v5153
    %v5155 = vpop.f32.mrb[0].mxu0
    %v5156 = vpop.f32.mrb[0].mxu0
    %5157 = vdwg.mxu0
    %5158 = vmatprep.subr.bf16.mxu0 0
    %5159 = vmatpush1.bf16.msra.mxu0 %v4886
    %5160 = vmatprep.subr.bf16.mxu0 0
    %5161 = vmatpush1.bf16.msra.mxu0 %v4889
    %5162 = vmatprep.subr.bf16.mxu0 0
    %5163 = vmatpush1.bf16.msra.mxu0 %v4892
    %5164 = vmatprep.subr.bf16.mxu0 0
    %5165 = vmatpush1.bf16.msra.mxu0 %v4895
    %5166 = vmatprep.subr.bf16.mxu0 0
    %5167 = vmatpush1.bf16.msra.mxu0 %v4898
    %5168 = vmatprep.subr.bf16.mxu0 0
    %5169 = vmatpush1.bf16.msra.mxu0 %v4901
    %5170 = vmatprep.subr.bf16.mxu0 0
    %5171 = vmatpush1.bf16.msra.mxu0 %v4904
    %5172 = vmatprep.subr.bf16.mxu0 0
    %5173 = vmatpush1.bf16.msra.mxu0 %v4907
    %5174 = vmatprep.subr.bf16.mxu0 0
    %5175 = vmatpush1.bf16.msra.mxu0 %v4910
    %5176 = vmatprep.subr.bf16.mxu0 0
    %5177 = vmatpush1.bf16.msra.mxu0 %v4913
    %5178 = vmatprep.subr.bf16.mxu0 0
    %5179 = vmatpush1.bf16.msra.mxu0 %v4916
    %5180 = vmatprep.subr.bf16.mxu0 0
    %5181 = vmatpush1.bf16.msra.mxu0 %v4919
    %5182 = vmatprep.subr.bf16.mxu0 0
    %5183 = vmatpush1.bf16.msra.mxu0 %v4922
    %5184 = vmatprep.subr.bf16.mxu0 0
    %5185 = vmatpush1.bf16.msra.mxu0 %v4925
    %5186 = vmatprep.subr.bf16.mxu0 0
    %5187 = vmatpush1.bf16.msra.mxu0 %v4928
    %5188 = vmatprep.subr.bf16.mxu0 0
    %5189 = vmatpush1.bf16.msra.mxu0 %v4931
    %5190 = vmatprep.mubr.bf16.mxu0 %v4416
    %5191 = vmatmul.mubr.bf16.gmra.mrb[0].mxu0 %v4415
    %v5192 = vpop.f32.mrb[0].mxu0
    %v5193 = vadd.f32 %v4560, %v5192
    %v5194 = vpop.f32.mrb[0].mxu0
    %v5195 = vpop.f32.mrb[0].mxu0
    %v5196 = vpop.f32.mrb[0].mxu0
    %5197 = vdwg.mxu0
    %5198 = vmatprep.subr.bf16.mxu0 0
    %5199 = vmatpush1.bf16.msra.mxu0 %v4934
    %5200 = vmatprep.subr.bf16.mxu0 0
    %5201 = vmatpush1.bf16.msra.mxu0 %v4937
    %5202 = vmatprep.subr.bf16.mxu0 0
    %5203 = vmatpush1.bf16.msra.mxu0 %v4940
    %5204 = vmatprep.subr.bf16.mxu0 0
    %5205 = vmatpush1.bf16.msra.mxu0 %v4943
    %5206 = vmatprep.subr.bf16.mxu0 0
    %5207 = vmatpush1.bf16.msra.mxu0 %v4946
    %5208 = vmatprep.subr.bf16.mxu0 0
    %5209 = vmatpush1.bf16.msra.mxu0 %v4949
    %5210 = vmatprep.subr.bf16.mxu0 0
    %5211 = vmatpush1.bf16.msra.mxu0 %v4952
    %5212 = vmatprep.subr.bf16.mxu0 0
    %5213 = vmatpush1.bf16.msra.mxu0 %v4955
    %5214 = vmatprep.subr.bf16.mxu0 0
    %5215 = vmatpush1.bf16.msra.mxu0 %v4958
    %5216 = vmatprep.subr.bf16.mxu0 0
    %5217 = vmatpush1.bf16.msra.mxu0 %v4961
    %5218 = vmatprep.subr.bf16.mxu0 0
    %5219 = vmatpush1.bf16.msra.mxu0 %v4964
    %5220 = vmatprep.subr.bf16.mxu0 0
    %5221 = vmatpush1.bf16.msra.mxu0 %v4967
    %5222 = vmatprep.subr.bf16.mxu0 0
    %5223 = vmatpush1.bf16.msra.mxu0 %v4970
    %5224 = vmatprep.subr.bf16.mxu0 0
    %5225 = vmatpush1.bf16.msra.mxu0 %v4973
    %5226 = vmatprep.subr.bf16.mxu0 0
    %5227 = vmatpush1.bf16.msra.mxu0 %v4976
    %5228 = vmatprep.subr.bf16.mxu0 0
    %5229 = vmatpush1.bf16.msra.mxu0 %v4979
    %5230 = vmatprep.mubr.bf16.mxu0 %v4418
    %5231 = vmatmul.mubr.bf16.gmra.mrb[0].mxu0 %v4417
    %v5232 = vpop.f32.mrb[0].mxu0
    %v5233 = vadd.f32 %v5193, %v5232
    %v5234 = vpop.f32.mrb[0].mxu0
    %v5235 = vpop.f32.mrb[0].mxu0
    %v5236 = vpop.f32.mrb[0].mxu0
    %5237 = vdwg.mxu0
    %v5238 = vmax.f32 %v5152, 0.0
    %v5239 = vmax.f32 %v5154, 0.0
    %v5240 = vmax.f32 %v5233, 0.0
    %v5241 = vpack.c.bf16 %v5238, %v5238
    %v5242 = vpack.c.bf16 %v5239, %v5239
    %v5243 = vpack.c.bf16 %v5240, %v5240
    %v5244 = vld [vmem:[#allocation10] sm:$0xf]
    %v5245 = vld [vmem:[#allocation10 + $0x4] sm:$0xf]
    %v5246 = vld [vmem:[#allocation10 + $0x8] sm:$0xf]
    %v5247 = vld [vmem:[#allocation10 + $0xc] sm:$0xf]
    %v5248 = vld [vmem:[#allocation10 + $0x10] sm:$0xf]
    %v5249 = vld [vmem:[#allocation10 + $0x14] sm:$0xf]
    %v5250 = vld [vmem:[#allocation10 + $0x18] sm:$0xf]
    %v5251 = vld [vmem:[#allocation10 + $0x1c] sm:$0xf]
    %v5252 = vld [vmem:[#allocation10 + $0x20] sm:$0xf]
    %v5253 = vld [vmem:[#allocation10 + $0x24] sm:$0xf]
    %v5254 = vld [vmem:[#allocation10 + $0x28] sm:$0xf]
    %v5255 = vld [vmem:[#allocation10 + $0x2c] sm:$0xf]
    %v5256 = vld [vmem:[#allocation10 + $0x30] sm:$0xf]
    %v5257 = vld [vmem:[#allocation10 + $0x34] sm:$0xf]
    %v5258 = vld [vmem:[#allocation10 + $0x38] sm:$0xf]
    %v5259 = vld [vmem:[#allocation10 + $0x3c] sm:$0xf]
    %v5260 = vld [vmem:[#allocation10 + $0x40] sm:$0xf]
    %v5261 = vld [vmem:[#allocation10 + $0x44] sm:$0xf]
    %v5262 = vld [vmem:[#allocation10 + $0x48] sm:$0xf]
    %v5263 = vld [vmem:[#allocation10 + $0x4c] sm:$0xf]
    %v5264 = vld [vmem:[#allocation10 + $0x50] sm:$0xf]
    %v5265 = vld [vmem:[#allocation10 + $0x54] sm:$0xf]
    %v5266 = vld [vmem:[#allocation10 + $0x58] sm:$0xf]
    %v5267 = vld [vmem:[#allocation10 + $0x5c] sm:$0xf]
    %v5268 = vld [vmem:[#allocation10 + $0x60] sm:$0xf]
    %v5269 = vld [vmem:[#allocation10 + $0x64] sm:$0xf]
    %v5270 = vld [vmem:[#allocation10 + $0x68] sm:$0xf]
    %v5271 = vld [vmem:[#allocation10 + $0x6c] sm:$0xf]
    %v5272 = vld [vmem:[#allocation10 + $0x70] sm:$0xf]
    %v5273 = vld [vmem:[#allocation10 + $0x74] sm:$0xf]
    %v5274 = vld [vmem:[#allocation10 + $0x78] sm:$0xf]
    %v5275 = vld [vmem:[#allocation10 + $0x7c] sm:$0xf]
    %v5276 = vld [vmem:[#allocation10 + $0x80] sm:$0xf]
    %v5277 = vld [vmem:[#allocation10 + $0x84] sm:$0xf]
    %v5278 = vld [vmem:[#allocation10 + $0x88] sm:$0xf]
    %v5279 = vld [vmem:[#allocation10 + $0x8c] sm:$0xf]
    %v5280 = vld [vmem:[#allocation10 + $0x90] sm:$0xf]
    %v5281 = vld [vmem:[#allocation10 + $0x94] sm:$0xf]
    %v5282 = vld [vmem:[#allocation10 + $0x98] sm:$0xf]
    %v5283 = vld [vmem:[#allocation10 + $0x9c] sm:$0xf]
    %v5284 = vld [vmem:[#allocation10 + $0xa0] sm:$0xf]
    %v5285 = vld [vmem:[#allocation10 + $0xa4] sm:$0xf]
    %v5286 = vld [vmem:[#allocation10 + $0xa8] sm:$0xf]
    %v5287 = vld [vmem:[#allocation10 + $0xac] sm:$0xf]
    %v5288 = vld [vmem:[#allocation10 + $0xb0] sm:$0xf]
    %v5289 = vld [vmem:[#allocation10 + $0xb4] sm:$0xf]
    %v5290 = vld [vmem:[#allocation10 + $0xb8] sm:$0xf]
    %v5291 = vld [vmem:[#allocation10 + $0xbc] sm:$0xf]
    %v5292 = vld [vmem:[#allocation13 + $0xd] sm:$0x1]
    %v5294 = vlaneseq
    %v5295 = vshrl.u32 %v5294, 7
    %v5296 = vsub.s32 0, %v5295
    %v5297 = vrot.slane %v5292, %v5296
    %v5347 = vunpack.c.l.b16 %v5244
    %v5348 = vunpack.c.l.b16 %v5245
    %v5349 = vunpack.c.l.b16 %v5246
    %v5350 = vunpack.c.l.b16 %v5247
    %v5351 = vunpack.c.l.b16 %v5248
    %v5352 = vunpack.c.l.b16 %v5249
    %v5353 = vunpack.c.l.b16 %v5250
    %v5354 = vunpack.c.l.b16 %v5251
    %v5355 = vunpack.c.l.b16 %v5252
    %v5356 = vunpack.c.l.b16 %v5253
    %v5357 = vunpack.c.l.b16 %v5254
    %v5358 = vunpack.c.l.b16 %v5255
    %v5359 = vunpack.c.l.b16 %v5256
    %v5360 = vunpack.c.l.b16 %v5257
    %v5361 = vunpack.c.l.b16 %v5258
    %v5362 = vunpack.c.l.b16 %v5259
    %v5363 = vunpack.c.l.b16 %v5260
    %v5364 = vunpack.c.l.b16 %v5261
    %v5365 = vunpack.c.l.b16 %v5262
    %v5366 = vunpack.c.l.b16 %v5263
    %v5367 = vunpack.c.l.b16 %v5264
    %v5368 = vunpack.c.l.b16 %v5265
    %v5369 = vunpack.c.l.b16 %v5266
    %v5370 = vunpack.c.l.b16 %v5267
    %v5371 = vunpack.c.l.b16 %v5268
    %v5372 = vunpack.c.l.b16 %v5269
    %v5373 = vunpack.c.l.b16 %v5270
    %v5374 = vunpack.c.l.b16 %v5271
    %v5375 = vunpack.c.l.b16 %v5272
    %v5376 = vunpack.c.l.b16 %v5273
    %v5377 = vunpack.c.l.b16 %v5274
    %v5378 = vunpack.c.l.b16 %v5275
    %v5379 = vunpack.c.l.b16 %v5276
    %v5380 = vunpack.c.l.b16 %v5277
    %v5381 = vunpack.c.l.b16 %v5278
    %v5382 = vunpack.c.l.b16 %v5279
    %v5383 = vunpack.c.l.b16 %v5280
    %v5384 = vunpack.c.l.b16 %v5281
    %v5385 = vunpack.c.l.b16 %v5282
    %v5386 = vunpack.c.l.b16 %v5283
    %v5387 = vunpack.c.l.b16 %v5284
    %v5388 = vunpack.c.l.b16 %v5285
    %v5389 = vunpack.c.l.b16 %v5286
    %v5390 = vunpack.c.l.b16 %v5287
    %v5391 = vunpack.c.l.b16 %v5288
    %v5392 = vunpack.c.l.b16 %v5289
    %v5393 = vunpack.c.l.b16 %v5290
    %v5394 = vunpack.c.l.b16 %v5291
    %v5395 = vpack.c.b16 %v5348, %v5347
    %v5396 = vpack.c.b16 %v5350, %v5349
    %v5397 = vpack.c.b16 %v5352, %v5351
    %v5398 = vpack.c.b16 %v5354, %v5353
    %v5399 = vpack.c.b16 %v5356, %v5355
    %v5400 = vpack.c.b16 %v5358, %v5357
    %v5401 = vpack.c.b16 %v5360, %v5359
    %v5402 = vpack.c.b16 %v5362, %v5361
    %v5403 = vpack.c.b16 %v5364, %v5363
    %v5404 = vpack.c.b16 %v5366, %v5365
    %v5405 = vpack.c.b16 %v5368, %v5367
    %v5406 = vpack.c.b16 %v5370, %v5369
    %v5407 = vpack.c.b16 %v5372, %v5371
    %v5408 = vpack.c.b16 %v5374, %v5373
    %v5409 = vpack.c.b16 %v5376, %v5375
    %v5410 = vpack.c.b16 %v5378, %v5377
    %v5411 = vpack.c.b16 %v5380, %v5379
    %v5412 = vpack.c.b16 %v5382, %v5381
    %v5413 = vpack.c.b16 %v5384, %v5383
    %v5414 = vpack.c.b16 %v5386, %v5385
    %v5415 = vpack.c.b16 %v5388, %v5387
    %v5416 = vpack.c.b16 %v5390, %v5389
    %v5417 = vpack.c.b16 %v5392, %v5391
    %v5418 = vpack.c.b16 %v5394, %v5393
    %5443 = vmatprep.subr.bf16.mxu0 0
    %5444 = vmatpush1.bf16.msra.mxu0 %v5395
    %5445 = vmatprep.subr.bf16.mxu0 0
    %5446 = vmatpush1.bf16.msra.mxu0 %v5396
    %5447 = vmatprep.subr.bf16.mxu0 0
    %5448 = vmatpush1.bf16.msra.mxu0 %v5397
    %5449 = vmatprep.subr.bf16.mxu0 0
    %5450 = vmatpush1.bf16.msra.mxu0 %v5398
    %5451 = vmatprep.subr.bf16.mxu0 0
    %5452 = vmatpush1.bf16.msra.mxu0 %v5399
    %5453 = vmatprep.subr.bf16.mxu0 0
    %5454 = vmatpush1.bf16.msra.mxu0 %v5400
    %5455 = vmatprep.subr.bf16.mxu0 0
    %5456 = vmatpush1.bf16.msra.mxu0 %v5401
    %5457 = vmatprep.subr.bf16.mxu0 0
    %5458 = vmatpush1.bf16.msra.mxu0 %v5402
    %5459 = vmatprep.subr.bf16.mxu0 0
    %5460 = vmatpush1.bf16.msra.mxu0 %v5403
    %5461 = vmatprep.subr.bf16.mxu0 0
    %5462 = vmatpush1.bf16.msra.mxu0 %v5404
    %5463 = vmatprep.subr.bf16.mxu0 0
    %5464 = vmatpush1.bf16.msra.mxu0 %v5405
    %5465 = vmatprep.subr.bf16.mxu0 0
    %5466 = vmatpush1.bf16.msra.mxu0 %v5406
    %5467 = vmatprep.subr.bf16.mxu0 0
    %5468 = vmatpush1.bf16.msra.mxu0 %v5407
    %5469 = vmatprep.subr.bf16.mxu0 0
    %5470 = vmatpush1.bf16.msra.mxu0 %v5408
    %5471 = vmatprep.subr.bf16.mxu0 0
    %5472 = vmatpush1.bf16.msra.mxu0 %v5409
    %5473 = vmatprep.subr.bf16.mxu0 0
    %5474 = vmatpush1.bf16.msra.mxu0 %v5410
    %5475 = vmatprep.mubr.bf16.mxu0 %v5242
    %5476 = vmatmul.mubr.bf16.gmra.mrb[0].mxu0 %v5241
    %v5477 = vpop.f32.mrb[0].mxu0
    %v5478 = vadd.f32 %v5297, %v5477
    %v5479 = vpop.f32.mrb[0].mxu0
    %v5480 = vpop.f32.mrb[0].mxu0
    %v5481 = vpop.f32.mrb[0].mxu0
    %5482 = vdwg.mxu0
    %5483 = vmatprep.subr.bf16.mxu0 0
    %5484 = vmatpush1.bf16.msra.mxu0 %v5411
    %5485 = vmatprep.subr.bf16.mxu0 0
    %5486 = vmatpush1.bf16.msra.mxu0 %v5412
    %5487 = vmatprep.subr.bf16.mxu0 0
    %5488 = vmatpush1.bf16.msra.mxu0 %v5413
    %5489 = vmatprep.subr.bf16.mxu0 0
    %5490 = vmatpush1.bf16.msra.mxu0 %v5414
    %5491 = vmatprep.subr.bf16.mxu0 0
    %5492 = vmatpush1.bf16.msra.mxu0 %v5415
    %5493 = vmatprep.subr.bf16.mxu0 0
    %5494 = vmatpush1.bf16.msra.mxu0 %v5416
    %5495 = vmatprep.subr.bf16.mxu0 0
    %5496 = vmatpush1.bf16.msra.mxu0 %v5417
    %5497 = vmatprep.subr.bf16.mxu0 0
    %5498 = vmatpush1.bf16.msra.mxu0 %v5418
    %5499 = vmatprep.subr.bf16.mxu0 0
    %5500 = vmatpush1.bf16.msra.mxu0 0
    %5501 = vmatprep.subr.bf16.mxu0 0
    %5502 = vmatpush1.bf16.msra.mxu0 0
    %5503 = vmatprep.subr.bf16.mxu0 0
    %5504 = vmatpush1.bf16.msra.mxu0 0
    %5505 = vmatprep.subr.bf16.mxu0 0
    %5506 = vmatpush1.bf16.msra.mxu0 0
    %5507 = vmatprep.subr.bf16.mxu0 0
    %5508 = vmatpush1.bf16.msra.mxu0 0
    %5509 = vmatprep.subr.bf16.mxu0 0
    %5510 = vmatpush1.bf16.msra.mxu0 0
    %5511 = vmatprep.subr.bf16.mxu0 0
    %5512 = vmatpush1.bf16.msra.mxu0 0
    %5513 = vmatprep.subr.bf16.mxu0 0
    %5514 = vmatpush1.bf16.msra.mxu0 0
    %5515 = vmatprep.mubr.bf16.mxu0 0
    %5516 = vmatmul.mubr.bf16.gmra.mrb[0].mxu0 %v5243
    %v5517 = vpop.f32.mrb[0].mxu0
    %v5518 = vadd.f32 %v5478, %v5517
    %v5519 = vpop.f32.mrb[0].mxu0
    %v5520 = vpop.f32.mrb[0].mxu0
    %v5521 = vpop.f32.mrb[0].mxu0
    %5522 = vdwg.mxu0
    %v5523 = vmax.f32 %v5518, 0.0
    %v5524 = vpack.c.bf16 %v5523, %v5523
    %v5525 = vld [vmem:[#allocation11] sm:$0xf]
    %v5526 = vld [vmem:[#allocation11 + $0x4] sm:$0xf]
    %v5527 = vld [vmem:[#allocation11 + $0x8] sm:$0xf]
    %v5528 = vld [vmem:[#allocation11 + $0xc] sm:$0xf]
    %v5529 = vld [vmem:[#allocation11 + $0x10] sm:$0xf]
    %v5530 = vld [vmem:[#allocation11 + $0x14] sm:$0xf]
    %v5531 = vld [vmem:[#allocation11 + $0x18] sm:$0xf]
    %v5532 = vld [vmem:[#allocation11 + $0x1c] sm:$0xf]
    %v5533 = vld [vmem:[#allocation11 + $0x20] sm:$0xf]
    %v5534 = vld [vmem:[#allocation11 + $0x24] sm:$0xf]
    %v5535 = vld [vmem:[#allocation11 + $0x28] sm:$0xf]
    %v5536 = vld [vmem:[#allocation11 + $0x2c] sm:$0xf]
    %v5537 = vld [vmem:[#allocation11 + $0x30] sm:$0xf]
    %v5538 = vld [vmem:[#allocation11 + $0x34] sm:$0xf]
    %v5539 = vld [vmem:[#allocation11 + $0x38] sm:$0xf]
    %v5540 = vld [vmem:[#allocation11 + $0x3c] sm:$0xf]
    %v5541 = vld [vmem:[#allocation13 + $0xe] sm:$0x1]
    %v5543 = vlaneseq
    %v5544 = vshrl.u32 %v5543, 7
    %v5545 = vsub.s32 0, %v5544
    %v5546 = vrot.slane %v5541, %v5545
    %v5564 = vunpack.c.l.b16 %v5525
    %v5565 = vunpack.c.l.b16 %v5526
    %v5566 = vunpack.c.l.b16 %v5527
    %v5567 = vunpack.c.l.b16 %v5528
    %v5568 = vunpack.c.l.b16 %v5529
    %v5569 = vunpack.c.l.b16 %v5530
    %v5570 = vunpack.c.l.b16 %v5531
    %v5571 = vunpack.c.l.b16 %v5532
    %v5572 = vunpack.c.l.b16 %v5533
    %v5573 = vunpack.c.l.b16 %v5534
    %v5574 = vunpack.c.l.b16 %v5535
    %v5575 = vunpack.c.l.b16 %v5536
    %v5576 = vunpack.c.l.b16 %v5537
    %v5577 = vunpack.c.l.b16 %v5538
    %v5578 = vunpack.c.l.b16 %v5539
    %v5579 = vunpack.c.l.b16 %v5540
    %v5580 = vpack.c.b16 %v5565, %v5564
    %v5581 = vpack.c.b16 %v5567, %v5566
    %v5582 = vpack.c.b16 %v5569, %v5568
    %v5583 = vpack.c.b16 %v5571, %v5570
    %v5584 = vpack.c.b16 %v5573, %v5572
    %v5585 = vpack.c.b16 %v5575, %v5574
    %v5586 = vpack.c.b16 %v5577, %v5576
    %v5587 = vpack.c.b16 %v5579, %v5578
    %5596 = vmatprep.subr.bf16.mxu0 0
    %5597 = vmatpush1.bf16.msra.mxu0 %v5580
    %5598 = vmatprep.subr.bf16.mxu0 0
    %5599 = vmatpush1.bf16.msra.mxu0 %v5581
    %5600 = vmatprep.subr.bf16.mxu0 0
    %5601 = vmatpush1.bf16.msra.mxu0 %v5582
    %5602 = vmatprep.subr.bf16.mxu0 0
    %5603 = vmatpush1.bf16.msra.mxu0 %v5583
    %5604 = vmatprep.subr.bf16.mxu0 0
    %5605 = vmatpush1.bf16.msra.mxu0 %v5584
    %5606 = vmatprep.subr.bf16.mxu0 0
    %5607 = vmatpush1.bf16.msra.mxu0 %v5585
    %5608 = vmatprep.subr.bf16.mxu0 0
    %5609 = vmatpush1.bf16.msra.mxu0 %v5586
    %5610 = vmatprep.subr.bf16.mxu0 0
    %5611 = vmatpush1.bf16.msra.mxu0 %v5587
    %5612 = vmatprep.subr.bf16.mxu0 0
    %5613 = vmatpush1.bf16.msra.mxu0 0
    %5614 = vmatprep.subr.bf16.mxu0 0
    %5615 = vmatpush1.bf16.msra.mxu0 0
    %5616 = vmatprep.subr.bf16.mxu0 0
    %5617 = vmatpush1.bf16.msra.mxu0 0
    %5618 = vmatprep.subr.bf16.mxu0 0
    %5619 = vmatpush1.bf16.msra.mxu0 0
    %5620 = vmatprep.subr.bf16.mxu0 0
    %5621 = vmatpush1.bf16.msra.mxu0 0
    %5622 = vmatprep.subr.bf16.mxu0 0
    %5623 = vmatpush1.bf16.msra.mxu0 0
    %5624 = vmatprep.subr.bf16.mxu0 0
    %5625 = vmatpush1.bf16.msra.mxu0 0
    %5626 = vmatprep.subr.bf16.mxu0 0
    %5627 = vmatpush1.bf16.msra.mxu0 0
    %5628 = vmatprep.mubr.bf16.mxu0 0
    %5629 = vmatmul.mubr.bf16.gmra.mrb[0].mxu0 %v5524
    %v5630 = vpop.f32.mrb[0].mxu0
    %v5631 = vadd.f32 %v5546, %v5630
    %v5632 = vpop.f32.mrb[0].mxu0
    %v5633 = vpop.f32.mrb[0].mxu0
    %v5634 = vpop.f32.mrb[0].mxu0
    %5635 = vdwg.mxu0
    %v5636 = vxor.u32 %v5631, 2147483648
    %v5637 = vmul.f32 %v5636, 1.442695
    %v5638 = vpow.pop %v5637
    %v5639 = vadd.f32 %v5638, 1.0
    %v5640 = vrcp.pop %v5639
    %v5641 = vmul.f32 1.0, %v5640
    %5642 = vst [vmem:[#allocation14] sm:$0xff] %v5641
    // Predicated region
    $region58: #{tpu_custom_call.1} parent=1 // pred_check
      _
    $region59: #{tpu_custom_call.1} parent=1 // pred_check_branch
      %5644 = sbr.rel (0) target = $region61
    $region60: #{tpu_custom_call.1} parent=1 // pred_region
      %s5646 = ssub.s32 128, 128
      %5647 = vsyncadd [#allocation4], %s5646
      %s5649 = sshll.u32 [#allocation14], 4
      %s5650 = int_to_ptr.vmem [resolvable:$true] %s5649
      %5652 = dma.vmem_to_hbm [thread:$0]  %s5650, 128, %s7, [#allocation4]
    $region61: #{tpu_custom_call.1} parent=1 // pred_fallthru
      _
    // Predicated region
    $region62: #{tpu_custom_call.1} parent=1 // pred_check
      _
    $region63: #{tpu_custom_call.1} parent=1 // pred_check_branch
      %5654 = sbr.rel (0) target = $region65
    $region64: #{tpu_custom_call.1} parent=1 // pred_region
      %5655 = dma.done [#allocation4], 128
    $region65: #{tpu_custom_call.1} parent=1 // pred_fallthru
      _
    %5656 = vsyncpa [#allocation3], 1
    %5657 = vsyncpa [#allocation6], 1
    %5658 = vsyncpa [#allocation9], 1
    %5659 = vsyncpa [#allocation12], 1
    %5660 = vsyncpa [#allocation4], 1

</llo_original>
